<compile_context>
chip_gen: v5e
topology: v5e:2x2
jax: 0.10.0
libtpu: 0.0.40
codegen_flags: <defaults>
</compile_context>

<pallas_src>
import numpy as np
import jax
import jax.numpy as jnp
from jax import lax
from jax.experimental import pallas as pl
from jax.experimental.pallas import tpu as pltpu


# Kernel weight order (all stored pre-transposed so every matmul is x @ W):
_KERNEL_WEIGHTS = [
    "wih_g_fT", "wih_g_sT", "whh_gT", "bih_g", "bhh_g",   # global GRU cell
    "wih_p_fT", "wih_p_gT", "whh_pT", "bih_p", "bhh_p",   # party  GRU cell
    "wih_eT", "bih_e", "bhh_e",                           # emotion GRU cell (h == 0 always)
    "watt_T",                                             # attention Linear (no bias)
]


def _myrnn_kernel(feat_ref, mask_ref,
                  wgf_ref, wgs_ref, whg_ref, big_ref, bhg_ref,
                  wpf_ref, wpg_ref, whp_ref, bip_ref, bhp_ref,
                  wie_ref, bie_ref, bhe_ref,
                  watt_ref,
                  emo_ref,
                  ghist_ref, hprev_ref, spk_ref,
                  xw_sc, gig_sc, gip_sc, par_sc):
    c = pl.program_id(1)                       # time-chunk index (sequential axis)
    Tc = emo_ref.shape[0]
    Bb, P, S = spk_ref.shape
    T = ghist_ref.shape[1]
    G = ghist_ref.shape[2]
    E = emo_ref.shape[2]
    F = feat_ref.shape[2]
    S3 = 3 * S

    # ---- reset recurrent state at the start of each batch shard's time sweep
    @pl.when(c == 0)
    def _init():
        ghist_ref[...] = jnp.zeros_like(ghist_ref)
        hprev_ref[...] = jnp.zeros_like(hprev_ref)
        spk_ref[...] = jnp.zeros_like(spk_ref)

    # ---- chunk-level precompute: everything that only depends on the features
    feat2 = feat_ref[...].reshape(Tc * Bb, F).astype(jnp.float32)
    xw_sc[...] = jnp.dot(feat2, watt_ref[...], preferred_element_type=jnp.float32)
    gig_sc[...] = (jnp.dot(feat2, wgf_ref[...], preferred_element_type=jnp.float32)
                   + big_ref[...])
    gip_sc[...] = (jnp.dot(feat2, wpf_ref[...], preferred_element_type=jnp.float32)
                   + bip_ref[...])

    iota_p = lax.broadcasted_iota(jnp.int32, (Bb, P), 1)
    iota_t = lax.broadcasted_iota(jnp.int32, (Bb, T), 1)

    def step(t_local, carry):
        t_glob = c * Tc + t_local
        row0 = pl.multiple_of(t_local * Bb, Bb)

        mask = mask_ref[t_local].astype(jnp.float32)            # (Bb, P)
        speaker0 = spk_ref[...]                                 # (Bb, P, S)
        h_prev = hprev_ref[...]                                 # (Bb, G)

        # first-occurrence argmax over party (== torch.argmax for one-hot rows)
        maxv = jnp.max(mask, axis=1, keepdims=True)
        cand = jnp.where(mask == maxv, iota_p, P)
        idx = jnp.min(cand, axis=1, keepdims=True)              # (Bb, 1)
        onehot = (iota_p == idx).astype(jnp.float32)            # (Bb, P)

        spk_sel = jnp.sum(onehot[:, :, None] * speaker0, axis=1)   # (Bb, S)

        # ---- global GRU cell (feature part of gi precomputed for the chunk) --
        gi_g = gig_sc[pl.ds(row0, Bb), :] + jnp.dot(
            spk_sel, wgs_ref[...], preferred_element_type=jnp.float32)
        gh_g = jnp.dot(h_prev, whg_ref[...],
                       preferred_element_type=jnp.float32) + bhg_ref[...]
        r_g = jax.nn.sigmoid(gi_g[:, :G] + gh_g[:, :G])
        z_g = jax.nn.sigmoid(gi_g[:, G:2 * G] + gh_g[:, G:2 * G])
        n_g = jnp.tanh(gi_g[:, 2 * G:] + r_g * gh_g[:, 2 * G:])
        g_state = (1.0 - z_g) * n_g + z_g * h_prev              # (Bb, G)

        # ---- attention over history rows [0, t_glob): batched MXU matmuls ----
        xw = xw_sc[pl.ds(row0, Bb), :]                          # (Bb, G)
        hist = ghist_ref[...]                                   # (Bb, T, G)
        scores = jnp.einsum('bqg,btg->bqt', xw[:, None, :], hist,
                            preferred_element_type=jnp.float32)[:, 0, :]   # (Bb, T)
        valid = iota_t < t_glob
        scores = jnp.where(valid, scores, jnp.float32(-1e30))
        m = jnp.max(scores, axis=1, keepdims=True)
        e = jnp.where(valid, jnp.exp(scores - m), 0.0)
        denom = jnp.sum(e, axis=1, keepdims=True)
        alpha = e / jnp.where(denom > 0, denom, 1.0)            # (Bb, T); 0 at t==0
        context = jnp.einsum('bqt,btg->bqg', alpha[:, None, :], hist,
                             preferred_element_type=jnp.float32)[:, 0, :]  # (Bb, G)

        # ---- party GRU cell, batched over all Bb*P parties -------------------
        gi_p = gip_sc[pl.ds(row0, Bb), :] + jnp.dot(
            context, wpg_ref[...], preferred_element_type=jnp.float32)     # (Bb, 3S)
        spk_flat = speaker0.reshape(Bb * P, S)
        gh_p = jnp.dot(spk_flat, whp_ref[...],
                       preferred_element_type=jnp.float32) + bhp_ref[...]  # (Bb*P, 3S)
        gi_pf = jnp.broadcast_to(gi_p[:, None, :], (Bb, P, S3)).reshape(Bb * P, S3)
        r_p = jax.nn.sigmoid(gi_pf[:, :S] + gh_p[:, :S])
        z_p = jax.nn.sigmoid(gi_pf[:, S:2 * S] + gh_p[:, S:2 * S])
        n_p = jnp.tanh(gi_pf[:, 2 * S:] + r_p * gh_p[:, 2 * S:])
        parties_state = ((1.0 - z_p) * n_p + z_p * spk_flat).reshape(Bb, P, S)

        m_ = mask[:, :, None]
        speaker = speaker0 * (1.0 - m_) + parties_state * m_    # (Bb, P, S)

        # selected party state feeds the chunk-batched emotion GRU after the loop
        par_sc[pl.ds(row0, Bb), :] = jnp.sum(onehot[:, :, None] * speaker, axis=1)

        # ---- persist recurrent state ----------------------------------------
        spk_ref[...] = speaker
        hprev_ref[...] = g_state
        ghist_ref[:, pl.ds(t_glob, 1), :] = g_state[:, None, :]
        return carry

    lax.fori_loop(0, Tc, step, 0, unroll=True)

    # ---- emotion GRU, batched over the whole Tc*Bb chunk (hidden is always 0)
    parties_all = par_sc[...]                                   # (Tc*Bb, S)
    gi_e = jnp.dot(parties_all, wie_ref[...],
                   preferred_element_type=jnp.float32) + bie_ref[...]
    bhe = bhe_ref[...]                                          # (1, 3E); 0 @ whh_e + bhh_e
    r_e = jax.nn.sigmoid(gi_e[:, :E] + bhe[:, :E])
    z_e = jax.nn.sigmoid(gi_e[:, E:2 * E] + bhe[:, E:2 * E])
    n_e = jnp.tanh(gi_e[:, 2 * E:] + r_e * bhe[:, 2 * E:])
    emotion = (1.0 - z_e) * n_e                                 # + z_e * 0
    emo_ref[...] = emotion.reshape(Tc, Bb, E).astype(emo_ref.dtype)


def _largest_divisor_leq(n, cap):
    for d in range(min(n, cap), 0, -1):
        if n % d == 0:
            return d
    return 1


def myrnn_forward(feats, masks, params, *, time_chunk=None, batch_block=None):
    feats = feats.astype(jnp.float32)
    masks = masks.astype(jnp.float32)
    T, B, F = feats.shape
    P = masks.shape[2]
    G = params["whh_gT"].shape[0]
    S = params["whh_pT"].shape[0]
    E = params["whh_eT"].shape[0]

    # Time-chunk size (amortizes per-grid-step overhead; must divide T).
    if time_chunk is None:
        time_chunk = _largest_divisor_leq(T, 16)
    Tc = int(time_chunk)
    assert T % Tc == 0, "time_chunk must divide the sequence length"
    n_chunks = T // Tc

    # Batch sharding (megacore "parallel" axis). Only shard when the block
    # keeps the second-to-last dim either full or a multiple of 8.
    if batch_block is None:
        batch_block = B // 2 if (B % 2 == 0 and (B // 2) % 8 == 0) else B
    Bb = int(batch_block)
    assert B % Bb == 0 and (Bb == B or Bb % 8 == 0)
    nb = B // Bb

    # Split the concatenated-input GRU weights wrapper-side so the kernel
    # never concatenates activations along the lane dimension.
    w = dict(params)
    w["wih_g_fT"], w["wih_g_sT"] = params["wih_gT"][:F], params["wih_gT"][F:]
    w["wih_p_fT"], w["wih_p_gT"] = params["wih_pT"][:F], params["wih_pT"][F:]

    def wspec(shape):
        nd = len(shape)
        return pl.BlockSpec(shape, lambda b, c, nd=nd: (0,) * nd)

    in_specs = [
        pl.BlockSpec((Tc, Bb, F), lambda b, c: (c, b, 0)),
        pl.BlockSpec((Tc, Bb, P), lambda b, c: (c, b, 0)),
    ] + [wspec(w[k].shape) for k in _KERNEL_WEIGHTS]

    return pl.pallas_call(
        _myrnn_kernel,
        out_shape=jax.ShapeDtypeStruct((T, B, E), jnp.float32),
        grid_spec=pltpu.PrefetchScalarGridSpec(
            num_scalar_prefetch=0,
            grid=(nb, n_chunks),
            in_specs=in_specs,
            out_specs=pl.BlockSpec((Tc, Bb, E), lambda b, c: (c, b, 0)),
            scratch_shapes=[
                pltpu.VMEM((Bb, T, G), jnp.float32),        # global-GRU history (batch-major)
                pltpu.VMEM((Bb, G), jnp.float32),           # previous global state (carry)
                pltpu.VMEM((Bb, P, S), jnp.float32),        # per-party speaker state
                pltpu.VMEM((Tc * Bb, G), jnp.float32),      # attention transform of chunk feats
                pltpu.VMEM((Tc * Bb, 3 * G), jnp.float32),  # feat part of global-GRU gates
                pltpu.VMEM((Tc * Bb, 3 * S), jnp.float32),  # feat part of party-GRU gates
                pltpu.VMEM((Tc * Bb, S), jnp.float32),      # selected party state per step
            ],
        ),
        compiler_params=pltpu.CompilerParams(
            dimension_semantics=("parallel", "arbitrary"),
            vmem_limit_bytes=48 * 1024 * 1024,
        ),
    )(feats, masks, *[w[k] for k in _KERNEL_WEIGHTS])


# -------------------------- pure-JAX reference --------------------------- #
def _gru_ref(x, h, wT_ih, wT_hh, b_ih, b_hh):
    H = h.shape[-1]
    gi = x @ wT_ih + b_ih
    gh = h @ wT_hh + b_hh
    r = jax.nn.sigmoid(gi[:, :H] + gh[:, :H])
    z = jax.nn.sigmoid(gi[:, H:2 * H] + gh[:, H:2 * H])
    n = jnp.tanh(gi[:, 2 * H:] + r * gh[:, 2 * H:])
    return (1.0 - z) * n + z * h


def reference_forward(feats, masks, p):
    T, B, F = feats.shape
    P = masks.shape[2]
    G = p["whh_gT"].shape[0]
    S = p["whh_pT"].shape[0]
    E = p["whh_eT"].shape[0]
    speaker = jnp.zeros((B, P, S), jnp.float32)
    ghist, emotions = [], []
    for t in range(T):
        feat, mask = feats[t], masks[t]
        idx = jnp.argmax(mask, axis=1)
        spk_sel = speaker[jnp.arange(B), idx]
        x_g = jnp.concatenate([feat, spk_sel], axis=1)
        h_prev = jnp.zeros((B, G), jnp.float32) if t == 0 else ghist[-1]
        g_state = _gru_ref(x_g, h_prev, p["wih_gT"], p["whh_gT"],
                           p["bih_g"], p["bhh_g"])
        if t == 0:
            context = jnp.zeros((B, G), jnp.float32)
        else:
            M = jnp.stack(ghist, 0)
            xw = feat @ p["watt_T"]
            scores = jnp.einsum("bg,tbg->bt", xw, M)
            alpha = jax.nn.softmax(scores, axis=1)
            context = jnp.einsum("bt,tbg->bg", alpha, M)
        feat_ctx = jnp.concatenate([feat, context], axis=1)
        x_p = jnp.broadcast_to(feat_ctx[:, None, :], (B, P, F + G)).reshape(B * P, F + G)
        h_p = speaker.reshape(B * P, S)
        parties_state = _gru_ref(x_p, h_p, p["wih_pT"], p["whh_pT"],
                                 p["bih_p"], p["bhh_p"]).reshape(B, P, S)
        m_ = mask[:, :, None]
        speaker = speaker * (1.0 - m_) + parties_state * m_
        parties = speaker[jnp.arange(B), idx]
        emotion = _gru_ref(parties, jnp.zeros((B, E), jnp.float32),
                           p["wih_eT"], p["whh_eT"], p["bih_e"], p["bhh_e"])
        ghist.append(g_state)
        emotions.append(emotion)
    return jnp.stack(emotions, 0)


# ------------------------------ parameters -------------------------------- #
def init_params(key, F, G, S, E):
    ks = jax.random.split(key, 13)

    def u(k, shape, bound):
        return jax.random.uniform(k, shape, jnp.float32, -bound, bound)

    bg, bs, be = 1.0 / np.sqrt(G), 1.0 / np.sqrt(S), 1.0 / np.sqrt(E)
    return {
        # global GRU: input F+S, hidden G  (weights stored pre-transposed)
        "wih_gT": u(ks[0], (F + S, 3 * G), bg),
        "whh_gT": u(ks[1], (G, 3 * G), bg),
        "bih_g":  u(ks[2], (1, 3 * G), bg),
        "bhh_g":  u(ks[3], (1, 3 * G), bg),
        # party GRU: input F+G, hidden S
        "wih_pT": u(ks[4], (F + G, 3 * S), bs),
        "whh_pT": u(ks[5], (S, 3 * S), bs),
        "bih_p":  u(ks[6], (1, 3 * S), bs),
        "bhh_p":  u(ks[7], (1, 3 * S), bs),
        # emotion GRU: input S, hidden E
        "wih_eT": u(ks[8], (S, 3 * E), be),
        "whh_eT": u(ks[9], (E, 3 * E), be),
        "bih_e":  u(ks[10], (1, 3 * E), be),
        "bhh_e":  u(ks[11], (1, 3 * E), be),
        # attention transform: Linear(F -> G, bias=False), stored transposed (F, G)
        "watt_T": u(ks[12], (F, G), 1.0 / np.sqrt(F)),
    }


if __name__ == "__main__":
    T, B, P = 8, 2, 2
    F, G, S, E = 16, 16, 16, 8

    key = jax.random.PRNGKey(0)
    k_par, k_feat, k_spk = jax.random.split(key, 3)

    params = init_params(k_par, F, G, S, E)
    feature_concat = jax.random.normal(k_feat, (T, B, F), jnp.float32)
    speaker_ids = jax.random.randint(k_spk, (T, B), 0, P)
    speaker_mask = jax.nn.one_hot(speaker_ids, P, dtype=jnp.float32)

    # time_chunk=4 -> grid (1, 2): exercises cross-chunk state carry.
    out = myrnn_forward(feature_concat, speaker_mask, params, time_chunk=4)
    out = jax.block_until_ready(out)

    ref = reference_forward(feature_concat, speaker_mask, params)
    np.testing.assert_allclose(np.asarray(out), np.asarray(ref),
                               rtol=1e-3, atol=1e-3)

    print("KERNEL_OK")
</pallas_src>

<mosaic_0001>
module attributes {stable_mosaic.version = 11 : i64} {
  func.func @_myrnn_kernel(%arg0: i32, %arg1: i32, %arg2: memref<4x2x16xf32, #tpu.memory_space<vmem>>, %arg3: memref<4x2x2xf32, #tpu.memory_space<vmem>>, %arg4: memref<16x48xf32, #tpu.memory_space<vmem>>, %arg5: memref<16x48xf32, #tpu.memory_space<vmem>>, %arg6: memref<16x48xf32, #tpu.memory_space<vmem>>, %arg7: memref<1x48xf32, #tpu.memory_space<vmem>>, %arg8: memref<1x48xf32, #tpu.memory_space<vmem>>, %arg9: memref<16x48xf32, #tpu.memory_space<vmem>>, %arg10: memref<16x48xf32, #tpu.memory_space<vmem>>, %arg11: memref<16x48xf32, #tpu.memory_space<vmem>>, %arg12: memref<1x48xf32, #tpu.memory_space<vmem>>, %arg13: memref<1x48xf32, #tpu.memory_space<vmem>>, %arg14: memref<16x24xf32, #tpu.memory_space<vmem>>, %arg15: memref<1x24xf32, #tpu.memory_space<vmem>>, %arg16: memref<1x24xf32, #tpu.memory_space<vmem>>, %arg17: memref<16x16xf32, #tpu.memory_space<vmem>>, %arg18: memref<4x2x8xf32, #tpu.memory_space<vmem>>, %arg19: memref<2x8x16xf32, #tpu.memory_space<vmem>>, %arg20: memref<2x16xf32, #tpu.memory_space<vmem>>, %arg21: memref<2x2x16xf32, #tpu.memory_space<vmem>>, %arg22: memref<8x16xf32, #tpu.memory_space<vmem>>, %arg23: memref<8x48xf32, #tpu.memory_space<vmem>>, %arg24: memref<8x48xf32, #tpu.memory_space<vmem>>, %arg25: memref<8x16xf32, #tpu.memory_space<vmem>>) attributes {dimension_semantics = [#tpu.dimension_semantics<parallel>, #tpu.dimension_semantics<arbitrary>], iteration_bounds = array<i64: 1, 2>, scalar_prefetch = 0 : i64, scratch_operands = 7 : i64, tpu.core_type = #tpu.core_type<tc>, window_params = [{transform_indices = @transform_0, window_bounds = array<i64: 4, 2, 16>}, {transform_indices = @transform_1, window_bounds = array<i64: 4, 2, 2>}, {pipeline_mode = #tpu.pipeline_mode<synchronous>, transform_indices = @transform_2, window_bounds = array<i64: 16, 48>}, {pipeline_mode = #tpu.pipeline_mode<synchronous>, transform_indices = @transform_3, window_bounds = array<i64: 16, 48>}, {pipeline_mode = #tpu.pipeline_mode<synchronous>, transform_indices = @transform_4, window_bounds = array<i64: 16, 48>}, {pipeline_mode = #tpu.pipeline_mode<synchronous>, transform_indices = @transform_5, window_bounds = array<i64: 1, 48>}, {pipeline_mode = #tpu.pipeline_mode<synchronous>, transform_indices = @transform_6, window_bounds = array<i64: 1, 48>}, {pipeline_mode = #tpu.pipeline_mode<synchronous>, transform_indices = @transform_7, window_bounds = array<i64: 16, 48>}, {pipeline_mode = #tpu.pipeline_mode<synchronous>, transform_indices = @transform_8, window_bounds = array<i64: 16, 48>}, {pipeline_mode = #tpu.pipeline_mode<synchronous>, transform_indices = @transform_9, window_bounds = array<i64: 16, 48>}, {pipeline_mode = #tpu.pipeline_mode<synchronous>, transform_indices = @transform_10, window_bounds = array<i64: 1, 48>}, {pipeline_mode = #tpu.pipeline_mode<synchronous>, transform_indices = @transform_11, window_bounds = array<i64: 1, 48>}, {pipeline_mode = #tpu.pipeline_mode<synchronous>, transform_indices = @transform_12, window_bounds = array<i64: 16, 24>}, {pipeline_mode = #tpu.pipeline_mode<synchronous>, transform_indices = @transform_13, window_bounds = array<i64: 1, 24>}, {pipeline_mode = #tpu.pipeline_mode<synchronous>, transform_indices = @transform_14, window_bounds = array<i64: 1, 24>}, {pipeline_mode = #tpu.pipeline_mode<synchronous>, transform_indices = @transform_15, window_bounds = array<i64: 16, 16>}, {transform_indices = @transform_16, window_bounds = array<i64: 4, 2, 8>}]} {
    %c0_i32 = arith.constant 0 : i32
    %0 = arith.cmpi eq, %arg1, %c0_i32 : i32
    %1 = arith.extui %0 : i1 to i32
    %c0_i32_0 = arith.constant 0 : i32
    %2 = arith.cmpi ne, %1, %c0_i32_0 : i32
    scf.if %2 {
      %cst_273 = arith.constant 0.000000e+00 : f32
      %658 = vector.broadcast %cst_273 : f32 to vector<2x8x16xf32>
      %c0_274 = arith.constant 0 : index
      %c0_275 = arith.constant 0 : index
      %c0_276 = arith.constant 0 : index
      %659 = vector.load %arg19[%c0_274, %c0_275, %c0_276] : memref<2x8x16xf32, #tpu.memory_space<vmem>>, vector<2x8x16xf32>
      tpu.vector_store %arg19[%c0_274, %c0_275, %c0_276], %658 {strides = array<i32>} : memref<2x8x16xf32, #tpu.memory_space<vmem>>, vector<2x8x16xf32>,
      %cst_277 = arith.constant 0.000000e+00 : f32
      %660 = vector.broadcast %cst_277 : f32 to vector<2x16xf32>
      %c0_278 = arith.constant 0 : index
      %c0_279 = arith.constant 0 : index
      %661 = vector.load %arg20[%c0_278, %c0_279] : memref<2x16xf32, #tpu.memory_space<vmem>>, vector<2x16xf32>
      tpu.vector_store %arg20[%c0_278, %c0_279], %660 {strides = array<i32>} : memref<2x16xf32, #tpu.memory_space<vmem>>, vector<2x16xf32>,
      %cst_280 = arith.constant 0.000000e+00 : f32
      %662 = vector.broadcast %cst_280 : f32 to vector<2x2x16xf32>
      %c0_281 = arith.constant 0 : index
      %c0_282 = arith.constant 0 : index
      %c0_283 = arith.constant 0 : index
      %663 = vector.load %arg21[%c0_281, %c0_282, %c0_283] : memref<2x2x16xf32, #tpu.memory_space<vmem>>, vector<2x2x16xf32>
      tpu.vector_store %arg21[%c0_281, %c0_282, %c0_283], %662 {strides = array<i32>} : memref<2x2x16xf32, #tpu.memory_space<vmem>>, vector<2x2x16xf32>,
    } else {
    }
    %c0 = arith.constant 0 : index
    %c0_1 = arith.constant 0 : index
    %c0_2 = arith.constant 0 : index
    %3 = vector.load %arg2[%c0, %c0_1, %c0_2] : memref<4x2x16xf32, #tpu.memory_space<vmem>>, vector<4x2x16xf32>
    %4 = vector.shape_cast %3 : vector<4x2x16xf32> to vector<8x16xf32>
    %c0_3 = arith.constant 0 : index
    %c0_4 = arith.constant 0 : index
    %5 = vector.load %arg17[%c0_3, %c0_4] : memref<16x16xf32, #tpu.memory_space<vmem>>, vector<16x16xf32>
    %cst = arith.constant dense<0.000000e+00> : vector<8x16xf32>
    %6 = tpu.matmul %4, %5, %cst {dimension_numbers = #tpu.dot_dimension_numbers<[1], [0], [0], [1], [0, 0, 1, 1], [], []>} : vector<8x16xf32>, vector<16x16xf32>, vector<8x16xf32> -> vector<8x16xf32>
    %c0_5 = arith.constant 0 : index
    %c0_6 = arith.constant 0 : index
    %7 = vector.load %arg22[%c0_5, %c0_6] : memref<8x16xf32, #tpu.memory_space<vmem>>, vector<8x16xf32>
    tpu.vector_store %arg22[%c0_5, %c0_6], %6 {strides = array<i32>} : memref<8x16xf32, #tpu.memory_space<vmem>>, vector<8x16xf32>,
    %c0_7 = arith.constant 0 : index
    %c0_8 = arith.constant 0 : index
    %8 = vector.load %arg4[%c0_7, %c0_8] : memref<16x48xf32, #tpu.memory_space<vmem>>, vector<16x48xf32>
    %cst_9 = arith.constant dense<0.000000e+00> : vector<8x48xf32>
    %9 = tpu.matmul %4, %8, %cst_9 {dimension_numbers = #tpu.dot_dimension_numbers<[1], [0], [0], [1], [0, 0, 1, 1], [], []>} : vector<8x16xf32>, vector<16x48xf32>, vector<8x48xf32> -> vector<8x48xf32>
    %c0_10 = arith.constant 0 : index
    %c0_11 = arith.constant 0 : index
    %10 = vector.load %arg7[%c0_10, %c0_11] : memref<1x48xf32, #tpu.memory_space<vmem>>, vector<1x48xf32>
    %11 = vector.broadcast %10 : vector<1x48xf32> to vector<8x48xf32>
    %12 = arith.addf %9, %11 : vector<8x48xf32>
    %c0_12 = arith.constant 0 : index
    %c0_13 = arith.constant 0 : index
    %13 = vector.load %arg23[%c0_12, %c0_13] : memref<8x48xf32, #tpu.memory_space<vmem>>, vector<8x48xf32>
    tpu.vector_store %arg23[%c0_12, %c0_13], %12 {strides = array<i32>} : memref<8x48xf32, #tpu.memory_space<vmem>>, vector<8x48xf32>,
    %c0_14 = arith.constant 0 : index
    %c0_15 = arith.constant 0 : index
    %14 = vector.load %arg9[%c0_14, %c0_15] : memref<16x48xf32, #tpu.memory_space<vmem>>, vector<16x48xf32>
    %cst_16 = arith.constant dense<0.000000e+00> : vector<8x48xf32>
    %15 = tpu.matmul %4, %14, %cst_16 {dimension_numbers = #tpu.dot_dimension_numbers<[1], [0], [0], [1], [0, 0, 1, 1], [], []>} : vector<8x16xf32>, vector<16x48xf32>, vector<8x48xf32> -> vector<8x48xf32>
    %c0_17 = arith.constant 0 : index
    %c0_18 = arith.constant 0 : index
    %16 = vector.load %arg12[%c0_17, %c0_18] : memref<1x48xf32, #tpu.memory_space<vmem>>, vector<1x48xf32>
    %17 = vector.broadcast %16 : vector<1x48xf32> to vector<8x48xf32>
    %18 = arith.addf %15, %17 : vector<8x48xf32>
    %c0_19 = arith.constant 0 : index
    %c0_20 = arith.constant 0 : index
    %19 = vector.load %arg24[%c0_19, %c0_20] : memref<8x48xf32, #tpu.memory_space<vmem>>, vector<8x48xf32>
    tpu.vector_store %arg24[%c0_19, %c0_20], %18 {strides = array<i32>} : memref<8x48xf32, #tpu.memory_space<vmem>>, vector<8x48xf32>,
    %20 = tpu.iota {dimensions = array<i32: 1>} : vector<2x2xi32>
    %21 = tpu.iota {dimensions = array<i32: 1>} : vector<2x8xi32>
    %c0_i32_21 = arith.constant 0 : i32
    %c4_i32 = arith.constant 4 : i32
    %22 = arith.muli %arg1, %c4_i32 : i32
    %23 = arith.addi %22, %c0_i32_21 : i32
    %c2_i32 = arith.constant 2 : i32
    %24 = arith.muli %c0_i32_21, %c2_i32 : i32
    %25 = tpu.assume_multiple %24, 2 : i32
    %26 = arith.index_cast %c0_i32_21 : i32 to index
    %c0_22 = arith.constant 0 : index
    %c0_23 = arith.constant 0 : index
    %27 = vector.load %arg3[%26, %c0_22, %c0_23] : memref<4x2x2xf32, #tpu.memory_space<vmem>>, vector<1x2x2xf32>
    %28 = vector.shape_cast %27 : vector<1x2x2xf32> to vector<2x2xf32>
    %c0_24 = arith.constant 0 : index
    %c0_25 = arith.constant 0 : index
    %c0_26 = arith.constant 0 : index
    %29 = vector.load %arg21[%c0_24, %c0_25, %c0_26] : memref<2x2x16xf32, #tpu.memory_space<vmem>>, vector<2x2x16xf32>
    %c0_27 = arith.constant 0 : index
    %c0_28 = arith.constant 0 : index
    %30 = vector.load %arg20[%c0_27, %c0_28] : memref<2x16xf32, #tpu.memory_space<vmem>>, vector<2x16xf32>
    %cst_29 = arith.constant dense<0xFF800000> : vector<2xf32>
    %31 = vector.multi_reduction <maximumf>, %28, %cst_29 [1] : vector<2x2xf32> to vector<2xf32>
    %32 = vector.shape_cast %31 : vector<2xf32> to vector<2x1xf32>
    %33 = vector.broadcast %32 : vector<2x1xf32> to vector<2x2xf32>
    %34 = arith.cmpf oeq, %28, %33 : vector<2x2xf32>
    %c2_i32_30 = arith.constant 2 : i32
    %35 = vector.broadcast %c2_i32_30 : i32 to vector<2x2xi32>
    %36 = arith.select %34, %20, %35 : vector<2x2xi1>, vector<2x2xi32>
    %cst_31 = arith.constant dense<2147483647> : vector<2xi32>
    %37 = vector.multi_reduction <minsi>, %36, %cst_31 [1] : vector<2x2xi32> to vector<2xi32>
    %38 = vector.shape_cast %37 : vector<2xi32> to vector<2x1xi32>
    %39 = vector.broadcast %38 : vector<2x1xi32> to vector<2x2xi32>
    %40 = arith.cmpi eq, %20, %39 : vector<2x2xi32>
    %41 = arith.extui %40 : vector<2x2xi1> to vector<2x2xi32>
    %42 = arith.sitofp %41 : vector<2x2xi32> to vector<2x2xf32>
    %43 = vector.shape_cast %42 : vector<2x2xf32> to vector<2x2x1xf32>
    %44 = vector.broadcast %43 : vector<2x2x1xf32> to vector<2x2x16xf32>
    %45 = arith.mulf %44, %29 : vector<2x2x16xf32>
    %cst_32 = arith.constant dense<0.000000e+00> : vector<2x16xf32>
    %46 = vector.multi_reduction <add>, %45, %cst_32 [1] : vector<2x2x16xf32> to vector<2x16xf32>
    %47 = arith.index_cast %25 : i32 to index
    %c0_33 = arith.constant 0 : index
    %48 = vector.load %arg23[%47, %c0_33] : memref<8x48xf32, #tpu.memory_space<vmem>>, vector<2x48xf32>
    %c0_34 = arith.constant 0 : index
    %c0_35 = arith.constant 0 : index
    %49 = vector.load %arg5[%c0_34, %c0_35] : memref<16x48xf32, #tpu.memory_space<vmem>>, vector<16x48xf32>
    %cst_36 = arith.constant dense<0.000000e+00> : vector<2x48xf32>
    %50 = tpu.matmul %46, %49, %cst_36 {dimension_numbers = #tpu.dot_dimension_numbers<[1], [0], [0], [1], [0, 0, 1, 1], [], []>} : vector<2x16xf32>, vector<16x48xf32>, vector<2x48xf32> -> vector<2x48xf32>
    %51 = arith.addf %48, %50 : vector<2x48xf32>
    %c0_37 = arith.constant 0 : index
    %c0_38 = arith.constant 0 : index
    %52 = vector.load %arg6[%c0_37, %c0_38] : memref<16x48xf32, #tpu.memory_space<vmem>>, vector<16x48xf32>
    %cst_39 = arith.constant dense<0.000000e+00> : vector<2x48xf32>
    %53 = tpu.matmul %30, %52, %cst_39 {dimension_numbers = #tpu.dot_dimension_numbers<[1], [0], [0], [1], [0, 0, 1, 1], [], []>} : vector<2x16xf32>, vector<16x48xf32>, vector<2x48xf32> -> vector<2x48xf32>
    %c0_40 = arith.constant 0 : index
    %c0_41 = arith.constant 0 : index
    %54 = vector.load %arg8[%c0_40, %c0_41] : memref<1x48xf32, #tpu.memory_space<vmem>>, vector<1x48xf32>
    %55 = vector.broadcast %54 : vector<1x48xf32> to vector<2x48xf32>
    %56 = arith.addf %53, %55 : vector<2x48xf32>
    %57 = vector.extract_strided_slice %51 {offsets = [0, 0], sizes = [2, 16], strides = [1, 1]} : vector<2x48xf32> to vector<2x16xf32>
    %58 = vector.extract_strided_slice %56 {offsets = [0, 0], sizes = [2, 16], strides = [1, 1]} : vector<2x48xf32> to vector<2x16xf32>
    %59 = arith.addf %57, %58 : vector<2x16xf32>
    %60 = arith.negf %59 : vector<2x16xf32>
    %61 = math.exp %60 : vector<2x16xf32>
    %cst_42 = arith.constant 1.000000e+00 : f32
    %62 = vector.broadcast %cst_42 : f32 to vector<2x16xf32>
    %63 = arith.addf %62, %61 : vector<2x16xf32>
    %64 = arith.divf %62, %63 : vector<2x16xf32>
    %65 = vector.extract_strided_slice %51 {offsets = [0, 16], sizes = [2, 16], strides = [1, 1]} : vector<2x48xf32> to vector<2x16xf32>
    %66 = vector.extract_strided_slice %56 {offsets = [0, 16], sizes = [2, 16], strides = [1, 1]} : vector<2x48xf32> to vector<2x16xf32>
    %67 = arith.addf %65, %66 : vector<2x16xf32>
    %68 = arith.negf %67 : vector<2x16xf32>
    %69 = math.exp %68 : vector<2x16xf32>
    %cst_43 = arith.constant 1.000000e+00 : f32
    %70 = vector.broadcast %cst_43 : f32 to vector<2x16xf32>
    %71 = arith.addf %70, %69 : vector<2x16xf32>
    %72 = arith.divf %70, %71 : vector<2x16xf32>
    %73 = vector.extract_strided_slice %51 {offsets = [0, 32], sizes = [2, 16], strides = [1, 1]} : vector<2x48xf32> to vector<2x16xf32>
    %74 = vector.extract_strided_slice %56 {offsets = [0, 32], sizes = [2, 16], strides = [1, 1]} : vector<2x48xf32> to vector<2x16xf32>
    %75 = arith.mulf %64, %74 : vector<2x16xf32>
    %76 = arith.addf %73, %75 : vector<2x16xf32>
    %77 = math.tanh %76 : vector<2x16xf32>
    %cst_44 = arith.constant 1.000000e+00 : f32
    %78 = vector.broadcast %cst_44 : f32 to vector<2x16xf32>
    %79 = arith.subf %78, %72 : vector<2x16xf32>
    %80 = arith.mulf %79, %77 : vector<2x16xf32>
    %81 = arith.mulf %72, %30 : vector<2x16xf32>
    %82 = arith.addf %80, %81 : vector<2x16xf32>
    %83 = arith.index_cast %25 : i32 to index
    %c0_45 = arith.constant 0 : index
    %84 = vector.load %arg22[%83, %c0_45] : memref<8x16xf32, #tpu.memory_space<vmem>>, vector<2x16xf32>
    %c0_46 = arith.constant 0 : index
    %c0_47 = arith.constant 0 : index
    %c0_48 = arith.constant 0 : index
    %85 = vector.load %arg19[%c0_46, %c0_47, %c0_48] : memref<2x8x16xf32, #tpu.memory_space<vmem>>, vector<2x8x16xf32>
    %86 = vector.shape_cast %84 : vector<2x16xf32> to vector<2x1x16xf32>
    "tpu.trace_start"() <{level = 10 : i32, message = "bqg,btg->bqt"}> : () -> ()
    %cst_49 = arith.constant dense<0.000000e+00> : vector<2x1x8xf32>
    %87 = tpu.matmul %86, %85, %cst_49 {dimension_numbers = #tpu.dot_dimension_numbers<[2], [2], [1], [1], [0, 0, 0, 1, 1, 1], [0], [0]>} : vector<2x1x16xf32>, vector<2x8x16xf32>, vector<2x1x8xf32> -> vector<2x1x8xf32>
    "tpu.trace_stop"() : () -> ()
    %88 = vector.shape_cast %87 : vector<2x1x8xf32> to vector<2x8xf32>
    %89 = vector.broadcast %23 : i32 to vector<2x8xi32>
    %90 = arith.cmpi slt, %21, %89 : vector<2x8xi32>
    %cst_50 = arith.constant -1.000000e+30 : f32
    %91 = vector.broadcast %cst_50 : f32 to vector<2x8xf32>
    %92 = arith.select %90, %88, %91 : vector<2x8xi1>, vector<2x8xf32>
    %cst_51 = arith.constant dense<0xFF800000> : vector<2xf32>
    %93 = vector.multi_reduction <maximumf>, %92, %cst_51 [1] : vector<2x8xf32> to vector<2xf32>
    %94 = vector.shape_cast %93 : vector<2xf32> to vector<2x1xf32>
    %95 = vector.broadcast %94 : vector<2x1xf32> to vector<2x8xf32>
    %96 = arith.subf %92, %95 : vector<2x8xf32>
    %97 = math.exp %96 : vector<2x8xf32>
    %cst_52 = arith.constant 0.000000e+00 : f32
    %98 = vector.broadcast %cst_52 : f32 to vector<2x8xf32>
    %99 = arith.select %90, %97, %98 : vector<2x8xi1>, vector<2x8xf32>
    %cst_53 = arith.constant dense<0.000000e+00> : vector<2xf32>
    %100 = vector.multi_reduction <add>, %99, %cst_53 [1] : vector<2x8xf32> to vector<2xf32>
    %101 = vector.shape_cast %100 : vector<2xf32> to vector<2x1xf32>
    %cst_54 = arith.constant 0.000000e+00 : f32
    %102 = vector.broadcast %cst_54 : f32 to vector<2x1xf32>
    %103 = arith.cmpf ogt, %101, %102 : vector<2x1xf32>
    %cst_55 = arith.constant 1.000000e+00 : f32
    %104 = vector.broadcast %cst_55 : f32 to vector<2x1xf32>
    %105 = arith.select %103, %101, %104 : vector<2x1xi1>, vector<2x1xf32>
    %106 = vector.broadcast %105 : vector<2x1xf32> to vector<2x8xf32>
    %107 = arith.divf %99, %106 : vector<2x8xf32>
    %108 = vector.shape_cast %107 : vector<2x8xf32> to vector<2x1x8xf32>
    "tpu.trace_start"() <{level = 10 : i32, message = "bqt,btg->bqg"}> : () -> ()
    %cst_56 = arith.constant dense<0.000000e+00> : vector<2x1x16xf32>
    %109 = tpu.matmul %108, %85, %cst_56 {dimension_numbers = #tpu.dot_dimension_numbers<[2], [1], [1], [2], [0, 0, 0, 1, 1, 2], [0], [0]>} : vector<2x1x8xf32>, vector<2x8x16xf32>, vector<2x1x16xf32> -> vector<2x1x16xf32>
    "tpu.trace_stop"() : () -> ()
    %110 = vector.shape_cast %109 : vector<2x1x16xf32> to vector<2x16xf32>
    %111 = arith.index_cast %25 : i32 to index
    %c0_57 = arith.constant 0 : index
    %112 = vector.load %arg24[%111, %c0_57] : memref<8x48xf32, #tpu.memory_space<vmem>>, vector<2x48xf32>
    %c0_58 = arith.constant 0 : index
    %c0_59 = arith.constant 0 : index
    %113 = vector.load %arg10[%c0_58, %c0_59] : memref<16x48xf32, #tpu.memory_space<vmem>>, vector<16x48xf32>
    %cst_60 = arith.constant dense<0.000000e+00> : vector<2x48xf32>
    %114 = tpu.matmul %110, %113, %cst_60 {dimension_numbers = #tpu.dot_dimension_numbers<[1], [0], [0], [1], [0, 0, 1, 1], [], []>} : vector<2x16xf32>, vector<16x48xf32>, vector<2x48xf32> -> vector<2x48xf32>
    %115 = arith.addf %112, %114 : vector<2x48xf32>
    %116 = vector.shape_cast %29 : vector<2x2x16xf32> to vector<4x16xf32>
    %c0_61 = arith.constant 0 : index
    %c0_62 = arith.constant 0 : index
    %117 = vector.load %arg11[%c0_61, %c0_62] : memref<16x48xf32, #tpu.memory_space<vmem>>, vector<16x48xf32>
    %cst_63 = arith.constant dense<0.000000e+00> : vector<4x48xf32>
    %118 = tpu.matmul %116, %117, %cst_63 {dimension_numbers = #tpu.dot_dimension_numbers<[1], [0], [0], [1], [0, 0, 1, 1], [], []>} : vector<4x16xf32>, vector<16x48xf32>, vector<4x48xf32> -> vector<4x48xf32>
    %c0_64 = arith.constant 0 : index
    %c0_65 = arith.constant 0 : index
    %119 = vector.load %arg13[%c0_64, %c0_65] : memref<1x48xf32, #tpu.memory_space<vmem>>, vector<1x48xf32>
    %120 = vector.broadcast %119 : vector<1x48xf32> to vector<4x48xf32>
    %121 = arith.addf %118, %120 : vector<4x48xf32>
    %122 = vector.shape_cast %115 : vector<2x48xf32> to vector<2x1x48xf32>
    %123 = vector.shape_cast %122 : vector<2x1x48xf32> to vector<2x1x48xf32>
    %124 = vector.broadcast %123 : vector<2x1x48xf32> to vector<2x2x48xf32>
    %125 = vector.shape_cast %124 : vector<2x2x48xf32> to vector<4x48xf32>
    %126 = vector.extract_strided_slice %125 {offsets = [0, 0], sizes = [4, 16], strides = [1, 1]} : vector<4x48xf32> to vector<4x16xf32>
    %127 = vector.extract_strided_slice %121 {offsets = [0, 0], sizes = [4, 16], strides = [1, 1]} : vector<4x48xf32> to vector<4x16xf32>
    %128 = arith.addf %126, %127 : vector<4x16xf32>
    %129 = arith.negf %128 : vector<4x16xf32>
    %130 = math.exp %129 : vector<4x16xf32>
    %cst_66 = arith.constant 1.000000e+00 : f32
    %131 = vector.broadcast %cst_66 : f32 to vector<4x16xf32>
    %132 = arith.addf %131, %130 : vector<4x16xf32>
    %133 = arith.divf %131, %132 : vector<4x16xf32>
    %134 = vector.extract_strided_slice %125 {offsets = [0, 16], sizes = [4, 16], strides = [1, 1]} : vector<4x48xf32> to vector<4x16xf32>
    %135 = vector.extract_strided_slice %121 {offsets = [0, 16], sizes = [4, 16], strides = [1, 1]} : vector<4x48xf32> to vector<4x16xf32>
    %136 = arith.addf %134, %135 : vector<4x16xf32>
    %137 = arith.negf %136 : vector<4x16xf32>
    %138 = math.exp %137 : vector<4x16xf32>
    %cst_67 = arith.constant 1.000000e+00 : f32
    %139 = vector.broadcast %cst_67 : f32 to vector<4x16xf32>
    %140 = arith.addf %139, %138 : vector<4x16xf32>
    %141 = arith.divf %139, %140 : vector<4x16xf32>
    %142 = vector.extract_strided_slice %125 {offsets = [0, 32], sizes = [4, 16], strides = [1, 1]} : vector<4x48xf32> to vector<4x16xf32>
    %143 = vector.extract_strided_slice %121 {offsets = [0, 32], sizes = [4, 16], strides = [1, 1]} : vector<4x48xf32> to vector<4x16xf32>
    %144 = arith.mulf %133, %143 : vector<4x16xf32>
    %145 = arith.addf %142, %144 : vector<4x16xf32>
    %146 = math.tanh %145 : vector<4x16xf32>
    %cst_68 = arith.constant 1.000000e+00 : f32
    %147 = vector.broadcast %cst_68 : f32 to vector<4x16xf32>
    %148 = arith.subf %147, %141 : vector<4x16xf32>
    %149 = arith.mulf %148, %146 : vector<4x16xf32>
    %150 = arith.mulf %141, %116 : vector<4x16xf32>
    %151 = arith.addf %149, %150 : vector<4x16xf32>
    %152 = vector.shape_cast %151 : vector<4x16xf32> to vector<2x2x16xf32>
    %153 = vector.shape_cast %28 : vector<2x2xf32> to vector<2x2x1xf32>
    %cst_69 = arith.constant 1.000000e+00 : f32
    %154 = vector.broadcast %cst_69 : f32 to vector<2x2x1xf32>
    %155 = arith.subf %154, %153 : vector<2x2x1xf32>
    %156 = vector.broadcast %155 : vector<2x2x1xf32> to vector<2x2x16xf32>
    %157 = arith.mulf %29, %156 : vector<2x2x16xf32>
    %158 = vector.broadcast %153 : vector<2x2x1xf32> to vector<2x2x16xf32>
    %159 = arith.mulf %152, %158 : vector<2x2x16xf32>
    %160 = arith.addf %157, %159 : vector<2x2x16xf32>
    %161 = vector.shape_cast %42 : vector<2x2xf32> to vector<2x2x1xf32>
    %162 = vector.broadcast %161 : vector<2x2x1xf32> to vector<2x2x16xf32>
    %163 = arith.mulf %162, %160 : vector<2x2x16xf32>
    %cst_70 = arith.constant dense<0.000000e+00> : vector<2x16xf32>
    %164 = vector.multi_reduction <add>, %163, %cst_70 [1] : vector<2x2x16xf32> to vector<2x16xf32>
    %165 = arith.index_cast %25 : i32 to index
    %c0_71 = arith.constant 0 : index
    %166 = vector.load %arg25[%165, %c0_71] : memref<8x16xf32, #tpu.memory_space<vmem>>, vector<2x16xf32>
    tpu.vector_store %arg25[%165, %c0_71], %164 {strides = array<i32>} : memref<8x16xf32, #tpu.memory_space<vmem>>, vector<2x16xf32>,
    %c0_72 = arith.constant 0 : index
    %c0_73 = arith.constant 0 : index
    %c0_74 = arith.constant 0 : index
    %167 = vector.load %arg21[%c0_72, %c0_73, %c0_74] : memref<2x2x16xf32, #tpu.memory_space<vmem>>, vector<2x2x16xf32>
    tpu.vector_store %arg21[%c0_72, %c0_73, %c0_74], %160 {strides = array<i32>} : memref<2x2x16xf32, #tpu.memory_space<vmem>>, vector<2x2x16xf32>,
    %c0_75 = arith.constant 0 : index
    %c0_76 = arith.constant 0 : index
    %168 = vector.load %arg20[%c0_75, %c0_76] : memref<2x16xf32, #tpu.memory_space<vmem>>, vector<2x16xf32>
    tpu.vector_store %arg20[%c0_75, %c0_76], %82 {strides = array<i32>} : memref<2x16xf32, #tpu.memory_space<vmem>>, vector<2x16xf32>,
    %169 = vector.shape_cast %82 : vector<2x16xf32> to vector<2x1x16xf32>
    %c0_77 = arith.constant 0 : index
    %170 = arith.index_cast %23 : i32 to index
    %c0_78 = arith.constant 0 : index
    %171 = vector.load %arg19[%c0_77, %170, %c0_78] : memref<2x8x16xf32, #tpu.memory_space<vmem>>, vector<2x1x16xf32>
    tpu.vector_store %arg19[%c0_77, %170, %c0_78], %169 {strides = array<i32>} : memref<2x8x16xf32, #tpu.memory_space<vmem>>, vector<2x1x16xf32>,
    %c1_i32 = arith.constant 1 : i32
    %c4_i32_79 = arith.constant 4 : i32
    %172 = arith.muli %arg1, %c4_i32_79 : i32
    %173 = arith.addi %172, %c1_i32 : i32
    %c2_i32_80 = arith.constant 2 : i32
    %174 = arith.muli %c1_i32, %c2_i32_80 : i32
    %175 = tpu.assume_multiple %174, 2 : i32
    %176 = arith.index_cast %c1_i32 : i32 to index
    %c0_81 = arith.constant 0 : index
    %c0_82 = arith.constant 0 : index
    %177 = vector.load %arg3[%176, %c0_81, %c0_82] : memref<4x2x2xf32, #tpu.memory_space<vmem>>, vector<1x2x2xf32>
    %178 = vector.shape_cast %177 : vector<1x2x2xf32> to vector<2x2xf32>
    %c0_83 = arith.constant 0 : index
    %c0_84 = arith.constant 0 : index
    %c0_85 = arith.constant 0 : index
    %179 = vector.load %arg21[%c0_83, %c0_84, %c0_85] : memref<2x2x16xf32, #tpu.memory_space<vmem>>, vector<2x2x16xf32>
    %c0_86 = arith.constant 0 : index
    %c0_87 = arith.constant 0 : index
    %180 = vector.load %arg20[%c0_86, %c0_87] : memref<2x16xf32, #tpu.memory_space<vmem>>, vector<2x16xf32>
    %cst_88 = arith.constant dense<0xFF800000> : vector<2xf32>
    %181 = vector.multi_reduction <maximumf>, %178, %cst_88 [1] : vector<2x2xf32> to vector<2xf32>
    %182 = vector.shape_cast %181 : vector<2xf32> to vector<2x1xf32>
    %183 = vector.broadcast %182 : vector<2x1xf32> to vector<2x2xf32>
    %184 = arith.cmpf oeq, %178, %183 : vector<2x2xf32>
    %c2_i32_89 = arith.constant 2 : i32
    %185 = vector.broadcast %c2_i32_89 : i32 to vector<2x2xi32>
    %186 = arith.select %184, %20, %185 : vector<2x2xi1>, vector<2x2xi32>
    %cst_90 = arith.constant dense<2147483647> : vector<2xi32>
    %187 = vector.multi_reduction <minsi>, %186, %cst_90 [1] : vector<2x2xi32> to vector<2xi32>
    %188 = vector.shape_cast %187 : vector<2xi32> to vector<2x1xi32>
    %189 = vector.broadcast %188 : vector<2x1xi32> to vector<2x2xi32>
    %190 = arith.cmpi eq, %20, %189 : vector<2x2xi32>
    %191 = arith.extui %190 : vector<2x2xi1> to vector<2x2xi32>
    %192 = arith.sitofp %191 : vector<2x2xi32> to vector<2x2xf32>
    %193 = vector.shape_cast %192 : vector<2x2xf32> to vector<2x2x1xf32>
    %194 = vector.broadcast %193 : vector<2x2x1xf32> to vector<2x2x16xf32>
    %195 = arith.mulf %194, %179 : vector<2x2x16xf32>
    %cst_91 = arith.constant dense<0.000000e+00> : vector<2x16xf32>
    %196 = vector.multi_reduction <add>, %195, %cst_91 [1] : vector<2x2x16xf32> to vector<2x16xf32>
    %197 = arith.index_cast %175 : i32 to index
    %c0_92 = arith.constant 0 : index
    %198 = vector.load %arg23[%197, %c0_92] : memref<8x48xf32, #tpu.memory_space<vmem>>, vector<2x48xf32>
    %c0_93 = arith.constant 0 : index
    %c0_94 = arith.constant 0 : index
    %199 = vector.load %arg5[%c0_93, %c0_94] : memref<16x48xf32, #tpu.memory_space<vmem>>, vector<16x48xf32>
    %cst_95 = arith.constant dense<0.000000e+00> : vector<2x48xf32>
    %200 = tpu.matmul %196, %199, %cst_95 {dimension_numbers = #tpu.dot_dimension_numbers<[1], [0], [0], [1], [0, 0, 1, 1], [], []>} : vector<2x16xf32>, vector<16x48xf32>, vector<2x48xf32> -> vector<2x48xf32>
    %201 = arith.addf %198, %200 : vector<2x48xf32>
    %c0_96 = arith.constant 0 : index
    %c0_97 = arith.constant 0 : index
    %202 = vector.load %arg6[%c0_96, %c0_97] : memref<16x48xf32, #tpu.memory_space<vmem>>, vector<16x48xf32>
    %cst_98 = arith.constant dense<0.000000e+00> : vector<2x48xf32>
    %203 = tpu.matmul %180, %202, %cst_98 {dimension_numbers = #tpu.dot_dimension_numbers<[1], [0], [0], [1], [0, 0, 1, 1], [], []>} : vector<2x16xf32>, vector<16x48xf32>, vector<2x48xf32> -> vector<2x48xf32>
    %c0_99 = arith.constant 0 : index
    %c0_100 = arith.constant 0 : index
    %204 = vector.load %arg8[%c0_99, %c0_100] : memref<1x48xf32, #tpu.memory_space<vmem>>, vector<1x48xf32>
    %205 = vector.broadcast %204 : vector<1x48xf32> to vector<2x48xf32>
    %206 = arith.addf %203, %205 : vector<2x48xf32>
    %207 = vector.extract_strided_slice %201 {offsets = [0, 0], sizes = [2, 16], strides = [1, 1]} : vector<2x48xf32> to vector<2x16xf32>
    %208 = vector.extract_strided_slice %206 {offsets = [0, 0], sizes = [2, 16], strides = [1, 1]} : vector<2x48xf32> to vector<2x16xf32>
    %209 = arith.addf %207, %208 : vector<2x16xf32>
    %210 = arith.negf %209 : vector<2x16xf32>
    %211 = math.exp %210 : vector<2x16xf32>
    %cst_101 = arith.constant 1.000000e+00 : f32
    %212 = vector.broadcast %cst_101 : f32 to vector<2x16xf32>
    %213 = arith.addf %212, %211 : vector<2x16xf32>
    %214 = arith.divf %212, %213 : vector<2x16xf32>
    %215 = vector.extract_strided_slice %201 {offsets = [0, 16], sizes = [2, 16], strides = [1, 1]} : vector<2x48xf32> to vector<2x16xf32>
    %216 = vector.extract_strided_slice %206 {offsets = [0, 16], sizes = [2, 16], strides = [1, 1]} : vector<2x48xf32> to vector<2x16xf32>
    %217 = arith.addf %215, %216 : vector<2x16xf32>
    %218 = arith.negf %217 : vector<2x16xf32>
    %219 = math.exp %218 : vector<2x16xf32>
    %cst_102 = arith.constant 1.000000e+00 : f32
    %220 = vector.broadcast %cst_102 : f32 to vector<2x16xf32>
    %221 = arith.addf %220, %219 : vector<2x16xf32>
    %222 = arith.divf %220, %221 : vector<2x16xf32>
    %223 = vector.extract_strided_slice %201 {offsets = [0, 32], sizes = [2, 16], strides = [1, 1]} : vector<2x48xf32> to vector<2x16xf32>
    %224 = vector.extract_strided_slice %206 {offsets = [0, 32], sizes = [2, 16], strides = [1, 1]} : vector<2x48xf32> to vector<2x16xf32>
    %225 = arith.mulf %214, %224 : vector<2x16xf32>
    %226 = arith.addf %223, %225 : vector<2x16xf32>
    %227 = math.tanh %226 : vector<2x16xf32>
    %cst_103 = arith.constant 1.000000e+00 : f32
    %228 = vector.broadcast %cst_103 : f32 to vector<2x16xf32>
    %229 = arith.subf %228, %222 : vector<2x16xf32>
    %230 = arith.mulf %229, %227 : vector<2x16xf32>
    %231 = arith.mulf %222, %180 : vector<2x16xf32>
    %232 = arith.addf %230, %231 : vector<2x16xf32>
    %233 = arith.index_cast %175 : i32 to index
    %c0_104 = arith.constant 0 : index
    %234 = vector.load %arg22[%233, %c0_104] : memref<8x16xf32, #tpu.memory_space<vmem>>, vector<2x16xf32>
    %c0_105 = arith.constant 0 : index
    %c0_106 = arith.constant 0 : index
    %c0_107 = arith.constant 0 : index
    %235 = vector.load %arg19[%c0_105, %c0_106, %c0_107] : memref<2x8x16xf32, #tpu.memory_space<vmem>>, vector<2x8x16xf32>
    %236 = vector.shape_cast %234 : vector<2x16xf32> to vector<2x1x16xf32>
    "tpu.trace_start"() <{level = 10 : i32, message = "bqg,btg->bqt"}> : () -> ()
    %cst_108 = arith.constant dense<0.000000e+00> : vector<2x1x8xf32>
    %237 = tpu.matmul %236, %235, %cst_108 {dimension_numbers = #tpu.dot_dimension_numbers<[2], [2], [1], [1], [0, 0, 0, 1, 1, 1], [0], [0]>} : vector<2x1x16xf32>, vector<2x8x16xf32>, vector<2x1x8xf32> -> vector<2x1x8xf32>
    "tpu.trace_stop"() : () -> ()
    %238 = vector.shape_cast %237 : vector<2x1x8xf32> to vector<2x8xf32>
    %239 = vector.broadcast %173 : i32 to vector<2x8xi32>
    %240 = arith.cmpi slt, %21, %239 : vector<2x8xi32>
    %cst_109 = arith.constant -1.000000e+30 : f32
    %241 = vector.broadcast %cst_109 : f32 to vector<2x8xf32>
    %242 = arith.select %240, %238, %241 : vector<2x8xi1>, vector<2x8xf32>
    %cst_110 = arith.constant dense<0xFF800000> : vector<2xf32>
    %243 = vector.multi_reduction <maximumf>, %242, %cst_110 [1] : vector<2x8xf32> to vector<2xf32>
    %244 = vector.shape_cast %243 : vector<2xf32> to vector<2x1xf32>
    %245 = vector.broadcast %244 : vector<2x1xf32> to vector<2x8xf32>
    %246 = arith.subf %242, %245 : vector<2x8xf32>
    %247 = math.exp %246 : vector<2x8xf32>
    %cst_111 = arith.constant 0.000000e+00 : f32
    %248 = vector.broadcast %cst_111 : f32 to vector<2x8xf32>
    %249 = arith.select %240, %247, %248 : vector<2x8xi1>, vector<2x8xf32>
    %cst_112 = arith.constant dense<0.000000e+00> : vector<2xf32>
    %250 = vector.multi_reduction <add>, %249, %cst_112 [1] : vector<2x8xf32> to vector<2xf32>
    %251 = vector.shape_cast %250 : vector<2xf32> to vector<2x1xf32>
    %cst_113 = arith.constant 0.000000e+00 : f32
    %252 = vector.broadcast %cst_113 : f32 to vector<2x1xf32>
    %253 = arith.cmpf ogt, %251, %252 : vector<2x1xf32>
    %cst_114 = arith.constant 1.000000e+00 : f32
    %254 = vector.broadcast %cst_114 : f32 to vector<2x1xf32>
    %255 = arith.select %253, %251, %254 : vector<2x1xi1>, vector<2x1xf32>
    %256 = vector.broadcast %255 : vector<2x1xf32> to vector<2x8xf32>
    %257 = arith.divf %249, %256 : vector<2x8xf32>
    %258 = vector.shape_cast %257 : vector<2x8xf32> to vector<2x1x8xf32>
    "tpu.trace_start"() <{level = 10 : i32, message = "bqt,btg->bqg"}> : () -> ()
    %cst_115 = arith.constant dense<0.000000e+00> : vector<2x1x16xf32>
    %259 = tpu.matmul %258, %235, %cst_115 {dimension_numbers = #tpu.dot_dimension_numbers<[2], [1], [1], [2], [0, 0, 0, 1, 1, 2], [0], [0]>} : vector<2x1x8xf32>, vector<2x8x16xf32>, vector<2x1x16xf32> -> vector<2x1x16xf32>
    "tpu.trace_stop"() : () -> ()
    %260 = vector.shape_cast %259 : vector<2x1x16xf32> to vector<2x16xf32>
    %261 = arith.index_cast %175 : i32 to index
    %c0_116 = arith.constant 0 : index
    %262 = vector.load %arg24[%261, %c0_116] : memref<8x48xf32, #tpu.memory_space<vmem>>, vector<2x48xf32>
    %c0_117 = arith.constant 0 : index
    %c0_118 = arith.constant 0 : index
    %263 = vector.load %arg10[%c0_117, %c0_118] : memref<16x48xf32, #tpu.memory_space<vmem>>, vector<16x48xf32>
    %cst_119 = arith.constant dense<0.000000e+00> : vector<2x48xf32>
    %264 = tpu.matmul %260, %263, %cst_119 {dimension_numbers = #tpu.dot_dimension_numbers<[1], [0], [0], [1], [0, 0, 1, 1], [], []>} : vector<2x16xf32>, vector<16x48xf32>, vector<2x48xf32> -> vector<2x48xf32>
    %265 = arith.addf %262, %264 : vector<2x48xf32>
    %266 = vector.shape_cast %179 : vector<2x2x16xf32> to vector<4x16xf32>
    %c0_120 = arith.constant 0 : index
    %c0_121 = arith.constant 0 : index
    %267 = vector.load %arg11[%c0_120, %c0_121] : memref<16x48xf32, #tpu.memory_space<vmem>>, vector<16x48xf32>
    %cst_122 = arith.constant dense<0.000000e+00> : vector<4x48xf32>
    %268 = tpu.matmul %266, %267, %cst_122 {dimension_numbers = #tpu.dot_dimension_numbers<[1], [0], [0], [1], [0, 0, 1, 1], [], []>} : vector<4x16xf32>, vector<16x48xf32>, vector<4x48xf32> -> vector<4x48xf32>
    %c0_123 = arith.constant 0 : index
    %c0_124 = arith.constant 0 : index
    %269 = vector.load %arg13[%c0_123, %c0_124] : memref<1x48xf32, #tpu.memory_space<vmem>>, vector<1x48xf32>
    %270 = vector.broadcast %269 : vector<1x48xf32> to vector<4x48xf32>
    %271 = arith.addf %268, %270 : vector<4x48xf32>
    %272 = vector.shape_cast %265 : vector<2x48xf32> to vector<2x1x48xf32>
    %273 = vector.shape_cast %272 : vector<2x1x48xf32> to vector<2x1x48xf32>
    %274 = vector.broadcast %273 : vector<2x1x48xf32> to vector<2x2x48xf32>
    %275 = vector.shape_cast %274 : vector<2x2x48xf32> to vector<4x48xf32>
    %276 = vector.extract_strided_slice %275 {offsets = [0, 0], sizes = [4, 16], strides = [1, 1]} : vector<4x48xf32> to vector<4x16xf32>
    %277 = vector.extract_strided_slice %271 {offsets = [0, 0], sizes = [4, 16], strides = [1, 1]} : vector<4x48xf32> to vector<4x16xf32>
    %278 = arith.addf %276, %277 : vector<4x16xf32>
    %279 = arith.negf %278 : vector<4x16xf32>
    %280 = math.exp %279 : vector<4x16xf32>
    %cst_125 = arith.constant 1.000000e+00 : f32
    %281 = vector.broadcast %cst_125 : f32 to vector<4x16xf32>
    %282 = arith.addf %281, %280 : vector<4x16xf32>
    %283 = arith.divf %281, %282 : vector<4x16xf32>
    %284 = vector.extract_strided_slice %275 {offsets = [0, 16], sizes = [4, 16], strides = [1, 1]} : vector<4x48xf32> to vector<4x16xf32>
    %285 = vector.extract_strided_slice %271 {offsets = [0, 16], sizes = [4, 16], strides = [1, 1]} : vector<4x48xf32> to vector<4x16xf32>
    %286 = arith.addf %284, %285 : vector<4x16xf32>
    %287 = arith.negf %286 : vector<4x16xf32>
    %288 = math.exp %287 : vector<4x16xf32>
    %cst_126 = arith.constant 1.000000e+00 : f32
    %289 = vector.broadcast %cst_126 : f32 to vector<4x16xf32>
    %290 = arith.addf %289, %288 : vector<4x16xf32>
    %291 = arith.divf %289, %290 : vector<4x16xf32>
    %292 = vector.extract_strided_slice %275 {offsets = [0, 32], sizes = [4, 16], strides = [1, 1]} : vector<4x48xf32> to vector<4x16xf32>
    %293 = vector.extract_strided_slice %271 {offsets = [0, 32], sizes = [4, 16], strides = [1, 1]} : vector<4x48xf32> to vector<4x16xf32>
    %294 = arith.mulf %283, %293 : vector<4x16xf32>
    %295 = arith.addf %292, %294 : vector<4x16xf32>
    %296 = math.tanh %295 : vector<4x16xf32>
    %cst_127 = arith.constant 1.000000e+00 : f32
    %297 = vector.broadcast %cst_127 : f32 to vector<4x16xf32>
    %298 = arith.subf %297, %291 : vector<4x16xf32>
    %299 = arith.mulf %298, %296 : vector<4x16xf32>
    %300 = arith.mulf %291, %266 : vector<4x16xf32>
    %301 = arith.addf %299, %300 : vector<4x16xf32>
    %302 = vector.shape_cast %301 : vector<4x16xf32> to vector<2x2x16xf32>
    %303 = vector.shape_cast %178 : vector<2x2xf32> to vector<2x2x1xf32>
    %cst_128 = arith.constant 1.000000e+00 : f32
    %304 = vector.broadcast %cst_128 : f32 to vector<2x2x1xf32>
    %305 = arith.subf %304, %303 : vector<2x2x1xf32>
    %306 = vector.broadcast %305 : vector<2x2x1xf32> to vector<2x2x16xf32>
    %307 = arith.mulf %179, %306 : vector<2x2x16xf32>
    %308 = vector.broadcast %303 : vector<2x2x1xf32> to vector<2x2x16xf32>
    %309 = arith.mulf %302, %308 : vector<2x2x16xf32>
    %310 = arith.addf %307, %309 : vector<2x2x16xf32>
    %311 = vector.shape_cast %192 : vector<2x2xf32> to vector<2x2x1xf32>
    %312 = vector.broadcast %311 : vector<2x2x1xf32> to vector<2x2x16xf32>
    %313 = arith.mulf %312, %310 : vector<2x2x16xf32>
    %cst_129 = arith.constant dense<0.000000e+00> : vector<2x16xf32>
    %314 = vector.multi_reduction <add>, %313, %cst_129 [1] : vector<2x2x16xf32> to vector<2x16xf32>
    %315 = arith.index_cast %175 : i32 to index
    %c0_130 = arith.constant 0 : index
    %316 = vector.load %arg25[%315, %c0_130] : memref<8x16xf32, #tpu.memory_space<vmem>>, vector<2x16xf32>
    tpu.vector_store %arg25[%315, %c0_130], %314 {strides = array<i32>} : memref<8x16xf32, #tpu.memory_space<vmem>>, vector<2x16xf32>,
    %c0_131 = arith.constant 0 : index
    %c0_132 = arith.constant 0 : index
    %c0_133 = arith.constant 0 : index
    %317 = vector.load %arg21[%c0_131, %c0_132, %c0_133] : memref<2x2x16xf32, #tpu.memory_space<vmem>>, vector<2x2x16xf32>
    tpu.vector_store %arg21[%c0_131, %c0_132, %c0_133], %310 {strides = array<i32>} : memref<2x2x16xf32, #tpu.memory_space<vmem>>, vector<2x2x16xf32>,
    %c0_134 = arith.constant 0 : index
    %c0_135 = arith.constant 0 : index
    %318 = vector.load %arg20[%c0_134, %c0_135] : memref<2x16xf32, #tpu.memory_space<vmem>>, vector<2x16xf32>
    tpu.vector_store %arg20[%c0_134, %c0_135], %232 {strides = array<i32>} : memref<2x16xf32, #tpu.memory_space<vmem>>, vector<2x16xf32>,
    %319 = vector.shape_cast %232 : vector<2x16xf32> to vector<2x1x16xf32>
    %c0_136 = arith.constant 0 : index
    %320 = arith.index_cast %173 : i32 to index
    %c0_137 = arith.constant 0 : index
    %321 = vector.load %arg19[%c0_136, %320, %c0_137] : memref<2x8x16xf32, #tpu.memory_space<vmem>>, vector<2x1x16xf32>
    tpu.vector_store %arg19[%c0_136, %320, %c0_137], %319 {strides = array<i32>} : memref<2x8x16xf32, #tpu.memory_space<vmem>>, vector<2x1x16xf32>,
    %c2_i32_138 = arith.constant 2 : i32
    %c4_i32_139 = arith.constant 4 : i32
    %322 = arith.muli %arg1, %c4_i32_139 : i32
    %323 = arith.addi %322, %c2_i32_138 : i32
    %c2_i32_140 = arith.constant 2 : i32
    %324 = arith.muli %c2_i32_138, %c2_i32_140 : i32
    %325 = tpu.assume_multiple %324, 2 : i32
    %326 = arith.index_cast %c2_i32_138 : i32 to index
    %c0_141 = arith.constant 0 : index
    %c0_142 = arith.constant 0 : index
    %327 = vector.load %arg3[%326, %c0_141, %c0_142] : memref<4x2x2xf32, #tpu.memory_space<vmem>>, vector<1x2x2xf32>
    %328 = vector.shape_cast %327 : vector<1x2x2xf32> to vector<2x2xf32>
    %c0_143 = arith.constant 0 : index
    %c0_144 = arith.constant 0 : index
    %c0_145 = arith.constant 0 : index
    %329 = vector.load %arg21[%c0_143, %c0_144, %c0_145] : memref<2x2x16xf32, #tpu.memory_space<vmem>>, vector<2x2x16xf32>
    %c0_146 = arith.constant 0 : index
    %c0_147 = arith.constant 0 : index
    %330 = vector.load %arg20[%c0_146, %c0_147] : memref<2x16xf32, #tpu.memory_space<vmem>>, vector<2x16xf32>
    %cst_148 = arith.constant dense<0xFF800000> : vector<2xf32>
    %331 = vector.multi_reduction <maximumf>, %328, %cst_148 [1] : vector<2x2xf32> to vector<2xf32>
    %332 = vector.shape_cast %331 : vector<2xf32> to vector<2x1xf32>
    %333 = vector.broadcast %332 : vector<2x1xf32> to vector<2x2xf32>
    %334 = arith.cmpf oeq, %328, %333 : vector<2x2xf32>
    %c2_i32_149 = arith.constant 2 : i32
    %335 = vector.broadcast %c2_i32_149 : i32 to vector<2x2xi32>
    %336 = arith.select %334, %20, %335 : vector<2x2xi1>, vector<2x2xi32>
    %cst_150 = arith.constant dense<2147483647> : vector<2xi32>
    %337 = vector.multi_reduction <minsi>, %336, %cst_150 [1] : vector<2x2xi32> to vector<2xi32>
    %338 = vector.shape_cast %337 : vector<2xi32> to vector<2x1xi32>
    %339 = vector.broadcast %338 : vector<2x1xi32> to vector<2x2xi32>
    %340 = arith.cmpi eq, %20, %339 : vector<2x2xi32>
    %341 = arith.extui %340 : vector<2x2xi1> to vector<2x2xi32>
    %342 = arith.sitofp %341 : vector<2x2xi32> to vector<2x2xf32>
    %343 = vector.shape_cast %342 : vector<2x2xf32> to vector<2x2x1xf32>
    %344 = vector.broadcast %343 : vector<2x2x1xf32> to vector<2x2x16xf32>
    %345 = arith.mulf %344, %329 : vector<2x2x16xf32>
    %cst_151 = arith.constant dense<0.000000e+00> : vector<2x16xf32>
    %346 = vector.multi_reduction <add>, %345, %cst_151 [1] : vector<2x2x16xf32> to vector<2x16xf32>
    %347 = arith.index_cast %325 : i32 to index
    %c0_152 = arith.constant 0 : index
    %348 = vector.load %arg23[%347, %c0_152] : memref<8x48xf32, #tpu.memory_space<vmem>>, vector<2x48xf32>
    %c0_153 = arith.constant 0 : index
    %c0_154 = arith.constant 0 : index
    %349 = vector.load %arg5[%c0_153, %c0_154] : memref<16x48xf32, #tpu.memory_space<vmem>>, vector<16x48xf32>
    %cst_155 = arith.constant dense<0.000000e+00> : vector<2x48xf32>
    %350 = tpu.matmul %346, %349, %cst_155 {dimension_numbers = #tpu.dot_dimension_numbers<[1], [0], [0], [1], [0, 0, 1, 1], [], []>} : vector<2x16xf32>, vector<16x48xf32>, vector<2x48xf32> -> vector<2x48xf32>
    %351 = arith.addf %348, %350 : vector<2x48xf32>
    %c0_156 = arith.constant 0 : index
    %c0_157 = arith.constant 0 : index
    %352 = vector.load %arg6[%c0_156, %c0_157] : memref<16x48xf32, #tpu.memory_space<vmem>>, vector<16x48xf32>
    %cst_158 = arith.constant dense<0.000000e+00> : vector<2x48xf32>
    %353 = tpu.matmul %330, %352, %cst_158 {dimension_numbers = #tpu.dot_dimension_numbers<[1], [0], [0], [1], [0, 0, 1, 1], [], []>} : vector<2x16xf32>, vector<16x48xf32>, vector<2x48xf32> -> vector<2x48xf32>
    %c0_159 = arith.constant 0 : index
    %c0_160 = arith.constant 0 : index
    %354 = vector.load %arg8[%c0_159, %c0_160] : memref<1x48xf32, #tpu.memory_space<vmem>>, vector<1x48xf32>
    %355 = vector.broadcast %354 : vector<1x48xf32> to vector<2x48xf32>
    %356 = arith.addf %353, %355 : vector<2x48xf32>
    %357 = vector.extract_strided_slice %351 {offsets = [0, 0], sizes = [2, 16], strides = [1, 1]} : vector<2x48xf32> to vector<2x16xf32>
    %358 = vector.extract_strided_slice %356 {offsets = [0, 0], sizes = [2, 16], strides = [1, 1]} : vector<2x48xf32> to vector<2x16xf32>
    %359 = arith.addf %357, %358 : vector<2x16xf32>
    %360 = arith.negf %359 : vector<2x16xf32>
    %361 = math.exp %360 : vector<2x16xf32>
    %cst_161 = arith.constant 1.000000e+00 : f32
    %362 = vector.broadcast %cst_161 : f32 to vector<2x16xf32>
    %363 = arith.addf %362, %361 : vector<2x16xf32>
    %364 = arith.divf %362, %363 : vector<2x16xf32>
    %365 = vector.extract_strided_slice %351 {offsets = [0, 16], sizes = [2, 16], strides = [1, 1]} : vector<2x48xf32> to vector<2x16xf32>
    %366 = vector.extract_strided_slice %356 {offsets = [0, 16], sizes = [2, 16], strides = [1, 1]} : vector<2x48xf32> to vector<2x16xf32>
    %367 = arith.addf %365, %366 : vector<2x16xf32>
    %368 = arith.negf %367 : vector<2x16xf32>
    %369 = math.exp %368 : vector<2x16xf32>
    %cst_162 = arith.constant 1.000000e+00 : f32
    %370 = vector.broadcast %cst_162 : f32 to vector<2x16xf32>
    %371 = arith.addf %370, %369 : vector<2x16xf32>
    %372 = arith.divf %370, %371 : vector<2x16xf32>
    %373 = vector.extract_strided_slice %351 {offsets = [0, 32], sizes = [2, 16], strides = [1, 1]} : vector<2x48xf32> to vector<2x16xf32>
    %374 = vector.extract_strided_slice %356 {offsets = [0, 32], sizes = [2, 16], strides = [1, 1]} : vector<2x48xf32> to vector<2x16xf32>
    %375 = arith.mulf %364, %374 : vector<2x16xf32>
    %376 = arith.addf %373, %375 : vector<2x16xf32>
    %377 = math.tanh %376 : vector<2x16xf32>
    %cst_163 = arith.constant 1.000000e+00 : f32
    %378 = vector.broadcast %cst_163 : f32 to vector<2x16xf32>
    %379 = arith.subf %378, %372 : vector<2x16xf32>
    %380 = arith.mulf %379, %377 : vector<2x16xf32>
    %381 = arith.mulf %372, %330 : vector<2x16xf32>
    %382 = arith.addf %380, %381 : vector<2x16xf32>
    %383 = arith.index_cast %325 : i32 to index
    %c0_164 = arith.constant 0 : index
    %384 = vector.load %arg22[%383, %c0_164] : memref<8x16xf32, #tpu.memory_space<vmem>>, vector<2x16xf32>
    %c0_165 = arith.constant 0 : index
    %c0_166 = arith.constant 0 : index
    %c0_167 = arith.constant 0 : index
    %385 = vector.load %arg19[%c0_165, %c0_166, %c0_167] : memref<2x8x16xf32, #tpu.memory_space<vmem>>, vector<2x8x16xf32>
    %386 = vector.shape_cast %384 : vector<2x16xf32> to vector<2x1x16xf32>
    "tpu.trace_start"() <{level = 10 : i32, message = "bqg,btg->bqt"}> : () -> ()
    %cst_168 = arith.constant dense<0.000000e+00> : vector<2x1x8xf32>
    %387 = tpu.matmul %386, %385, %cst_168 {dimension_numbers = #tpu.dot_dimension_numbers<[2], [2], [1], [1], [0, 0, 0, 1, 1, 1], [0], [0]>} : vector<2x1x16xf32>, vector<2x8x16xf32>, vector<2x1x8xf32> -> vector<2x1x8xf32>
    "tpu.trace_stop"() : () -> ()
    %388 = vector.shape_cast %387 : vector<2x1x8xf32> to vector<2x8xf32>
    %389 = vector.broadcast %323 : i32 to vector<2x8xi32>
    %390 = arith.cmpi slt, %21, %389 : vector<2x8xi32>
    %cst_169 = arith.constant -1.000000e+30 : f32
    %391 = vector.broadcast %cst_169 : f32 to vector<2x8xf32>
    %392 = arith.select %390, %388, %391 : vector<2x8xi1>, vector<2x8xf32>
    %cst_170 = arith.constant dense<0xFF800000> : vector<2xf32>
    %393 = vector.multi_reduction <maximumf>, %392, %cst_170 [1] : vector<2x8xf32> to vector<2xf32>
    %394 = vector.shape_cast %393 : vector<2xf32> to vector<2x1xf32>
    %395 = vector.broadcast %394 : vector<2x1xf32> to vector<2x8xf32>
    %396 = arith.subf %392, %395 : vector<2x8xf32>
    %397 = math.exp %396 : vector<2x8xf32>
    %cst_171 = arith.constant 0.000000e+00 : f32
    %398 = vector.broadcast %cst_171 : f32 to vector<2x8xf32>
    %399 = arith.select %390, %397, %398 : vector<2x8xi1>, vector<2x8xf32>
    %cst_172 = arith.constant dense<0.000000e+00> : vector<2xf32>
    %400 = vector.multi_reduction <add>, %399, %cst_172 [1] : vector<2x8xf32> to vector<2xf32>
    %401 = vector.shape_cast %400 : vector<2xf32> to vector<2x1xf32>
    %cst_173 = arith.constant 0.000000e+00 : f32
    %402 = vector.broadcast %cst_173 : f32 to vector<2x1xf32>
    %403 = arith.cmpf ogt, %401, %402 : vector<2x1xf32>
    %cst_174 = arith.constant 1.000000e+00 : f32
    %404 = vector.broadcast %cst_174 : f32 to vector<2x1xf32>
    %405 = arith.select %403, %401, %404 : vector<2x1xi1>, vector<2x1xf32>
    %406 = vector.broadcast %405 : vector<2x1xf32> to vector<2x8xf32>
    %407 = arith.divf %399, %406 : vector<2x8xf32>
    %408 = vector.shape_cast %407 : vector<2x8xf32> to vector<2x1x8xf32>
    "tpu.trace_start"() <{level = 10 : i32, message = "bqt,btg->bqg"}> : () -> ()
    %cst_175 = arith.constant dense<0.000000e+00> : vector<2x1x16xf32>
    %409 = tpu.matmul %408, %385, %cst_175 {dimension_numbers = #tpu.dot_dimension_numbers<[2], [1], [1], [2], [0, 0, 0, 1, 1, 2], [0], [0]>} : vector<2x1x8xf32>, vector<2x8x16xf32>, vector<2x1x16xf32> -> vector<2x1x16xf32>
    "tpu.trace_stop"() : () -> ()
    %410 = vector.shape_cast %409 : vector<2x1x16xf32> to vector<2x16xf32>
    %411 = arith.index_cast %325 : i32 to index
    %c0_176 = arith.constant 0 : index
    %412 = vector.load %arg24[%411, %c0_176] : memref<8x48xf32, #tpu.memory_space<vmem>>, vector<2x48xf32>
    %c0_177 = arith.constant 0 : index
    %c0_178 = arith.constant 0 : index
    %413 = vector.load %arg10[%c0_177, %c0_178] : memref<16x48xf32, #tpu.memory_space<vmem>>, vector<16x48xf32>
    %cst_179 = arith.constant dense<0.000000e+00> : vector<2x48xf32>
    %414 = tpu.matmul %410, %413, %cst_179 {dimension_numbers = #tpu.dot_dimension_numbers<[1], [0], [0], [1], [0, 0, 1, 1], [], []>} : vector<2x16xf32>, vector<16x48xf32>, vector<2x48xf32> -> vector<2x48xf32>
    %415 = arith.addf %412, %414 : vector<2x48xf32>
    %416 = vector.shape_cast %329 : vector<2x2x16xf32> to vector<4x16xf32>
    %c0_180 = arith.constant 0 : index
    %c0_181 = arith.constant 0 : index
    %417 = vector.load %arg11[%c0_180, %c0_181] : memref<16x48xf32, #tpu.memory_space<vmem>>, vector<16x48xf32>
    %cst_182 = arith.constant dense<0.000000e+00> : vector<4x48xf32>
    %418 = tpu.matmul %416, %417, %cst_182 {dimension_numbers = #tpu.dot_dimension_numbers<[1], [0], [0], [1], [0, 0, 1, 1], [], []>} : vector<4x16xf32>, vector<16x48xf32>, vector<4x48xf32> -> vector<4x48xf32>
    %c0_183 = arith.constant 0 : index
    %c0_184 = arith.constant 0 : index
    %419 = vector.load %arg13[%c0_183, %c0_184] : memref<1x48xf32, #tpu.memory_space<vmem>>, vector<1x48xf32>
    %420 = vector.broadcast %419 : vector<1x48xf32> to vector<4x48xf32>
    %421 = arith.addf %418, %420 : vector<4x48xf32>
    %422 = vector.shape_cast %415 : vector<2x48xf32> to vector<2x1x48xf32>
    %423 = vector.shape_cast %422 : vector<2x1x48xf32> to vector<2x1x48xf32>
    %424 = vector.broadcast %423 : vector<2x1x48xf32> to vector<2x2x48xf32>
    %425 = vector.shape_cast %424 : vector<2x2x48xf32> to vector<4x48xf32>
    %426 = vector.extract_strided_slice %425 {offsets = [0, 0], sizes = [4, 16], strides = [1, 1]} : vector<4x48xf32> to vector<4x16xf32>
    %427 = vector.extract_strided_slice %421 {offsets = [0, 0], sizes = [4, 16], strides = [1, 1]} : vector<4x48xf32> to vector<4x16xf32>
    %428 = arith.addf %426, %427 : vector<4x16xf32>
    %429 = arith.negf %428 : vector<4x16xf32>
    %430 = math.exp %429 : vector<4x16xf32>
    %cst_185 = arith.constant 1.000000e+00 : f32
    %431 = vector.broadcast %cst_185 : f32 to vector<4x16xf32>
    %432 = arith.addf %431, %430 : vector<4x16xf32>
    %433 = arith.divf %431, %432 : vector<4x16xf32>
    %434 = vector.extract_strided_slice %425 {offsets = [0, 16], sizes = [4, 16], strides = [1, 1]} : vector<4x48xf32> to vector<4x16xf32>
    %435 = vector.extract_strided_slice %421 {offsets = [0, 16], sizes = [4, 16], strides = [1, 1]} : vector<4x48xf32> to vector<4x16xf32>
    %436 = arith.addf %434, %435 : vector<4x16xf32>
    %437 = arith.negf %436 : vector<4x16xf32>
    %438 = math.exp %437 : vector<4x16xf32>
    %cst_186 = arith.constant 1.000000e+00 : f32
    %439 = vector.broadcast %cst_186 : f32 to vector<4x16xf32>
    %440 = arith.addf %439, %438 : vector<4x16xf32>
    %441 = arith.divf %439, %440 : vector<4x16xf32>
    %442 = vector.extract_strided_slice %425 {offsets = [0, 32], sizes = [4, 16], strides = [1, 1]} : vector<4x48xf32> to vector<4x16xf32>
    %443 = vector.extract_strided_slice %421 {offsets = [0, 32], sizes = [4, 16], strides = [1, 1]} : vector<4x48xf32> to vector<4x16xf32>
    %444 = arith.mulf %433, %443 : vector<4x16xf32>
    %445 = arith.addf %442, %444 : vector<4x16xf32>
    %446 = math.tanh %445 : vector<4x16xf32>
    %cst_187 = arith.constant 1.000000e+00 : f32
    %447 = vector.broadcast %cst_187 : f32 to vector<4x16xf32>
    %448 = arith.subf %447, %441 : vector<4x16xf32>
    %449 = arith.mulf %448, %446 : vector<4x16xf32>
    %450 = arith.mulf %441, %416 : vector<4x16xf32>
    %451 = arith.addf %449, %450 : vector<4x16xf32>
    %452 = vector.shape_cast %451 : vector<4x16xf32> to vector<2x2x16xf32>
    %453 = vector.shape_cast %328 : vector<2x2xf32> to vector<2x2x1xf32>
    %cst_188 = arith.constant 1.000000e+00 : f32
    %454 = vector.broadcast %cst_188 : f32 to vector<2x2x1xf32>
    %455 = arith.subf %454, %453 : vector<2x2x1xf32>
    %456 = vector.broadcast %455 : vector<2x2x1xf32> to vector<2x2x16xf32>
    %457 = arith.mulf %329, %456 : vector<2x2x16xf32>
    %458 = vector.broadcast %453 : vector<2x2x1xf32> to vector<2x2x16xf32>
    %459 = arith.mulf %452, %458 : vector<2x2x16xf32>
    %460 = arith.addf %457, %459 : vector<2x2x16xf32>
    %461 = vector.shape_cast %342 : vector<2x2xf32> to vector<2x2x1xf32>
    %462 = vector.broadcast %461 : vector<2x2x1xf32> to vector<2x2x16xf32>
    %463 = arith.mulf %462, %460 : vector<2x2x16xf32>
    %cst_189 = arith.constant dense<0.000000e+00> : vector<2x16xf32>
    %464 = vector.multi_reduction <add>, %463, %cst_189 [1] : vector<2x2x16xf32> to vector<2x16xf32>
    %465 = arith.index_cast %325 : i32 to index
    %c0_190 = arith.constant 0 : index
    %466 = vector.load %arg25[%465, %c0_190] : memref<8x16xf32, #tpu.memory_space<vmem>>, vector<2x16xf32>
    tpu.vector_store %arg25[%465, %c0_190], %464 {strides = array<i32>} : memref<8x16xf32, #tpu.memory_space<vmem>>, vector<2x16xf32>,
    %c0_191 = arith.constant 0 : index
    %c0_192 = arith.constant 0 : index
    %c0_193 = arith.constant 0 : index
    %467 = vector.load %arg21[%c0_191, %c0_192, %c0_193] : memref<2x2x16xf32, #tpu.memory_space<vmem>>, vector<2x2x16xf32>
    tpu.vector_store %arg21[%c0_191, %c0_192, %c0_193], %460 {strides = array<i32>} : memref<2x2x16xf32, #tpu.memory_space<vmem>>, vector<2x2x16xf32>,
    %c0_194 = arith.constant 0 : index
    %c0_195 = arith.constant 0 : index
    %468 = vector.load %arg20[%c0_194, %c0_195] : memref<2x16xf32, #tpu.memory_space<vmem>>, vector<2x16xf32>
    tpu.vector_store %arg20[%c0_194, %c0_195], %382 {strides = array<i32>} : memref<2x16xf32, #tpu.memory_space<vmem>>, vector<2x16xf32>,
    %469 = vector.shape_cast %382 : vector<2x16xf32> to vector<2x1x16xf32>
    %c0_196 = arith.constant 0 : index
    %470 = arith.index_cast %323 : i32 to index
    %c0_197 = arith.constant 0 : index
    %471 = vector.load %arg19[%c0_196, %470, %c0_197] : memref<2x8x16xf32, #tpu.memory_space<vmem>>, vector<2x1x16xf32>
    tpu.vector_store %arg19[%c0_196, %470, %c0_197], %469 {strides = array<i32>} : memref<2x8x16xf32, #tpu.memory_space<vmem>>, vector<2x1x16xf32>,
    %c3_i32 = arith.constant 3 : i32
    %c4_i32_198 = arith.constant 4 : i32
    %472 = arith.muli %arg1, %c4_i32_198 : i32
    %473 = arith.addi %472, %c3_i32 : i32
    %c2_i32_199 = arith.constant 2 : i32
    %474 = arith.muli %c3_i32, %c2_i32_199 : i32
    %475 = tpu.assume_multiple %474, 2 : i32
    %476 = arith.index_cast %c3_i32 : i32 to index
    %c0_200 = arith.constant 0 : index
    %c0_201 = arith.constant 0 : index
    %477 = vector.load %arg3[%476, %c0_200, %c0_201] : memref<4x2x2xf32, #tpu.memory_space<vmem>>, vector<1x2x2xf32>
    %478 = vector.shape_cast %477 : vector<1x2x2xf32> to vector<2x2xf32>
    %c0_202 = arith.constant 0 : index
    %c0_203 = arith.constant 0 : index
    %c0_204 = arith.constant 0 : index
    %479 = vector.load %arg21[%c0_202, %c0_203, %c0_204] : memref<2x2x16xf32, #tpu.memory_space<vmem>>, vector<2x2x16xf32>
    %c0_205 = arith.constant 0 : index
    %c0_206 = arith.constant 0 : index
    %480 = vector.load %arg20[%c0_205, %c0_206] : memref<2x16xf32, #tpu.memory_space<vmem>>, vector<2x16xf32>
    %cst_207 = arith.constant dense<0xFF800000> : vector<2xf32>
    %481 = vector.multi_reduction <maximumf>, %478, %cst_207 [1] : vector<2x2xf32> to vector<2xf32>
    %482 = vector.shape_cast %481 : vector<2xf32> to vector<2x1xf32>
    %483 = vector.broadcast %482 : vector<2x1xf32> to vector<2x2xf32>
    %484 = arith.cmpf oeq, %478, %483 : vector<2x2xf32>
    %c2_i32_208 = arith.constant 2 : i32
    %485 = vector.broadcast %c2_i32_208 : i32 to vector<2x2xi32>
    %486 = arith.select %484, %20, %485 : vector<2x2xi1>, vector<2x2xi32>
    %cst_209 = arith.constant dense<2147483647> : vector<2xi32>
    %487 = vector.multi_reduction <minsi>, %486, %cst_209 [1] : vector<2x2xi32> to vector<2xi32>
    %488 = vector.shape_cast %487 : vector<2xi32> to vector<2x1xi32>
    %489 = vector.broadcast %488 : vector<2x1xi32> to vector<2x2xi32>
    %490 = arith.cmpi eq, %20, %489 : vector<2x2xi32>
    %491 = arith.extui %490 : vector<2x2xi1> to vector<2x2xi32>
    %492 = arith.sitofp %491 : vector<2x2xi32> to vector<2x2xf32>
    %493 = vector.shape_cast %492 : vector<2x2xf32> to vector<2x2x1xf32>
    %494 = vector.broadcast %493 : vector<2x2x1xf32> to vector<2x2x16xf32>
    %495 = arith.mulf %494, %479 : vector<2x2x16xf32>
    %cst_210 = arith.constant dense<0.000000e+00> : vector<2x16xf32>
    %496 = vector.multi_reduction <add>, %495, %cst_210 [1] : vector<2x2x16xf32> to vector<2x16xf32>
    %497 = arith.index_cast %475 : i32 to index
    %c0_211 = arith.constant 0 : index
    %498 = vector.load %arg23[%497, %c0_211] : memref<8x48xf32, #tpu.memory_space<vmem>>, vector<2x48xf32>
    %c0_212 = arith.constant 0 : index
    %c0_213 = arith.constant 0 : index
    %499 = vector.load %arg5[%c0_212, %c0_213] : memref<16x48xf32, #tpu.memory_space<vmem>>, vector<16x48xf32>
    %cst_214 = arith.constant dense<0.000000e+00> : vector<2x48xf32>
    %500 = tpu.matmul %496, %499, %cst_214 {dimension_numbers = #tpu.dot_dimension_numbers<[1], [0], [0], [1], [0, 0, 1, 1], [], []>} : vector<2x16xf32>, vector<16x48xf32>, vector<2x48xf32> -> vector<2x48xf32>
    %501 = arith.addf %498, %500 : vector<2x48xf32>
    %c0_215 = arith.constant 0 : index
    %c0_216 = arith.constant 0 : index
    %502 = vector.load %arg6[%c0_215, %c0_216] : memref<16x48xf32, #tpu.memory_space<vmem>>, vector<16x48xf32>
    %cst_217 = arith.constant dense<0.000000e+00> : vector<2x48xf32>
    %503 = tpu.matmul %480, %502, %cst_217 {dimension_numbers = #tpu.dot_dimension_numbers<[1], [0], [0], [1], [0, 0, 1, 1], [], []>} : vector<2x16xf32>, vector<16x48xf32>, vector<2x48xf32> -> vector<2x48xf32>
    %c0_218 = arith.constant 0 : index
    %c0_219 = arith.constant 0 : index
    %504 = vector.load %arg8[%c0_218, %c0_219] : memref<1x48xf32, #tpu.memory_space<vmem>>, vector<1x48xf32>
    %505 = vector.broadcast %504 : vector<1x48xf32> to vector<2x48xf32>
    %506 = arith.addf %503, %505 : vector<2x48xf32>
    %507 = vector.extract_strided_slice %501 {offsets = [0, 0], sizes = [2, 16], strides = [1, 1]} : vector<2x48xf32> to vector<2x16xf32>
    %508 = vector.extract_strided_slice %506 {offsets = [0, 0], sizes = [2, 16], strides = [1, 1]} : vector<2x48xf32> to vector<2x16xf32>
    %509 = arith.addf %507, %508 : vector<2x16xf32>
    %510 = arith.negf %509 : vector<2x16xf32>
    %511 = math.exp %510 : vector<2x16xf32>
    %cst_220 = arith.constant 1.000000e+00 : f32
    %512 = vector.broadcast %cst_220 : f32 to vector<2x16xf32>
    %513 = arith.addf %512, %511 : vector<2x16xf32>
    %514 = arith.divf %512, %513 : vector<2x16xf32>
    %515 = vector.extract_strided_slice %501 {offsets = [0, 16], sizes = [2, 16], strides = [1, 1]} : vector<2x48xf32> to vector<2x16xf32>
    %516 = vector.extract_strided_slice %506 {offsets = [0, 16], sizes = [2, 16], strides = [1, 1]} : vector<2x48xf32> to vector<2x16xf32>
    %517 = arith.addf %515, %516 : vector<2x16xf32>
    %518 = arith.negf %517 : vector<2x16xf32>
    %519 = math.exp %518 : vector<2x16xf32>
    %cst_221 = arith.constant 1.000000e+00 : f32
    %520 = vector.broadcast %cst_221 : f32 to vector<2x16xf32>
    %521 = arith.addf %520, %519 : vector<2x16xf32>
    %522 = arith.divf %520, %521 : vector<2x16xf32>
    %523 = vector.extract_strided_slice %501 {offsets = [0, 32], sizes = [2, 16], strides = [1, 1]} : vector<2x48xf32> to vector<2x16xf32>
    %524 = vector.extract_strided_slice %506 {offsets = [0, 32], sizes = [2, 16], strides = [1, 1]} : vector<2x48xf32> to vector<2x16xf32>
    %525 = arith.mulf %514, %524 : vector<2x16xf32>
    %526 = arith.addf %523, %525 : vector<2x16xf32>
    %527 = math.tanh %526 : vector<2x16xf32>
    %cst_222 = arith.constant 1.000000e+00 : f32
    %528 = vector.broadcast %cst_222 : f32 to vector<2x16xf32>
    %529 = arith.subf %528, %522 : vector<2x16xf32>
    %530 = arith.mulf %529, %527 : vector<2x16xf32>
    %531 = arith.mulf %522, %480 : vector<2x16xf32>
    %532 = arith.addf %530, %531 : vector<2x16xf32>
    %533 = arith.index_cast %475 : i32 to index
    %c0_223 = arith.constant 0 : index
    %534 = vector.load %arg22[%533, %c0_223] : memref<8x16xf32, #tpu.memory_space<vmem>>, vector<2x16xf32>
    %c0_224 = arith.constant 0 : index
    %c0_225 = arith.constant 0 : index
    %c0_226 = arith.constant 0 : index
    %535 = vector.load %arg19[%c0_224, %c0_225, %c0_226] : memref<2x8x16xf32, #tpu.memory_space<vmem>>, vector<2x8x16xf32>
    %536 = vector.shape_cast %534 : vector<2x16xf32> to vector<2x1x16xf32>
    "tpu.trace_start"() <{level = 10 : i32, message = "bqg,btg->bqt"}> : () -> ()
    %cst_227 = arith.constant dense<0.000000e+00> : vector<2x1x8xf32>
    %537 = tpu.matmul %536, %535, %cst_227 {dimension_numbers = #tpu.dot_dimension_numbers<[2], [2], [1], [1], [0, 0, 0, 1, 1, 1], [0], [0]>} : vector<2x1x16xf32>, vector<2x8x16xf32>, vector<2x1x8xf32> -> vector<2x1x8xf32>
    "tpu.trace_stop"() : () -> ()
    %538 = vector.shape_cast %537 : vector<2x1x8xf32> to vector<2x8xf32>
    %539 = vector.broadcast %473 : i32 to vector<2x8xi32>
    %540 = arith.cmpi slt, %21, %539 : vector<2x8xi32>
    %cst_228 = arith.constant -1.000000e+30 : f32
    %541 = vector.broadcast %cst_228 : f32 to vector<2x8xf32>
    %542 = arith.select %540, %538, %541 : vector<2x8xi1>, vector<2x8xf32>
    %cst_229 = arith.constant dense<0xFF800000> : vector<2xf32>
    %543 = vector.multi_reduction <maximumf>, %542, %cst_229 [1] : vector<2x8xf32> to vector<2xf32>
    %544 = vector.shape_cast %543 : vector<2xf32> to vector<2x1xf32>
    %545 = vector.broadcast %544 : vector<2x1xf32> to vector<2x8xf32>
    %546 = arith.subf %542, %545 : vector<2x8xf32>
    %547 = math.exp %546 : vector<2x8xf32>
    %cst_230 = arith.constant 0.000000e+00 : f32
    %548 = vector.broadcast %cst_230 : f32 to vector<2x8xf32>
    %549 = arith.select %540, %547, %548 : vector<2x8xi1>, vector<2x8xf32>
    %cst_231 = arith.constant dense<0.000000e+00> : vector<2xf32>
    %550 = vector.multi_reduction <add>, %549, %cst_231 [1] : vector<2x8xf32> to vector<2xf32>
    %551 = vector.shape_cast %550 : vector<2xf32> to vector<2x1xf32>
    %cst_232 = arith.constant 0.000000e+00 : f32
    %552 = vector.broadcast %cst_232 : f32 to vector<2x1xf32>
    %553 = arith.cmpf ogt, %551, %552 : vector<2x1xf32>
    %cst_233 = arith.constant 1.000000e+00 : f32
    %554 = vector.broadcast %cst_233 : f32 to vector<2x1xf32>
    %555 = arith.select %553, %551, %554 : vector<2x1xi1>, vector<2x1xf32>
    %556 = vector.broadcast %555 : vector<2x1xf32> to vector<2x8xf32>
    %557 = arith.divf %549, %556 : vector<2x8xf32>
    %558 = vector.shape_cast %557 : vector<2x8xf32> to vector<2x1x8xf32>
    "tpu.trace_start"() <{level = 10 : i32, message = "bqt,btg->bqg"}> : () -> ()
    %cst_234 = arith.constant dense<0.000000e+00> : vector<2x1x16xf32>
    %559 = tpu.matmul %558, %535, %cst_234 {dimension_numbers = #tpu.dot_dimension_numbers<[2], [1], [1], [2], [0, 0, 0, 1, 1, 2], [0], [0]>} : vector<2x1x8xf32>, vector<2x8x16xf32>, vector<2x1x16xf32> -> vector<2x1x16xf32>
    "tpu.trace_stop"() : () -> ()
    %560 = vector.shape_cast %559 : vector<2x1x16xf32> to vector<2x16xf32>
    %561 = arith.index_cast %475 : i32 to index
    %c0_235 = arith.constant 0 : index
    %562 = vector.load %arg24[%561, %c0_235] : memref<8x48xf32, #tpu.memory_space<vmem>>, vector<2x48xf32>
    %c0_236 = arith.constant 0 : index
    %c0_237 = arith.constant 0 : index
    %563 = vector.load %arg10[%c0_236, %c0_237] : memref<16x48xf32, #tpu.memory_space<vmem>>, vector<16x48xf32>
    %cst_238 = arith.constant dense<0.000000e+00> : vector<2x48xf32>
    %564 = tpu.matmul %560, %563, %cst_238 {dimension_numbers = #tpu.dot_dimension_numbers<[1], [0], [0], [1], [0, 0, 1, 1], [], []>} : vector<2x16xf32>, vector<16x48xf32>, vector<2x48xf32> -> vector<2x48xf32>
    %565 = arith.addf %562, %564 : vector<2x48xf32>
    %566 = vector.shape_cast %479 : vector<2x2x16xf32> to vector<4x16xf32>
    %c0_239 = arith.constant 0 : index
    %c0_240 = arith.constant 0 : index
    %567 = vector.load %arg11[%c0_239, %c0_240] : memref<16x48xf32, #tpu.memory_space<vmem>>, vector<16x48xf32>
    %cst_241 = arith.constant dense<0.000000e+00> : vector<4x48xf32>
    %568 = tpu.matmul %566, %567, %cst_241 {dimension_numbers = #tpu.dot_dimension_numbers<[1], [0], [0], [1], [0, 0, 1, 1], [], []>} : vector<4x16xf32>, vector<16x48xf32>, vector<4x48xf32> -> vector<4x48xf32>
    %c0_242 = arith.constant 0 : index
    %c0_243 = arith.constant 0 : index
    %569 = vector.load %arg13[%c0_242, %c0_243] : memref<1x48xf32, #tpu.memory_space<vmem>>, vector<1x48xf32>
    %570 = vector.broadcast %569 : vector<1x48xf32> to vector<4x48xf32>
    %571 = arith.addf %568, %570 : vector<4x48xf32>
    %572 = vector.shape_cast %565 : vector<2x48xf32> to vector<2x1x48xf32>
    %573 = vector.shape_cast %572 : vector<2x1x48xf32> to vector<2x1x48xf32>
    %574 = vector.broadcast %573 : vector<2x1x48xf32> to vector<2x2x48xf32>
    %575 = vector.shape_cast %574 : vector<2x2x48xf32> to vector<4x48xf32>
    %576 = vector.extract_strided_slice %575 {offsets = [0, 0], sizes = [4, 16], strides = [1, 1]} : vector<4x48xf32> to vector<4x16xf32>
    %577 = vector.extract_strided_slice %571 {offsets = [0, 0], sizes = [4, 16], strides = [1, 1]} : vector<4x48xf32> to vector<4x16xf32>
    %578 = arith.addf %576, %577 : vector<4x16xf32>
    %579 = arith.negf %578 : vector<4x16xf32>
    %580 = math.exp %579 : vector<4x16xf32>
    %cst_244 = arith.constant 1.000000e+00 : f32
    %581 = vector.broadcast %cst_244 : f32 to vector<4x16xf32>
    %582 = arith.addf %581, %580 : vector<4x16xf32>
    %583 = arith.divf %581, %582 : vector<4x16xf32>
    %584 = vector.extract_strided_slice %575 {offsets = [0, 16], sizes = [4, 16], strides = [1, 1]} : vector<4x48xf32> to vector<4x16xf32>
    %585 = vector.extract_strided_slice %571 {offsets = [0, 16], sizes = [4, 16], strides = [1, 1]} : vector<4x48xf32> to vector<4x16xf32>
    %586 = arith.addf %584, %585 : vector<4x16xf32>
    %587 = arith.negf %586 : vector<4x16xf32>
    %588 = math.exp %587 : vector<4x16xf32>
    %cst_245 = arith.constant 1.000000e+00 : f32
    %589 = vector.broadcast %cst_245 : f32 to vector<4x16xf32>
    %590 = arith.addf %589, %588 : vector<4x16xf32>
    %591 = arith.divf %589, %590 : vector<4x16xf32>
    %592 = vector.extract_strided_slice %575 {offsets = [0, 32], sizes = [4, 16], strides = [1, 1]} : vector<4x48xf32> to vector<4x16xf32>
    %593 = vector.extract_strided_slice %571 {offsets = [0, 32], sizes = [4, 16], strides = [1, 1]} : vector<4x48xf32> to vector<4x16xf32>
    %594 = arith.mulf %583, %593 : vector<4x16xf32>
    %595 = arith.addf %592, %594 : vector<4x16xf32>
    %596 = math.tanh %595 : vector<4x16xf32>
    %cst_246 = arith.constant 1.000000e+00 : f32
    %597 = vector.broadcast %cst_246 : f32 to vector<4x16xf32>
    %598 = arith.subf %597, %591 : vector<4x16xf32>
    %599 = arith.mulf %598, %596 : vector<4x16xf32>
    %600 = arith.mulf %591, %566 : vector<4x16xf32>
    %601 = arith.addf %599, %600 : vector<4x16xf32>
    %602 = vector.shape_cast %601 : vector<4x16xf32> to vector<2x2x16xf32>
    %603 = vector.shape_cast %478 : vector<2x2xf32> to vector<2x2x1xf32>
    %cst_247 = arith.constant 1.000000e+00 : f32
    %604 = vector.broadcast %cst_247 : f32 to vector<2x2x1xf32>
    %605 = arith.subf %604, %603 : vector<2x2x1xf32>
    %606 = vector.broadcast %605 : vector<2x2x1xf32> to vector<2x2x16xf32>
    %607 = arith.mulf %479, %606 : vector<2x2x16xf32>
    %608 = vector.broadcast %603 : vector<2x2x1xf32> to vector<2x2x16xf32>
    %609 = arith.mulf %602, %608 : vector<2x2x16xf32>
    %610 = arith.addf %607, %609 : vector<2x2x16xf32>
    %611 = vector.shape_cast %492 : vector<2x2xf32> to vector<2x2x1xf32>
    %612 = vector.broadcast %611 : vector<2x2x1xf32> to vector<2x2x16xf32>
    %613 = arith.mulf %612, %610 : vector<2x2x16xf32>
    %cst_248 = arith.constant dense<0.000000e+00> : vector<2x16xf32>
    %614 = vector.multi_reduction <add>, %613, %cst_248 [1] : vector<2x2x16xf32> to vector<2x16xf32>
    %615 = arith.index_cast %475 : i32 to index
    %c0_249 = arith.constant 0 : index
    %616 = vector.load %arg25[%615, %c0_249] : memref<8x16xf32, #tpu.memory_space<vmem>>, vector<2x16xf32>
    tpu.vector_store %arg25[%615, %c0_249], %614 {strides = array<i32>} : memref<8x16xf32, #tpu.memory_space<vmem>>, vector<2x16xf32>,
    %c0_250 = arith.constant 0 : index
    %c0_251 = arith.constant 0 : index
    %c0_252 = arith.constant 0 : index
    %617 = vector.load %arg21[%c0_250, %c0_251, %c0_252] : memref<2x2x16xf32, #tpu.memory_space<vmem>>, vector<2x2x16xf32>
    tpu.vector_store %arg21[%c0_250, %c0_251, %c0_252], %610 {strides = array<i32>} : memref<2x2x16xf32, #tpu.memory_space<vmem>>, vector<2x2x16xf32>,
    %c0_253 = arith.constant 0 : index
    %c0_254 = arith.constant 0 : index
    %618 = vector.load %arg20[%c0_253, %c0_254] : memref<2x16xf32, #tpu.memory_space<vmem>>, vector<2x16xf32>
    tpu.vector_store %arg20[%c0_253, %c0_254], %532 {strides = array<i32>} : memref<2x16xf32, #tpu.memory_space<vmem>>, vector<2x16xf32>,
    %619 = vector.shape_cast %532 : vector<2x16xf32> to vector<2x1x16xf32>
    %c0_255 = arith.constant 0 : index
    %620 = arith.index_cast %473 : i32 to index
    %c0_256 = arith.constant 0 : index
    %621 = vector.load %arg19[%c0_255, %620, %c0_256] : memref<2x8x16xf32, #tpu.memory_space<vmem>>, vector<2x1x16xf32>
    tpu.vector_store %arg19[%c0_255, %620, %c0_256], %619 {strides = array<i32>} : memref<2x8x16xf32, #tpu.memory_space<vmem>>, vector<2x1x16xf32>,
    %c4_i32_257 = arith.constant 4 : i32
    %c0_258 = arith.constant 0 : index
    %c0_259 = arith.constant 0 : index
    %622 = vector.load %arg25[%c0_258, %c0_259] : memref<8x16xf32, #tpu.memory_space<vmem>>, vector<8x16xf32>
    %c0_260 = arith.constant 0 : index
    %c0_261 = arith.constant 0 : index
    %623 = vector.load %arg14[%c0_260, %c0_261] : memref<16x24xf32, #tpu.memory_space<vmem>>, vector<16x24xf32>
    %cst_262 = arith.constant dense<0.000000e+00> : vector<8x24xf32>
    %624 = tpu.matmul %622, %623, %cst_262 {dimension_numbers = #tpu.dot_dimension_numbers<[1], [0], [0], [1], [0, 0, 1, 1], [], []>} : vector<8x16xf32>, vector<16x24xf32>, vector<8x24xf32> -> vector<8x24xf32>
    %c0_263 = arith.constant 0 : index
    %c0_264 = arith.constant 0 : index
    %625 = vector.load %arg15[%c0_263, %c0_264] : memref<1x24xf32, #tpu.memory_space<vmem>>, vector<1x24xf32>
    %626 = vector.broadcast %625 : vector<1x24xf32> to vector<8x24xf32>
    %627 = arith.addf %624, %626 : vector<8x24xf32>
    %c0_265 = arith.constant 0 : index
    %c0_266 = arith.constant 0 : index
    %628 = vector.load %arg16[%c0_265, %c0_266] : memref<1x24xf32, #tpu.memory_space<vmem>>, vector<1x24xf32>
    %629 = vector.extract_strided_slice %627 {offsets = [0, 0], sizes = [8, 8], strides = [1, 1]} : vector<8x24xf32> to vector<8x8xf32>
    %630 = vector.extract_strided_slice %628 {offsets = [0, 0], sizes = [1, 8], strides = [1, 1]} : vector<1x24xf32> to vector<1x8xf32>
    %631 = vector.broadcast %630 : vector<1x8xf32> to vector<8x8xf32>
    %632 = arith.addf %629, %631 : vector<8x8xf32>
    %633 = arith.negf %632 : vector<8x8xf32>
    %634 = math.exp %633 : vector<8x8xf32>
    %cst_267 = arith.constant 1.000000e+00 : f32
    %635 = vector.broadcast %cst_267 : f32 to vector<8x8xf32>
    %636 = arith.addf %635, %634 : vector<8x8xf32>
    %637 = arith.divf %635, %636 : vector<8x8xf32>
    %638 = vector.extract_strided_slice %627 {offsets = [0, 8], sizes = [8, 8], strides = [1, 1]} : vector<8x24xf32> to vector<8x8xf32>
    %639 = vector.extract_strided_slice %628 {offsets = [0, 8], sizes = [1, 8], strides = [1, 1]} : vector<1x24xf32> to vector<1x8xf32>
    %640 = vector.broadcast %639 : vector<1x8xf32> to vector<8x8xf32>
    %641 = arith.addf %638, %640 : vector<8x8xf32>
    %642 = arith.negf %641 : vector<8x8xf32>
    %643 = math.exp %642 : vector<8x8xf32>
    %cst_268 = arith.constant 1.000000e+00 : f32
    %644 = vector.broadcast %cst_268 : f32 to vector<8x8xf32>
    %645 = arith.addf %644, %643 : vector<8x8xf32>
    %646 = arith.divf %644, %645 : vector<8x8xf32>
    %647 = vector.extract_strided_slice %627 {offsets = [0, 16], sizes = [8, 8], strides = [1, 1]} : vector<8x24xf32> to vector<8x8xf32>
    %648 = vector.extract_strided_slice %628 {offsets = [0, 16], sizes = [1, 8], strides = [1, 1]} : vector<1x24xf32> to vector<1x8xf32>
    %649 = vector.broadcast %648 : vector<1x8xf32> to vector<8x8xf32>
    %650 = arith.mulf %637, %649 : vector<8x8xf32>
    %651 = arith.addf %647, %650 : vector<8x8xf32>
    %652 = math.tanh %651 : vector<8x8xf32>
    %cst_269 = arith.constant 1.000000e+00 : f32
    %653 = vector.broadcast %cst_269 : f32 to vector<8x8xf32>
    %654 = arith.subf %653, %646 : vector<8x8xf32>
    %655 = arith.mulf %654, %652 : vector<8x8xf32>
    %656 = vector.shape_cast %655 : vector<8x8xf32> to vector<4x2x8xf32>
    %c0_270 = arith.constant 0 : index
    %c0_271 = arith.constant 0 : index
    %c0_272 = arith.constant 0 : index
    %657 = vector.load %arg18[%c0_270, %c0_271, %c0_272] : memref<4x2x8xf32, #tpu.memory_space<vmem>>, vector<4x2x8xf32>
    tpu.vector_store %arg18[%c0_270, %c0_271, %c0_272], %656 {strides = array<i32>} : memref<4x2x8xf32, #tpu.memory_space<vmem>>, vector<4x2x8xf32>,
    return
  }
  func.func @transform_0(%arg0: i32, %arg1: i32) -> (i32, i32, i32) {
    %c0_i32 = arith.constant 0 : i32
    %c0_i32_0 = arith.constant 0 : i32
    return %arg1, %arg0, %c0_i32 : i32, i32, i32
  }
  func.func @transform_1(%arg0: i32, %arg1: i32) -> (i32, i32, i32) {
    %c0_i32 = arith.constant 0 : i32
    %c0_i32_0 = arith.constant 0 : i32
    return %arg1, %arg0, %c0_i32 : i32, i32, i32
  }
  func.func @transform_2(%arg0: i32, %arg1: i32) -> (i32, i32) {
    %c0_i32 = arith.constant 0 : i32
    %c0_i32_0 = arith.constant 0 : i32
    %c0_i32_1 = arith.constant 0 : i32
    return %c0_i32, %c0_i32_0 : i32, i32
  }
  func.func @transform_3(%arg0: i32, %arg1: i32) -> (i32, i32) {
    %c0_i32 = arith.constant 0 : i32
    %c0_i32_0 = arith.constant 0 : i32
    %c0_i32_1 = arith.constant 0 : i32
    return %c0_i32, %c0_i32_0 : i32, i32
  }
  func.func @transform_4(%arg0: i32, %arg1: i32) -> (i32, i32) {
    %c0_i32 = arith.constant 0 : i32
    %c0_i32_0 = arith.constant 0 : i32
    %c0_i32_1 = arith.constant 0 : i32
    return %c0_i32, %c0_i32_0 : i32, i32
  }
  func.func @transform_5(%arg0: i32, %arg1: i32) -> (i32, i32) {
    %c0_i32 = arith.constant 0 : i32
    %c0_i32_0 = arith.constant 0 : i32
    %c0_i32_1 = arith.constant 0 : i32
    return %c0_i32, %c0_i32_0 : i32, i32
  }
  func.func @transform_6(%arg0: i32, %arg1: i32) -> (i32, i32) {
    %c0_i32 = arith.constant 0 : i32
    %c0_i32_0 = arith.constant 0 : i32
    %c0_i32_1 = arith.constant 0 : i32
    return %c0_i32, %c0_i32_0 : i32, i32
  }
  func.func @transform_7(%arg0: i32, %arg1: i32) -> (i32, i32) {
    %c0_i32 = arith.constant 0 : i32
    %c0_i32_0 = arith.constant 0 : i32
    %c0_i32_1 = arith.constant 0 : i32
    return %c0_i32, %c0_i32_0 : i32, i32
  }
  func.func @transform_8(%arg0: i32, %arg1: i32) -> (i32, i32) {
    %c0_i32 = arith.constant 0 : i32
    %c0_i32_0 = arith.constant 0 : i32
    %c0_i32_1 = arith.constant 0 : i32
    return %c0_i32, %c0_i32_0 : i32, i32
  }
  func.func @transform_9(%arg0: i32, %arg1: i32) -> (i32, i32) {
    %c0_i32 = arith.constant 0 : i32
    %c0_i32_0 = arith.constant 0 : i32
    %c0_i32_1 = arith.constant 0 : i32
    return %c0_i32, %c0_i32_0 : i32, i32
  }
  func.func @transform_10(%arg0: i32, %arg1: i32) -> (i32, i32) {
    %c0_i32 = arith.constant 0 : i32
    %c0_i32_0 = arith.constant 0 : i32
    %c0_i32_1 = arith.constant 0 : i32
    return %c0_i32, %c0_i32_0 : i32, i32
  }
  func.func @transform_11(%arg0: i32, %arg1: i32) -> (i32, i32) {
    %c0_i32 = arith.constant 0 : i32
    %c0_i32_0 = arith.constant 0 : i32
    %c0_i32_1 = arith.constant 0 : i32
    return %c0_i32, %c0_i32_0 : i32, i32
  }
  func.func @transform_12(%arg0: i32, %arg1: i32) -> (i32, i32) {
    %c0_i32 = arith.constant 0 : i32
    %c0_i32_0 = arith.constant 0 : i32
    %c0_i32_1 = arith.constant 0 : i32
    return %c0_i32, %c0_i32_0 : i32, i32
  }
  func.func @transform_13(%arg0: i32, %arg1: i32) -> (i32, i32) {
    %c0_i32 = arith.constant 0 : i32
    %c0_i32_0 = arith.constant 0 : i32
    %c0_i32_1 = arith.constant 0 : i32
    return %c0_i32, %c0_i32_0 : i32, i32
  }
  func.func @transform_14(%arg0: i32, %arg1: i32) -> (i32, i32) {
    %c0_i32 = arith.constant 0 : i32
    %c0_i32_0 = arith.constant 0 : i32
    %c0_i32_1 = arith.constant 0 : i32
    return %c0_i32, %c0_i32_0 : i32, i32
  }
  func.func @transform_15(%arg0: i32, %arg1: i32) -> (i32, i32) {
    %c0_i32 = arith.constant 0 : i32
    %c0_i32_0 = arith.constant 0 : i32
    %c0_i32_1 = arith.constant 0 : i32
    return %c0_i32, %c0_i32_0 : i32, i32
  }
  func.func @transform_16(%arg0: i32, %arg1: i32) -> (i32, i32, i32) {
    %c0_i32 = arith.constant 0 : i32
    %c0_i32_0 = arith.constant 0 : i32
    return %arg1, %arg0, %c0_i32 : i32, i32, i32
  }
}

</mosaic_0001>

<llo_original>
// kernel: tpu_custom_call.1
$region0: #{tpu_custom_call.1}
  #allocation0 [shape = 'u32[]', space=smem, size = 0x4, offset = 0x4, fixed_abs, tag = 'smem constant byte address 0x4 - core index']
  #allocation1 [shape = 'u32[72,128]{1,0:T(1,128)}', space=vmem, size = 0x9000, scoped, tag = 'internal scratch']
  #allocation2 [shape = 'f32[2,8,16]{2,1,0:T(8,128)}', space=vmem, size = 0x2000, scoped, tag = 'scratch operand']
  #allocation3 [shape = 'f32[2,16]{1,0:T(2,128)}', space=vmem, size = 0x400, scoped, tag = 'scratch operand']
  #allocation4 [shape = 'f32[2,2,16]{2,1,0:T(2,128)}', space=vmem, size = 0x800, scoped, tag = 'scratch operand']
  #allocation5 [shape = 'f32[8,16]{1,0:T(8,128)}', space=vmem, size = 0x1000, scoped, tag = 'scratch operand']
  #allocation6 [shape = 'f32[8,48]{1,0:T(8,128)}', space=vmem, size = 0x1000, scoped, tag = 'scratch operand']
  #allocation7 [shape = 'f32[8,48]{1,0:T(8,128)}', space=vmem, size = 0x1000, scoped, tag = 'scratch operand']
  #allocation8 [shape = 'f32[8,16]{1,0:T(8,128)}', space=vmem, size = 0x1000, scoped, tag = 'scratch operand']
  %s0 = inlined_call_operand.vmem [shape: f32[8,2,16], index: 0, kind: input, shape index: {}]
  %s1 = inlined_call_operand.vmem [shape: f32[8,2,2], index: 1, kind: input, shape index: {}]
  %s2 = inlined_call_operand.hbm [shape: f32[16,48], index: 2, kind: input, shape index: {}]
  %s3 = inlined_call_operand.hbm [shape: f32[16,48], index: 3, kind: input, shape index: {}]
  %s4 = inlined_call_operand.hbm [shape: f32[16,48], index: 4, kind: input, shape index: {}]
  %s5 = inlined_call_operand.hbm [shape: f32[1,48], index: 5, kind: input, shape index: {}]
  %s6 = inlined_call_operand.hbm [shape: f32[1,48], index: 6, kind: input, shape index: {}]
  %s7 = inlined_call_operand.hbm [shape: f32[16,48], index: 7, kind: input, shape index: {}]
  %s8 = inlined_call_operand.hbm [shape: f32[16,48], index: 8, kind: input, shape index: {}]
  %s9 = inlined_call_operand.hbm [shape: f32[16,48], index: 9, kind: input, shape index: {}]
  %s10 = inlined_call_operand.hbm [shape: f32[1,48], index: 10, kind: input, shape index: {}]
  %s11 = inlined_call_operand.hbm [shape: f32[1,48], index: 11, kind: input, shape index: {}]
  %s12 = inlined_call_operand.hbm [shape: f32[16,24], index: 12, kind: input, shape index: {}]
  %s13 = inlined_call_operand.hbm [shape: f32[1,24], index: 13, kind: input, shape index: {}]
  %s14 = inlined_call_operand.vmem [shape: f32[1,24], index: 14, kind: input, shape index: {}]
  %s15 = inlined_call_operand.vmem [shape: f32[16,16], index: 15, kind: input, shape index: {}]
  %s16 = inlined_call_operand.hbm [shape: f32[8,2,8], index: 16, kind: output, shape index: {}]
  %s17 = sld [smem:[#allocation0]]
  $region149: #{tpu_custom_call.1} parent=0
    _
  %s19 = ssub.s32 1, %s17
  %s20 = scalar_select 0, %s19, %s17
  $region1: #{tpu_custom_call.1} parent=0
    #allocation9 [shape = 'u8[8192]{0}', space=vmem, size = 0x2000, scoped, tag = 'input window, operand 2, single buffered']
    #allocation10 [shape = 's32[2]{0}', space=sflag, size = 0x8, scoped, tag = 'scoped memory for tpu_custom_call.1']
    #allocation11 [shape = 's32[2]{0}', space=sflag, size = 0x8, scoped, tag = 'scoped memory for tpu_custom_call.1']
    #allocation12 [shape = 'u8[8192]{0}', space=vmem, size = 0x2000, scoped, tag = 'input window, operand 3, single buffered']
    #allocation13 [shape = 's32[1]{0}', space=sflag, size = 0x4, scoped, tag = 'scoped memory for tpu_custom_call.1']
    #allocation14 [shape = 'u8[8192]{0}', space=vmem, size = 0x2000, scoped, tag = 'input window, operand 4, single buffered']
    #allocation15 [shape = 'u8[512]{0}', space=vmem, size = 0x400, scoped, tag = 'input window, operand 5, single buffered']
    #allocation16 [shape = 's32[1]{0}', space=sflag, size = 0x4, scoped, tag = 'scoped memory for tpu_custom_call.1']
    #allocation17 [shape = 'u8[512]{0}', space=vmem, size = 0x400, scoped, tag = 'input window, operand 6, single buffered']
    #allocation18 [shape = 'u8[8192]{0}', space=vmem, size = 0x2000, scoped, tag = 'input window, operand 7, single buffered']
    #allocation19 [shape = 's32[1]{0}', space=sflag, size = 0x4, scoped, tag = 'scoped memory for tpu_custom_call.1']
    #allocation20 [shape = 'u8[8192]{0}', space=vmem, size = 0x2000, scoped, tag = 'input window, operand 8, single buffered']
    #allocation21 [shape = 'u8[8192]{0}', space=vmem, size = 0x2000, scoped, tag = 'input window, operand 9, single buffered']
    #allocation22 [shape = 's32[1]{0}', space=sflag, size = 0x4, scoped, tag = 'scoped memory for tpu_custom_call.1']
    #allocation23 [shape = 'u8[512]{0}', space=vmem, size = 0x400, scoped, tag = 'input window, operand 10, single buffered']
    #allocation24 [shape = 'u8[512]{0}', space=vmem, size = 0x400, scoped, tag = 'input window, operand 11, single buffered']
    #allocation25 [shape = 's32[1]{0}', space=sflag, size = 0x4, scoped, tag = 'scoped memory for tpu_custom_call.1']
    #allocation26 [shape = 'u8[8192]{0}', space=vmem, size = 0x2000, scoped, tag = 'input window, operand 12, single buffered']
    #allocation27 [shape = 'u8[512]{0}', space=vmem, size = 0x400, scoped, tag = 'input window, operand 13, single buffered']
    #allocation28 [shape = 's32[1]{0}', space=sflag, size = 0x4, scoped, tag = 'scoped memory for tpu_custom_call.1']
    #allocation29 [shape = 'u8[8192]{0}', space=vmem, size = 0x2000, scoped, tag = 'output window, operand 0']
    %21 = vsyncpa [#allocation10], 0
    %22 = vsyncpa [#allocation13], 0
    %23 = vsyncpa [#allocation16], 0
    %24 = vsyncpa [#allocation19], 0
    %25 = vsyncpa [#allocation22], 0
    %26 = vsyncpa [#allocation25], 0
    %27 = vsyncpa [#allocation28], 0
    %28 = vsyncpa [#allocation11], 0
    %s29 = scalar_lea.sflag [#allocation11], 1
    %30 = vsyncpa %s29, 0
    loop: start=0, step=1, limit=4
    $region2: #{tpu_custom_call.1} parent=1 // loop_pre_header
      _
    $region3: #{tpu_custom_call.1} parent=1 // loop_header
      %s32 = sphi 0, %s36
      %p33 = scmp.ge.s32.totalorder %s32, 4
      %s39 = sphi 0, %s51
      %s40 = sphi 0, %s47
      %s41 = sphi 0, %s39
      %s42 = sphi 0, %s40
      %s43 = sphi 0, %s41
      %s44 = sphi 0, %s42
      %s56 = sphi 0, %s58
      %s59 = sphi 0, %s56
      %s60 = sphi 0, %s59
      %s76 = sphi 0, %s60
      %s84 = sphi 0, %s86
      %s87 = sphi 0, %s84
      %s88 = sphi 0, %s87
      %s104 = sphi 0, %s88
      %s108 = sphi 0, %s108
      %s110 = sphi 0, %s108
      %s111 = sphi 0, %s110
      %s125 = sphi 0, %s111
      %s129 = sphi 0, %s129
      %s131 = sphi 0, %s129
      %s132 = sphi 0, %s131
      %s146 = sphi 0, %s132
      %s150 = sphi 0, %s150
      %s152 = sphi 0, %s150
      %s153 = sphi 0, %s152
      %s167 = sphi 0, %s153
      %s171 = sphi 0, %s171
      %s173 = sphi 0, %s171
      %s174 = sphi 0, %s173
      %s188 = sphi 0, %s174
      %s192 = sphi 0, %s192
      %s194 = sphi 0, %s192
      %s195 = sphi 0, %s194
      %s209 = sphi 0, %s195
      %s213 = sphi 0, %s213
      %s215 = sphi 0, %s213
      %s216 = sphi 0, %s215
      %s230 = sphi 0, %s216
      %s234 = sphi 0, %s234
      %s236 = sphi 0, %s234
      %s237 = sphi 0, %s236
      %s251 = sphi 0, %s237
      %s255 = sphi 0, %s255
      %s257 = sphi 0, %s255
      %s258 = sphi 0, %s257
      %s272 = sphi 0, %s258
      %s276 = sphi 0, %s276
      %s278 = sphi 0, %s276
      %s279 = sphi 0, %s278
      %s293 = sphi 0, %s279
      %s297 = sphi 0, %s297
      %s299 = sphi 0, %s297
      %s300 = sphi 0, %s299
      %s314 = sphi 0, %s300
      %s318 = sphi 0, %s318
      %s320 = sphi 0, %s318
      %s321 = sphi 0, %s320
      %s335 = sphi 0, %s321
      %s339 = sphi 0, %s339
      %s341 = sphi 0, %s339
      %s342 = sphi 0, %s341
      %s356 = sphi 0, %s342
      %s360 = sphi 0, %s360
      %s362 = sphi 0, %s360
      %s363 = sphi 0, %s362
      %s377 = sphi 0, %s363
      %s381 = sphi 0, %s381
      %s383 = sphi 0, %s381
      %s384 = sphi 0, %s383
      %s398 = sphi 0, %s384
      %s406 = sphi 0, %s408
      %s409 = sphi 0, %s406
      %s410 = sphi 0, %s409
      %s426 = sphi 0, %s410
    $region4: #{tpu_custom_call.1} parent=1 // loop_header_branch
      %35 = sbr.rel (%p33) target = $region8
    $region5: #{tpu_custom_call.1} parent=1 // loop_body
      %s37 = ssub.s32 %s32, 1
      %s38 = ssub.s32 %s32, 2
      %s45 = sadd.s32 1, %s40
      %p46 = scmp.ge.s32.totalorder %s45, 2
      %s47 = scalar_select %p46, 0, %s45
      %s48 = sadd.s32 1, %s39
      %s49 = scalar_select %p46, %s48, %s39
      %p50 = scmp.ge.s32.totalorder %s49, 1
      %s51 = scalar_select %p50, 0, %s49
      %s52 = ssub.s32 %s40, %s47
      %s53 = ssub.s32 %s39, %s51
      %s54 = sor.u32 %s52, %s53
      %p55 = scmp.eq.s32.totalorder %s54, 0
      %s57 = sadd.s32 %s56, 1
      %s58 = scalar_select %p55, %s56, %s57
      %p61 = pneg %p55
      %p62 = scmp.eq.s32.totalorder %s32, 1
      %p63 = por %p61, %p62
      %p64 = scmp.ne.s32.totalorder %s56, %s59
      %p65 = scmp.eq.s32.totalorder %s32, 0
      %p66 = por %p64, %p65
      %p67 = scmp.ne.s32.totalorder %s56, %s59
      %p68 = scmp.eq.s32.totalorder %s37, 1
      %p69 = por %p67, %p68
      %p70 = scmp.ne.s32.totalorder %s59, %s60
      %p71 = scmp.eq.s32.totalorder %s37, 0
      %p72 = por %p70, %p71
      %p73 = scmp.ne.s32.totalorder %s59, %s60
      %p74 = scmp.eq.s32.totalorder %s38, 1
      %p75 = por %p73, %p74
      %p77 = scmp.ne.s32.totalorder %s60, %s76
      %p78 = scmp.eq.s32.totalorder %s38, 0
      %p79 = por %p77, %p78
      %s80 = ssub.s32 %s40, %s47
      %s81 = ssub.s32 %s39, %s51
      %s82 = sor.u32 %s80, %s81
      %p83 = scmp.eq.s32.totalorder %s82, 0
      %s85 = sadd.s32 %s84, 1
      %s86 = scalar_select %p83, %s84, %s85
      %p89 = pneg %p83
      %p90 = scmp.eq.s32.totalorder %s32, 1
      %p91 = por %p89, %p90
      %p92 = scmp.ne.s32.totalorder %s84, %s87
      %p93 = scmp.eq.s32.totalorder %s32, 0
      %p94 = por %p92, %p93
      %p95 = scmp.ne.s32.totalorder %s84, %s87
      %p96 = scmp.eq.s32.totalorder %s37, 1
      %p97 = por %p95, %p96
      %p98 = scmp.ne.s32.totalorder %s87, %s88
      %p99 = scmp.eq.s32.totalorder %s37, 0
      %p100 = por %p98, %p99
      %p101 = scmp.ne.s32.totalorder %s87, %s88
      %p102 = scmp.eq.s32.totalorder %s38, 1
      %p103 = por %p101, %p102
      %p105 = scmp.ne.s32.totalorder %s88, %s104
      %p106 = scmp.eq.s32.totalorder %s38, 0
      %p107 = por %p105, %p106
      %s109 = sadd.s32 %s108, 1
      %p112 = scmp.eq.s32.totalorder %s32, 1
      %p113 = scmp.ne.s32.totalorder %s108, %s110
      %p114 = scmp.eq.s32.totalorder %s32, 0
      %p115 = por %p113, %p114
      %p116 = scmp.ne.s32.totalorder %s108, %s110
      %p117 = scmp.eq.s32.totalorder %s37, 1
      %p118 = por %p116, %p117
      %p119 = scmp.ne.s32.totalorder %s110, %s111
      %p120 = scmp.eq.s32.totalorder %s37, 0
      %p121 = por %p119, %p120
      %p122 = scmp.ne.s32.totalorder %s110, %s111
      %p123 = scmp.eq.s32.totalorder %s38, 1
      %p124 = por %p122, %p123
      %p126 = scmp.ne.s32.totalorder %s111, %s125
      %p127 = scmp.eq.s32.totalorder %s38, 0
      %p128 = por %p126, %p127
      %s130 = sadd.s32 %s129, 1
      %p133 = scmp.eq.s32.totalorder %s32, 1
      %p134 = scmp.ne.s32.totalorder %s129, %s131
      %p135 = scmp.eq.s32.totalorder %s32, 0
      %p136 = por %p134, %p135
      %p137 = scmp.ne.s32.totalorder %s129, %s131
      %p138 = scmp.eq.s32.totalorder %s37, 1
      %p139 = por %p137, %p138
      %p140 = scmp.ne.s32.totalorder %s131, %s132
      %p141 = scmp.eq.s32.totalorder %s37, 0
      %p142 = por %p140, %p141
      %p143 = scmp.ne.s32.totalorder %s131, %s132
      %p144 = scmp.eq.s32.totalorder %s38, 1
      %p145 = por %p143, %p144
      %p147 = scmp.ne.s32.totalorder %s132, %s146
      %p148 = scmp.eq.s32.totalorder %s38, 0
      %p149 = por %p147, %p148
      %s151 = sadd.s32 %s150, 1
      %p154 = scmp.eq.s32.totalorder %s32, 1
      %p155 = scmp.ne.s32.totalorder %s150, %s152
      %p156 = scmp.eq.s32.totalorder %s32, 0
      %p157 = por %p155, %p156
      %p158 = scmp.ne.s32.totalorder %s150, %s152
      %p159 = scmp.eq.s32.totalorder %s37, 1
      %p160 = por %p158, %p159
      %p161 = scmp.ne.s32.totalorder %s152, %s153
      %p162 = scmp.eq.s32.totalorder %s37, 0
      %p163 = por %p161, %p162
      %p164 = scmp.ne.s32.totalorder %s152, %s153
      %p165 = scmp.eq.s32.totalorder %s38, 1
      %p166 = por %p164, %p165
      %p168 = scmp.ne.s32.totalorder %s153, %s167
      %p169 = scmp.eq.s32.totalorder %s38, 0
      %p170 = por %p168, %p169
      %s172 = sadd.s32 %s171, 1
      %p175 = scmp.eq.s32.totalorder %s32, 1
      %p176 = scmp.ne.s32.totalorder %s171, %s173
      %p177 = scmp.eq.s32.totalorder %s32, 0
      %p178 = por %p176, %p177
      %p179 = scmp.ne.s32.totalorder %s171, %s173
      %p180 = scmp.eq.s32.totalorder %s37, 1
      %p181 = por %p179, %p180
      %p182 = scmp.ne.s32.totalorder %s173, %s174
      %p183 = scmp.eq.s32.totalorder %s37, 0
      %p184 = por %p182, %p183
      %p185 = scmp.ne.s32.totalorder %s173, %s174
      %p186 = scmp.eq.s32.totalorder %s38, 1
      %p187 = por %p185, %p186
      %p189 = scmp.ne.s32.totalorder %s174, %s188
      %p190 = scmp.eq.s32.totalorder %s38, 0
      %p191 = por %p189, %p190
      %s193 = sadd.s32 %s192, 1
      %p196 = scmp.eq.s32.totalorder %s32, 1
      %p197 = scmp.ne.s32.totalorder %s192, %s194
      %p198 = scmp.eq.s32.totalorder %s32, 0
      %p199 = por %p197, %p198
      %p200 = scmp.ne.s32.totalorder %s192, %s194
      %p201 = scmp.eq.s32.totalorder %s37, 1
      %p202 = por %p200, %p201
      %p203 = scmp.ne.s32.totalorder %s194, %s195
      %p204 = scmp.eq.s32.totalorder %s37, 0
      %p205 = por %p203, %p204
      %p206 = scmp.ne.s32.totalorder %s194, %s195
      %p207 = scmp.eq.s32.totalorder %s38, 1
      %p208 = por %p206, %p207
      %p210 = scmp.ne.s32.totalorder %s195, %s209
      %p211 = scmp.eq.s32.totalorder %s38, 0
      %p212 = por %p210, %p211
      %s214 = sadd.s32 %s213, 1
      %p217 = scmp.eq.s32.totalorder %s32, 1
      %p218 = scmp.ne.s32.totalorder %s213, %s215
      %p219 = scmp.eq.s32.totalorder %s32, 0
      %p220 = por %p218, %p219
      %p221 = scmp.ne.s32.totalorder %s213, %s215
      %p222 = scmp.eq.s32.totalorder %s37, 1
      %p223 = por %p221, %p222
      %p224 = scmp.ne.s32.totalorder %s215, %s216
      %p225 = scmp.eq.s32.totalorder %s37, 0
      %p226 = por %p224, %p225
      %p227 = scmp.ne.s32.totalorder %s215, %s216
      %p228 = scmp.eq.s32.totalorder %s38, 1
      %p229 = por %p227, %p228
      %p231 = scmp.ne.s32.totalorder %s216, %s230
      %p232 = scmp.eq.s32.totalorder %s38, 0
      %p233 = por %p231, %p232
      %s235 = sadd.s32 %s234, 1
      %p238 = scmp.eq.s32.totalorder %s32, 1
      %p239 = scmp.ne.s32.totalorder %s234, %s236
      %p240 = scmp.eq.s32.totalorder %s32, 0
      %p241 = por %p239, %p240
      %p242 = scmp.ne.s32.totalorder %s234, %s236
      %p243 = scmp.eq.s32.totalorder %s37, 1
      %p244 = por %p242, %p243
      %p245 = scmp.ne.s32.totalorder %s236, %s237
      %p246 = scmp.eq.s32.totalorder %s37, 0
      %p247 = por %p245, %p246
      %p248 = scmp.ne.s32.totalorder %s236, %s237
      %p249 = scmp.eq.s32.totalorder %s38, 1
      %p250 = por %p248, %p249
      %p252 = scmp.ne.s32.totalorder %s237, %s251
      %p253 = scmp.eq.s32.totalorder %s38, 0
      %p254 = por %p252, %p253
      %s256 = sadd.s32 %s255, 1
      %p259 = scmp.eq.s32.totalorder %s32, 1
      %p260 = scmp.ne.s32.totalorder %s255, %s257
      %p261 = scmp.eq.s32.totalorder %s32, 0
      %p262 = por %p260, %p261
      %p263 = scmp.ne.s32.totalorder %s255, %s257
      %p264 = scmp.eq.s32.totalorder %s37, 1
      %p265 = por %p263, %p264
      %p266 = scmp.ne.s32.totalorder %s257, %s258
      %p267 = scmp.eq.s32.totalorder %s37, 0
      %p268 = por %p266, %p267
      %p269 = scmp.ne.s32.totalorder %s257, %s258
      %p270 = scmp.eq.s32.totalorder %s38, 1
      %p271 = por %p269, %p270
      %p273 = scmp.ne.s32.totalorder %s258, %s272
      %p274 = scmp.eq.s32.totalorder %s38, 0
      %p275 = por %p273, %p274
      %s277 = sadd.s32 %s276, 1
      %p280 = scmp.eq.s32.totalorder %s32, 1
      %p281 = scmp.ne.s32.totalorder %s276, %s278
      %p282 = scmp.eq.s32.totalorder %s32, 0
      %p283 = por %p281, %p282
      %p284 = scmp.ne.s32.totalorder %s276, %s278
      %p285 = scmp.eq.s32.totalorder %s37, 1
      %p286 = por %p284, %p285
      %p287 = scmp.ne.s32.totalorder %s278, %s279
      %p288 = scmp.eq.s32.totalorder %s37, 0
      %p289 = por %p287, %p288
      %p290 = scmp.ne.s32.totalorder %s278, %s279
      %p291 = scmp.eq.s32.totalorder %s38, 1
      %p292 = por %p290, %p291
      %p294 = scmp.ne.s32.totalorder %s279, %s293
      %p295 = scmp.eq.s32.totalorder %s38, 0
      %p296 = por %p294, %p295
      %s298 = sadd.s32 %s297, 1
      %p301 = scmp.eq.s32.totalorder %s32, 1
      %p302 = scmp.ne.s32.totalorder %s297, %s299
      %p303 = scmp.eq.s32.totalorder %s32, 0
      %p304 = por %p302, %p303
      %p305 = scmp.ne.s32.totalorder %s297, %s299
      %p306 = scmp.eq.s32.totalorder %s37, 1
      %p307 = por %p305, %p306
      %p308 = scmp.ne.s32.totalorder %s299, %s300
      %p309 = scmp.eq.s32.totalorder %s37, 0
      %p310 = por %p308, %p309
      %p311 = scmp.ne.s32.totalorder %s299, %s300
      %p312 = scmp.eq.s32.totalorder %s38, 1
      %p313 = por %p311, %p312
      %p315 = scmp.ne.s32.totalorder %s300, %s314
      %p316 = scmp.eq.s32.totalorder %s38, 0
      %p317 = por %p315, %p316
      %s319 = sadd.s32 %s318, 1
      %p322 = scmp.eq.s32.totalorder %s32, 1
      %p323 = scmp.ne.s32.totalorder %s318, %s320
      %p324 = scmp.eq.s32.totalorder %s32, 0
      %p325 = por %p323, %p324
      %p326 = scmp.ne.s32.totalorder %s318, %s320
      %p327 = scmp.eq.s32.totalorder %s37, 1
      %p328 = por %p326, %p327
      %p329 = scmp.ne.s32.totalorder %s320, %s321
      %p330 = scmp.eq.s32.totalorder %s37, 0
      %p331 = por %p329, %p330
      %p332 = scmp.ne.s32.totalorder %s320, %s321
      %p333 = scmp.eq.s32.totalorder %s38, 1
      %p334 = por %p332, %p333
      %p336 = scmp.ne.s32.totalorder %s321, %s335
      %p337 = scmp.eq.s32.totalorder %s38, 0
      %p338 = por %p336, %p337
      %s340 = sadd.s32 %s339, 1
      %p343 = scmp.eq.s32.totalorder %s32, 1
      %p344 = scmp.ne.s32.totalorder %s339, %s341
      %p345 = scmp.eq.s32.totalorder %s32, 0
      %p346 = por %p344, %p345
      %p347 = scmp.ne.s32.totalorder %s339, %s341
      %p348 = scmp.eq.s32.totalorder %s37, 1
      %p349 = por %p347, %p348
      %p350 = scmp.ne.s32.totalorder %s341, %s342
      %p351 = scmp.eq.s32.totalorder %s37, 0
      %p352 = por %p350, %p351
      %p353 = scmp.ne.s32.totalorder %s341, %s342
      %p354 = scmp.eq.s32.totalorder %s38, 1
      %p355 = por %p353, %p354
      %p357 = scmp.ne.s32.totalorder %s342, %s356
      %p358 = scmp.eq.s32.totalorder %s38, 0
      %p359 = por %p357, %p358
      %s361 = sadd.s32 %s360, 1
      %p364 = scmp.eq.s32.totalorder %s32, 1
      %p365 = scmp.ne.s32.totalorder %s360, %s362
      %p366 = scmp.eq.s32.totalorder %s32, 0
      %p367 = por %p365, %p366
      %p368 = scmp.ne.s32.totalorder %s360, %s362
      %p369 = scmp.eq.s32.totalorder %s37, 1
      %p370 = por %p368, %p369
      %p371 = scmp.ne.s32.totalorder %s362, %s363
      %p372 = scmp.eq.s32.totalorder %s37, 0
      %p373 = por %p371, %p372
      %p374 = scmp.ne.s32.totalorder %s362, %s363
      %p375 = scmp.eq.s32.totalorder %s38, 1
      %p376 = por %p374, %p375
      %p378 = scmp.ne.s32.totalorder %s363, %s377
      %p379 = scmp.eq.s32.totalorder %s38, 0
      %p380 = por %p378, %p379
      %s382 = sadd.s32 %s381, 1
      %p385 = scmp.eq.s32.totalorder %s32, 1
      %p386 = scmp.ne.s32.totalorder %s381, %s383
      %p387 = scmp.eq.s32.totalorder %s32, 0
      %p388 = por %p386, %p387
      %p389 = scmp.ne.s32.totalorder %s381, %s383
      %p390 = scmp.eq.s32.totalorder %s37, 1
      %p391 = por %p389, %p390
      %p392 = scmp.ne.s32.totalorder %s383, %s384
      %p393 = scmp.eq.s32.totalorder %s37, 0
      %p394 = por %p392, %p393
      %p395 = scmp.ne.s32.totalorder %s383, %s384
      %p396 = scmp.eq.s32.totalorder %s38, 1
      %p397 = por %p395, %p396
      %p399 = scmp.ne.s32.totalorder %s384, %s398
      %p400 = scmp.eq.s32.totalorder %s38, 0
      %p401 = por %p399, %p400
      %s402 = ssub.s32 %s40, %s47
      %s403 = ssub.s32 %s39, %s51
      %s404 = sor.u32 %s402, %s403
      %p405 = scmp.eq.s32.totalorder %s404, 0
      %s407 = sadd.s32 %s406, 1
      %s408 = scalar_select %p405, %s406, %s407
      %p411 = pneg %p405
      %p412 = scmp.eq.s32.totalorder %s32, 1
      %p413 = por %p411, %p412
      %p414 = scmp.ne.s32.totalorder %s406, %s409
      %p415 = scmp.eq.s32.totalorder %s32, 0
      %p416 = por %p414, %p415
      %p417 = scmp.ne.s32.totalorder %s406, %s409
      %p418 = scmp.eq.s32.totalorder %s37, 1
      %p419 = por %p417, %p418
      %p420 = scmp.ne.s32.totalorder %s409, %s410
      %p421 = scmp.eq.s32.totalorder %s37, 0
      %p422 = por %p420, %p421
      %p423 = scmp.ne.s32.totalorder %s409, %s410
      %p424 = scmp.eq.s32.totalorder %s38, 1
      %p425 = por %p423, %p424
      %p427 = scmp.ne.s32.totalorder %s410, %s426
      %p428 = scmp.eq.s32.totalorder %s38, 0
      %p429 = por %p427, %p428
      %p430 = scmp.le.s32.totalorder 1, %s32
      %p431 = scmp.lt.s32.totalorder %s32, 3
      %p432 = pnand %p430, %p431
      %p433 = pneg %p432
      // Predicated region
      $region9: #{tpu_custom_call.1} parent=5 // pred_check
        _
      $region10: #{tpu_custom_call.1} parent=5 // pred_check_branch
        %435 = sbr.rel (%p432) target = $region12
      $region11: #{tpu_custom_call.1} parent=5 // pred_region
        %s436 = ssub.s32 %s32, 1
        // Predicated region
        $region13: #{tpu_custom_call.1} parent=11 // pred_check
          %p437 = pneg %p121
        $region14: #{tpu_custom_call.1} parent=11 // pred_check_branch
          %439 = sbr.rel (%p437) target = $region16
        $region15: #{tpu_custom_call.1} parent=11 // pred_region
          %441 = vsyncadd [#allocation10], 0
          %s442 = sshll.u32 %s2, 4
          %s443 = int_to_ptr.hbm [resolvable:$true] %s442
          %s444 = sshll.u32 [#allocation9], 4
          %s445 = int_to_ptr.vmem [resolvable:$true] %s444
          %450 = dma.hbm_to_vmem [thread:$0]  %s443, 256, %s445, [#allocation10], 128, 128, 8
        $region16: #{tpu_custom_call.1} parent=11 // pred_fallthru
          _
        // Predicated region
        $region17: #{tpu_custom_call.1} parent=11 // pred_check
          %p451 = pneg %p142
        $region18: #{tpu_custom_call.1} parent=11 // pred_check_branch
          %453 = sbr.rel (%p451) target = $region20
        $region19: #{tpu_custom_call.1} parent=11 // pred_region
          %455 = vsyncadd [#allocation13], 0
          %s456 = sshll.u32 %s3, 4
          %s457 = int_to_ptr.hbm [resolvable:$true] %s456
          %s458 = sshll.u32 [#allocation12], 4
          %s459 = int_to_ptr.vmem [resolvable:$true] %s458
          %464 = dma.hbm_to_vmem [thread:$0]  %s457, 256, %s459, [#allocation13], 128, 128, 8
        $region20: #{tpu_custom_call.1} parent=11 // pred_fallthru
          _
        // Predicated region
        $region21: #{tpu_custom_call.1} parent=11 // pred_check
          %p465 = pneg %p163
        $region22: #{tpu_custom_call.1} parent=11 // pred_check_branch
          %467 = sbr.rel (%p465) target = $region24
        $region23: #{tpu_custom_call.1} parent=11 // pred_region
          %469 = vsyncadd [#allocation13], 0
          %s470 = sshll.u32 %s4, 4
          %s471 = int_to_ptr.hbm [resolvable:$true] %s470
          %s472 = sshll.u32 [#allocation14], 4
          %s473 = int_to_ptr.vmem [resolvable:$true] %s472
          %478 = dma.hbm_to_vmem [thread:$0]  %s471, 256, %s473, [#allocation13], 128, 128, 8
        $region24: #{tpu_custom_call.1} parent=11 // pred_fallthru
          _
        // Predicated region
        $region25: #{tpu_custom_call.1} parent=11 // pred_check
          %p479 = pneg %p184
        $region26: #{tpu_custom_call.1} parent=11 // pred_check_branch
          %481 = sbr.rel (%p479) target = $region28
        $region27: #{tpu_custom_call.1} parent=11 // pred_region
          %483 = vsyncadd [#allocation16], 0
          %s485 = sshll.u32 %s5, 4
          %s486 = int_to_ptr.hbm [resolvable:$true] %s485
          %s487 = sshll.u32 [#allocation15], 4
          %s488 = int_to_ptr.vmem [resolvable:$true] %s487
          %490 = dma.hbm_to_vmem [thread:$0]  %s486, 16, %s488, [#allocation16]
        $region28: #{tpu_custom_call.1} parent=11 // pred_fallthru
          _
        // Predicated region
        $region29: #{tpu_custom_call.1} parent=11 // pred_check
          %p491 = pneg %p205
        $region30: #{tpu_custom_call.1} parent=11 // pred_check_branch
          %493 = sbr.rel (%p491) target = $region32
        $region31: #{tpu_custom_call.1} parent=11 // pred_region
          %495 = vsyncadd [#allocation16], 0
          %s497 = sshll.u32 %s6, 4
          %s498 = int_to_ptr.hbm [resolvable:$true] %s497
          %s499 = sshll.u32 [#allocation17], 4
          %s500 = int_to_ptr.vmem [resolvable:$true] %s499
          %502 = dma.hbm_to_vmem [thread:$0]  %s498, 16, %s500, [#allocation16]
        $region32: #{tpu_custom_call.1} parent=11 // pred_fallthru
          _
        // Predicated region
        $region33: #{tpu_custom_call.1} parent=11 // pred_check
          %p503 = pneg %p226
        $region34: #{tpu_custom_call.1} parent=11 // pred_check_branch
          %505 = sbr.rel (%p503) target = $region36
        $region35: #{tpu_custom_call.1} parent=11 // pred_region
          %507 = vsyncadd [#allocation19], 0
          %s508 = sshll.u32 %s7, 4
          %s509 = int_to_ptr.hbm [resolvable:$true] %s508
          %s510 = sshll.u32 [#allocation18], 4
          %s511 = int_to_ptr.vmem [resolvable:$true] %s510
          %516 = dma.hbm_to_vmem [thread:$0]  %s509, 256, %s511, [#allocation19], 128, 128, 8
        $region36: #{tpu_custom_call.1} parent=11 // pred_fallthru
          _
        // Predicated region
        $region37: #{tpu_custom_call.1} parent=11 // pred_check
          %p517 = pneg %p247
        $region38: #{tpu_custom_call.1} parent=11 // pred_check_branch
          %519 = sbr.rel (%p517) target = $region40
        $region39: #{tpu_custom_call.1} parent=11 // pred_region
          %521 = vsyncadd [#allocation19], 0
          %s522 = sshll.u32 %s8, 4
          %s523 = int_to_ptr.hbm [resolvable:$true] %s522
          %s524 = sshll.u32 [#allocation20], 4
          %s525 = int_to_ptr.vmem [resolvable:$true] %s524
          %530 = dma.hbm_to_vmem [thread:$0]  %s523, 256, %s525, [#allocation19], 128, 128, 8
        $region40: #{tpu_custom_call.1} parent=11 // pred_fallthru
          _
        // Predicated region
        $region41: #{tpu_custom_call.1} parent=11 // pred_check
          %p531 = pneg %p268
        $region42: #{tpu_custom_call.1} parent=11 // pred_check_branch
          %533 = sbr.rel (%p531) target = $region44
        $region43: #{tpu_custom_call.1} parent=11 // pred_region
          %535 = vsyncadd [#allocation22], 0
          %s536 = sshll.u32 %s9, 4
          %s537 = int_to_ptr.hbm [resolvable:$true] %s536
          %s538 = sshll.u32 [#allocation21], 4
          %s539 = int_to_ptr.vmem [resolvable:$true] %s538
          %544 = dma.hbm_to_vmem [thread:$0]  %s537, 256, %s539, [#allocation22], 128, 128, 8
        $region44: #{tpu_custom_call.1} parent=11 // pred_fallthru
          _
        // Predicated region
        $region45: #{tpu_custom_call.1} parent=11 // pred_check
          %p545 = pneg %p289
        $region46: #{tpu_custom_call.1} parent=11 // pred_check_branch
          %547 = sbr.rel (%p545) target = $region48
        $region47: #{tpu_custom_call.1} parent=11 // pred_region
          %549 = vsyncadd [#allocation22], 0
          %s551 = sshll.u32 %s10, 4
          %s552 = int_to_ptr.hbm [resolvable:$true] %s551
          %s553 = sshll.u32 [#allocation23], 4
          %s554 = int_to_ptr.vmem [resolvable:$true] %s553
          %556 = dma.hbm_to_vmem [thread:$0]  %s552, 16, %s554, [#allocation22]
        $region48: #{tpu_custom_call.1} parent=11 // pred_fallthru
          _
        // Predicated region
        $region49: #{tpu_custom_call.1} parent=11 // pred_check
          %p557 = pneg %p310
        $region50: #{tpu_custom_call.1} parent=11 // pred_check_branch
          %559 = sbr.rel (%p557) target = $region52
        $region51: #{tpu_custom_call.1} parent=11 // pred_region
          %561 = vsyncadd [#allocation25], 0
          %s563 = sshll.u32 %s11, 4
          %s564 = int_to_ptr.hbm [resolvable:$true] %s563
          %s565 = sshll.u32 [#allocation24], 4
          %s566 = int_to_ptr.vmem [resolvable:$true] %s565
          %568 = dma.hbm_to_vmem [thread:$0]  %s564, 16, %s566, [#allocation25]
        $region52: #{tpu_custom_call.1} parent=11 // pred_fallthru
          _
        // Predicated region
        $region53: #{tpu_custom_call.1} parent=11 // pred_check
          %p569 = pneg %p331
        $region54: #{tpu_custom_call.1} parent=11 // pred_check_branch
          %571 = sbr.rel (%p569) target = $region56
        $region55: #{tpu_custom_call.1} parent=11 // pred_region
          %573 = vsyncadd [#allocation25], 0
          %s574 = sshll.u32 %s12, 4
          %s575 = int_to_ptr.hbm [resolvable:$true] %s574
          %s576 = sshll.u32 [#allocation26], 4
          %s577 = int_to_ptr.vmem [resolvable:$true] %s576
          %582 = dma.hbm_to_vmem [thread:$0]  %s575, 256, %s577, [#allocation25], 128, 128, 8
        $region56: #{tpu_custom_call.1} parent=11 // pred_fallthru
          _
        // Predicated region
        $region57: #{tpu_custom_call.1} parent=11 // pred_check
          %p583 = pneg %p352
        $region58: #{tpu_custom_call.1} parent=11 // pred_check_branch
          %585 = sbr.rel (%p583) target = $region60
        $region59: #{tpu_custom_call.1} parent=11 // pred_region
          %587 = vsyncadd [#allocation28], 0
          %s589 = sshll.u32 %s13, 4
          %s590 = int_to_ptr.hbm [resolvable:$true] %s589
          %s591 = sshll.u32 [#allocation27], 4
          %s592 = int_to_ptr.vmem [resolvable:$true] %s591
          %594 = dma.hbm_to_vmem [thread:$0]  %s590, 16, %s592, [#allocation28]
        $region60: #{tpu_custom_call.1} parent=11 // pred_fallthru
          _
        // Predicated region
        $region61: #{tpu_custom_call.1} parent=11 // pred_check
          %p595 = pneg %p373
        $region62: #{tpu_custom_call.1} parent=11 // pred_check_branch
          %597 = sbr.rel (%p595) target = $region64
        $region63: #{tpu_custom_call.1} parent=11 // pred_region
          _
        $region64: #{tpu_custom_call.1} parent=11 // pred_fallthru
          _
        // Predicated region
        $region65: #{tpu_custom_call.1} parent=11 // pred_check
          %p598 = pneg %p394
        $region66: #{tpu_custom_call.1} parent=11 // pred_check_branch
          %600 = sbr.rel (%p598) target = $region68
        $region67: #{tpu_custom_call.1} parent=11 // pred_region
          _
        $region68: #{tpu_custom_call.1} parent=11 // pred_fallthru
          _
      $region12: #{tpu_custom_call.1} parent=5 // pred_fallthru
        _
      %p601 = scmp.lt.s32.totalorder %s32, 2
      // Predicated region
      $region69: #{tpu_custom_call.1} parent=5 // pred_check
        %p602 = pneg %p601
      $region70: #{tpu_custom_call.1} parent=5 // pred_check_branch
        %604 = sbr.rel (%p602) target = $region72
      $region71: #{tpu_custom_call.1} parent=5 // pred_region
        // Predicated region
        $region73: #{tpu_custom_call.1} parent=71 // pred_check
          %p605 = pneg %p66
        $region74: #{tpu_custom_call.1} parent=71 // pred_check_branch
          %607 = sbr.rel (%p605) target = $region76
        $region75: #{tpu_custom_call.1} parent=71 // pred_region
          %s608 = smul.u32 4, %s40
          %p609 = scmp.lt.s32.totalorder %s608, 7
          %s610 = scalar_select %p609, %s608, 7
          %p611 = scmp.lt.s32.totalorder %s39, 0
          %s612 = scalar_select %p611, %s39, 0
          %s613 = sadd.s32 %s612, %s610
          %s614 = smul.addr %s613, 2
          %s615 = scalar_lea.vmem %s0, %s614
          %s616 = smul.u32 4, %s40
        $region76: #{tpu_custom_call.1} parent=71 // pred_fallthru
          _
        // Predicated region
        $region77: #{tpu_custom_call.1} parent=71 // pred_check
          %p617 = pneg %p94
        $region78: #{tpu_custom_call.1} parent=71 // pred_check_branch
          %619 = sbr.rel (%p617) target = $region80
        $region79: #{tpu_custom_call.1} parent=71 // pred_region
          %s620 = smul.u32 4, %s40
          %p621 = scmp.lt.s32.totalorder %s620, 7
          %s622 = scalar_select %p621, %s620, 7
          %p623 = scmp.lt.s32.totalorder %s39, 0
          %s624 = scalar_select %p623, %s39, 0
          %s625 = sadd.s32 %s624, %s622
          %s626 = smul.addr %s625, 2
          %s627 = scalar_lea.vmem %s1, %s626
          %s628 = smul.u32 4, %s40
        $region80: #{tpu_custom_call.1} parent=71 // pred_fallthru
          _
      $region72: #{tpu_custom_call.1} parent=5 // pred_fallthru
        _
      %p629 = scmp.le.s32.totalorder 1, %s32
      %p630 = scmp.lt.s32.totalorder %s32, 3
      %p631 = pnand %p629, %p630
      %p632 = pneg %p631
      // Predicated region
      $region81: #{tpu_custom_call.1} parent=5 // pred_check
        _
      $region82: #{tpu_custom_call.1} parent=5 // pred_check_branch
        %634 = sbr.rel (%p631) target = $region84
      $region83: #{tpu_custom_call.1} parent=5 // pred_region
        %s635 = ssub.s32 %s32, 1
        // Predicated region
        $region85: #{tpu_custom_call.1} parent=83 // pred_check
          %p636 = pneg %p121
        $region86: #{tpu_custom_call.1} parent=83 // pred_check_branch
          %638 = sbr.rel (%p636) target = $region88
        $region87: #{tpu_custom_call.1} parent=83 // pred_region
          %640 = dma.done [#allocation10], 256
        $region88: #{tpu_custom_call.1} parent=83 // pred_fallthru
          _
        // Predicated region
        $region89: #{tpu_custom_call.1} parent=83 // pred_check
          %p641 = pneg %p142
        $region90: #{tpu_custom_call.1} parent=83 // pred_check_branch
          %643 = sbr.rel (%p641) target = $region92
        $region91: #{tpu_custom_call.1} parent=83 // pred_region
          %645 = dma.done [#allocation13], 256
        $region92: #{tpu_custom_call.1} parent=83 // pred_fallthru
          _
        // Predicated region
        $region93: #{tpu_custom_call.1} parent=83 // pred_check
          %p646 = pneg %p163
        $region94: #{tpu_custom_call.1} parent=83 // pred_check_branch
          %648 = sbr.rel (%p646) target = $region96
        $region95: #{tpu_custom_call.1} parent=83 // pred_region
          %650 = dma.done [#allocation13], 256
        $region96: #{tpu_custom_call.1} parent=83 // pred_fallthru
          _
        // Predicated region
        $region97: #{tpu_custom_call.1} parent=83 // pred_check
          %p651 = pneg %p184
        $region98: #{tpu_custom_call.1} parent=83 // pred_check_branch
          %653 = sbr.rel (%p651) target = $region100
        $region99: #{tpu_custom_call.1} parent=83 // pred_region
          %655 = dma.done [#allocation16], 16
        $region100: #{tpu_custom_call.1} parent=83 // pred_fallthru
          _
        // Predicated region
        $region101: #{tpu_custom_call.1} parent=83 // pred_check
          %p656 = pneg %p205
        $region102: #{tpu_custom_call.1} parent=83 // pred_check_branch
          %658 = sbr.rel (%p656) target = $region104
        $region103: #{tpu_custom_call.1} parent=83 // pred_region
          %660 = dma.done [#allocation16], 16
        $region104: #{tpu_custom_call.1} parent=83 // pred_fallthru
          _
        // Predicated region
        $region105: #{tpu_custom_call.1} parent=83 // pred_check
          %p661 = pneg %p226
        $region106: #{tpu_custom_call.1} parent=83 // pred_check_branch
          %663 = sbr.rel (%p661) target = $region108
        $region107: #{tpu_custom_call.1} parent=83 // pred_region
          %665 = dma.done [#allocation19], 256
        $region108: #{tpu_custom_call.1} parent=83 // pred_fallthru
          _
        // Predicated region
        $region109: #{tpu_custom_call.1} parent=83 // pred_check
          %p666 = pneg %p247
        $region110: #{tpu_custom_call.1} parent=83 // pred_check_branch
          %668 = sbr.rel (%p666) target = $region112
        $region111: #{tpu_custom_call.1} parent=83 // pred_region
          %670 = dma.done [#allocation19], 256
        $region112: #{tpu_custom_call.1} parent=83 // pred_fallthru
          _
        // Predicated region
        $region113: #{tpu_custom_call.1} parent=83 // pred_check
          %p671 = pneg %p268
        $region114: #{tpu_custom_call.1} parent=83 // pred_check_branch
          %673 = sbr.rel (%p671) target = $region116
        $region115: #{tpu_custom_call.1} parent=83 // pred_region
          %675 = dma.done [#allocation22], 256
        $region116: #{tpu_custom_call.1} parent=83 // pred_fallthru
          _
        // Predicated region
        $region117: #{tpu_custom_call.1} parent=83 // pred_check
          %p676 = pneg %p289
        $region118: #{tpu_custom_call.1} parent=83 // pred_check_branch
          %678 = sbr.rel (%p676) target = $region120
        $region119: #{tpu_custom_call.1} parent=83 // pred_region
          %680 = dma.done [#allocation22], 16
        $region120: #{tpu_custom_call.1} parent=83 // pred_fallthru
          _
        // Predicated region
        $region121: #{tpu_custom_call.1} parent=83 // pred_check
          %p681 = pneg %p310
        $region122: #{tpu_custom_call.1} parent=83 // pred_check_branch
          %683 = sbr.rel (%p681) target = $region124
        $region123: #{tpu_custom_call.1} parent=83 // pred_region
          %685 = dma.done [#allocation25], 16
        $region124: #{tpu_custom_call.1} parent=83 // pred_fallthru
          _
        // Predicated region
        $region125: #{tpu_custom_call.1} parent=83 // pred_check
          %p686 = pneg %p331
        $region126: #{tpu_custom_call.1} parent=83 // pred_check_branch
          %688 = sbr.rel (%p686) target = $region128
        $region127: #{tpu_custom_call.1} parent=83 // pred_region
          %690 = dma.done [#allocation25], 256
        $region128: #{tpu_custom_call.1} parent=83 // pred_fallthru
          _
        // Predicated region
        $region129: #{tpu_custom_call.1} parent=83 // pred_check
          %p691 = pneg %p352
        $region130: #{tpu_custom_call.1} parent=83 // pred_check_branch
          %693 = sbr.rel (%p691) target = $region132
        $region131: #{tpu_custom_call.1} parent=83 // pred_region
          %695 = dma.done [#allocation28], 16
        $region132: #{tpu_custom_call.1} parent=83 // pred_fallthru
          _
        %s696 = smul.u32 4, %s42
        %p697 = scmp.lt.s32.totalorder %s696, 7
        %s698 = scalar_select %p697, %s696, 7
        %p699 = scmp.lt.s32.totalorder %s41, 0
        %s700 = scalar_select %p699, %s41, 0
        %s701 = sadd.s32 %s700, %s698
        %s702 = smul.addr %s701, 2
        %s703 = scalar_lea.vmem %s0, %s702
        %p704 = pneg %p72
        %p705 = pneg %p69
        %s706 = smul.u32 4, %s42
        %p707 = scmp.lt.s32.totalorder %s706, 7
        %s708 = scalar_select %p707, %s706, 7
        %p709 = scmp.lt.s32.totalorder %s41, 0
        %s710 = scalar_select %p709, %s41, 0
        %s711 = sadd.s32 %s710, %s708
        %s712 = smul.addr %s711, 2
        %s713 = scalar_lea.vmem %s1, %s712
        %p714 = pneg %p100
        %p715 = pneg %p97
        %p716 = pneg %p121
        %p717 = pneg %p118
        %p718 = pneg %p142
        %p719 = pneg %p139
        %p720 = pneg %p163
        %p721 = pneg %p160
        %p722 = pneg %p184
        %p723 = pneg %p181
        %p724 = pneg %p205
        %p725 = pneg %p202
        %p726 = pneg %p226
        %p727 = pneg %p223
        %p728 = pneg %p247
        %p729 = pneg %p244
        %p730 = pneg %p268
        %p731 = pneg %p265
        %p732 = pneg %p289
        %p733 = pneg %p286
        %p734 = pneg %p310
        %p735 = pneg %p307
        %p736 = pneg %p331
        %p737 = pneg %p328
        %p738 = pneg %p352
        %p739 = pneg %p349
        %p740 = pneg %p373
        %p741 = pneg %p370
        %p742 = pneg %p394
        %p743 = pneg %p391
        %p744 = pneg %p422
        %p745 = pneg %p419
        %s746 = sand.u32 %s409, 1
        %s747 = scalar_lea.sflag [#allocation11], %s746
        %s748 = sand.u32 %s409, 1
        %s749 = smul.addr %s748, 8
        %s750 = scalar_lea.vmem [#allocation29], %s749
        %s751 = smul.u32 4, %s42
        %p752 = scmp.lt.s32.totalorder %s751, 7
        %s753 = scalar_select %p752, %s751, 7
        %p754 = scmp.lt.s32.totalorder %s41, 0
        %s755 = scalar_select %p754, %s41, 0
        %s756 = sadd.s32 %s755, %s753
        %s757 = smul.addr %s756, 2
        %s758 = scalar_lea.vmem %s0, %s757
        %s759 = smul.u32 4, %s42
        %s760 = smul.u32 4, %s42
        %p761 = scmp.lt.s32.totalorder %s760, 7
        %s762 = scalar_select %p761, %s760, 7
        %p763 = scmp.lt.s32.totalorder %s41, 0
        %s764 = scalar_select %p763, %s41, 0
        %s765 = sadd.s32 %s764, %s762
        %s766 = smul.addr %s765, 2
        %s767 = scalar_lea.vmem %s1, %s766
        %s768 = smul.u32 4, %s42
        %s769 = smul.u32 4, %s42
        %p770 = scmp.eq.s32.totalorder %s42, 0
        // Predicated region
        $region133: #{tpu_custom_call.1} parent=83 // pred_check
          %p771 = pneg %p770
        $region134: #{tpu_custom_call.1} parent=83 // pred_check_branch
          %773 = sbr.rel (%p771) target = $region136
        $region135: #{tpu_custom_call.1} parent=83 // pred_region
          %vm774 = vcmask 130048
          %775 = vst.msk [vmem:[#allocation2] sm:$0xff] %vm774, 0.0
          %776 = vst.msk [vmem:[#allocation2 + $0x8] sm:$0xff] %vm774, 0.0
          %vm777 = vcmask 123904
          %778 = vst.msk [vmem:[#allocation3] sm:$0x3] %vm777, 0.0
          %779 = vst.msk [vmem:[#allocation4] sm:$0x3] %vm777, 0.0
          %780 = vst.msk [vmem:[#allocation4 + $0x2] sm:$0x3] %vm777, 0.0
        $region136: #{tpu_custom_call.1} parent=83 // pred_fallthru
          _
        %v781 = vld [vmem:[%s758] sm:$0x3]
        %v782 = vld [vmem:[%s758 + $0x2] sm:$0x3]
        %v783 = vld [vmem:[%s758 + $0x4] sm:$0x3]
        %v784 = vld [vmem:[%s758 + $0x6] sm:$0x3]
        %v785 = vld [vmem:[%s15] sm:$0xff]
        %v786 = vld [vmem:[%s15 + $0x8] sm:$0xff]
        %791 = vst [vmem:[#allocation1] ss:$4 sm:$0xff] %v781
        %s792 = scalar_lea.vmem [#allocation1], 1
        %793 = vst [vmem:[%s792] ss:$4 sm:$0xff] %v782
        %s794 = scalar_lea.vmem [#allocation1], 2
        %795 = vst [vmem:[%s794] ss:$4 sm:$0xff] %v783
        %s796 = scalar_lea.vmem [#allocation1], 3
        %797 = vst [vmem:[%s796] ss:$4 sm:$0xff] %v784
        %v798 = vld.sshfl [vmem:[#allocation1] sm:$0xff pattern:$0x73625140]
        %vm799 = vcmask 130048
        %v800 = vsel %vm799, %v798, 0
        %802 = vmatpush.msra.mxu0 0.0
        %803 = vmatpush.msra.mxu0 0.0
        %804 = vmatpush.msra.mxu0 0.0
        %805 = vmatpush.msra.mxu0 0.0
        %806 = vmatpush.msra.mxu0 0.0
        %807 = vmatpush.msra.mxu0 0.0
        %808 = vmatpush.msra.mxu0 0.0
        %809 = vmatpush.msra.mxu0 0.0
        %810 = vmatpush.msra.mxu0 0.0
        %811 = vmatpush.msra.mxu0 0.0
        %812 = vmatpush.msra.mxu0 0.0
        %813 = vmatpush.msra.mxu0 0.0
        %814 = vmatpush.msra.mxu0 0.0
        %815 = vmatpush.msra.mxu0 0.0
        %816 = vmatpush.msra.mxu0 %v786
        %817 = vmatpush.msra.mxu0 %v785
        %818 = vmatmul.f32.gmra.mxu0 %v800
        %v819 = vpop.f32.mrf.mxu0
        %v820 = vadd.f32 0.0, %v819
        %821 = vdwg.mxu0
        %822 = vst.msk [vmem:[#allocation5] sm:$0xff] %vm799, %v820
        %v823 = vld [vmem:[#allocation9] sm:$0xff]
        %v824 = vld [vmem:[#allocation9 + $0x8] sm:$0xff]
        %v825 = vld [vmem:[#allocation15] sm:$0x1]
        %v827 = vperm.slane %v825, 0
        %829 = vst [vmem:[#allocation1] ss:$4 sm:$0xff] %v781
        %s830 = scalar_lea.vmem [#allocation1], 1
        %831 = vst [vmem:[%s830] ss:$4 sm:$0xff] %v782
        %s832 = scalar_lea.vmem [#allocation1], 2
        %833 = vst [vmem:[%s832] ss:$4 sm:$0xff] %v783
        %s834 = scalar_lea.vmem [#allocation1], 3
        %835 = vst [vmem:[%s834] ss:$4 sm:$0xff] %v784
        %v836 = vld.sshfl [vmem:[#allocation1] sm:$0xff pattern:$0x73625140]
        %v837 = vsel %vm799, %v836, 0
        %839 = vmatpush.msra.mxu0 0.0
        %840 = vmatpush.msra.mxu0 0.0
        %841 = vmatpush.msra.mxu0 0.0
        %842 = vmatpush.msra.mxu0 0.0
        %843 = vmatpush.msra.mxu0 0.0
        %844 = vmatpush.msra.mxu0 0.0
        %845 = vmatpush.msra.mxu0 0.0
        %846 = vmatpush.msra.mxu0 0.0
        %847 = vmatpush.msra.mxu0 0.0
        %848 = vmatpush.msra.mxu0 0.0
        %849 = vmatpush.msra.mxu0 0.0
        %850 = vmatpush.msra.mxu0 0.0
        %851 = vmatpush.msra.mxu0 0.0
        %852 = vmatpush.msra.mxu0 0.0
        %853 = vmatpush.msra.mxu0 %v824
        %854 = vmatpush.msra.mxu0 %v823
        %855 = vmatmul.f32.gmra.mxu0 %v837
        %v856 = vpop.f32.mrf.mxu0
        %v857 = vadd.f32 %v827, %v856
        %858 = vdwg.mxu0
        %vm859 = vcmask 392192
        %860 = vst.msk [vmem:[#allocation6] sm:$0xff] %vm859, %v857
        %v861 = vld [vmem:[#allocation18] sm:$0xff]
        %v862 = vld [vmem:[#allocation18 + $0x8] sm:$0xff]
        %v863 = vld [vmem:[#allocation23] sm:$0x1]
        %v865 = vperm.slane %v863, 0
        %867 = vst [vmem:[#allocation1] ss:$4 sm:$0xff] %v781
        %s868 = scalar_lea.vmem [#allocation1], 1
        %869 = vst [vmem:[%s868] ss:$4 sm:$0xff] %v782
        %s870 = scalar_lea.vmem [#allocation1], 2
        %871 = vst [vmem:[%s870] ss:$4 sm:$0xff] %v783
        %s872 = scalar_lea.vmem [#allocation1], 3
        %873 = vst [vmem:[%s872] ss:$4 sm:$0xff] %v784
        %v874 = vld.sshfl [vmem:[#allocation1] sm:$0xff pattern:$0x73625140]
        %v875 = vsel %vm799, %v874, 0
        %877 = vmatpush.msra.mxu0 0.0
        %878 = vmatpush.msra.mxu0 0.0
        %879 = vmatpush.msra.mxu0 0.0
        %880 = vmatpush.msra.mxu0 0.0
        %881 = vmatpush.msra.mxu0 0.0
        %882 = vmatpush.msra.mxu0 0.0
        %883 = vmatpush.msra.mxu0 0.0
        %884 = vmatpush.msra.mxu0 0.0
        %885 = vmatpush.msra.mxu0 0.0
        %886 = vmatpush.msra.mxu0 0.0
        %887 = vmatpush.msra.mxu0 0.0
        %888 = vmatpush.msra.mxu0 0.0
        %889 = vmatpush.msra.mxu0 0.0
        %890 = vmatpush.msra.mxu0 0.0
        %891 = vmatpush.msra.mxu0 %v862
        %892 = vmatpush.msra.mxu0 %v861
        %893 = vmatmul.f32.gmra.mxu0 %v875
        %v894 = vpop.f32.mrf.mxu0
        %v895 = vadd.f32 %v865, %v894
        %896 = vdwg.mxu0
        %897 = vst.msk [vmem:[#allocation7] sm:$0xff] %vm859, %v895
        %v898 = vlaneseq
        %v899 = vand.u32 %v898, 127
        %s900 = smul.u32 %s42, 4
        %v901 = vld [vmem:[%s767] sm:$0x3]
        %v902 = vld [vmem:[#allocation4] sm:$0x3]
        %v903 = vld [vmem:[#allocation4 + $0x2] sm:$0x3]
        %v904 = vld [vmem:[#allocation3] sm:$0x3]
        %vm905 = vcmask 9216
        %v906 = vsel %vm905, %v901, -inf
        %907 = vmax.xlane.f32.xlu0 %v906
        %v908 = vpop.xlane.xlu0 %907
        %vm909 = vcmp.eq.f32.partialorder %v901, %v908
        %v910 = vsel %vm909, %v899, 2
        %v911 = vsel %vm905, %v910, 2147483647
        %v912 = vand.u32 %v911, 65535
        %v913 = vshra.s32 %v911, 16
        %v914 = vcvt.s32.f32 %v912
        %v915 = vcvt.s32.f32 %v913
        %916 = vmin.xlane.f32.xlu0 %v915
        %v917 = vpop.xlane.xlu0 %916
        %vm918 = vcmp.eq.f32.partialorder %v915, %v917
        %v919 = vsel %vm918, %v914, inf
        %920 = vmin.xlane.f32.xlu0 %v919
        %v921 = vpop.xlane.xlu0 %920
        %v922 = vcvt.f32.s32 %v921
        %v923 = vcvt.f32.s32 %v917
        %v924 = vshll.u32 %v923, 16
        %v925 = vadd.s32 %v924, %v922
        %vm926 = vcmp.eq.s32.totalorder %v899, %v925
        %v927 = vsel %vm926, 1, 0
        %v928 = vcvt.s32.f32 %v927
        %v929 = vperm.slane %v928, 0
        %v930 = vlaneseq
        %v931 = vshrl.u32 %v930, 7
        %933 = vset.pattern.permute.xlu0 %v931
        %934 = vperm.xlu0 %933, %v929
        %v935 = vpop.permute.xlu0 %934
        %v936 = vperm.slane %v928, 1
        %v937 = vlaneseq
        %v938 = vshrl.u32 %v937, 7
        %940 = vset.pattern.permute.xlu0 %v938
        %941 = vperm.xlu0 %940, %v936
        %v942 = vpop.permute.xlu0 %941
        %v943 = vmul.f32 %v935, %v902
        %v944 = vmul.f32 %v942, %v903
        %vm945 = vcmask 123904
        %v946 = vsel %vm945, %v943, 0.0
        %v947 = vrot.slane %v946, 4
        %v948 = vadd.f32 %v946, %v947
        %v949 = vrot.slane %v948, 2
        %v950 = vadd.f32 %v948, %v949
        %v951 = vrot.slane %v950, 1
        %v952 = vadd.f32 %v950, %v951
        %v953 = vsel %vm945, %v944, 0.0
        %v954 = vrot.slane %v953, 4
        %v955 = vadd.f32 %v953, %v954
        %v956 = vrot.slane %v955, 2
        %v957 = vadd.f32 %v955, %v956
        %v958 = vrot.slane %v957, 1
        %v959 = vadd.f32 %v957, %v958
        %v960 = vld [vmem:[#allocation6] sm:$0x3]
        %v961 = vld [vmem:[#allocation12] sm:$0xff]
        %v962 = vld [vmem:[#allocation12 + $0x8] sm:$0xff]
        %vm965 = vcmask 1041409
        %v966 = vsel %vm965, %v959, %v952
        %v967 = vsel %vm799, %v966, 0
        %969 = vmatpush.msra.mxu0 0.0
        %970 = vmatpush.msra.mxu0 0.0
        %971 = vmatpush.msra.mxu0 0.0
        %972 = vmatpush.msra.mxu0 0.0
        %973 = vmatpush.msra.mxu0 0.0
        %974 = vmatpush.msra.mxu0 0.0
        %975 = vmatpush.msra.mxu0 0.0
        %976 = vmatpush.msra.mxu0 0.0
        %977 = vmatpush.msra.mxu0 0.0
        %978 = vmatpush.msra.mxu0 0.0
        %979 = vmatpush.msra.mxu0 0.0
        %980 = vmatpush.msra.mxu0 0.0
        %981 = vmatpush.msra.mxu0 0.0
        %982 = vmatpush.msra.mxu0 0.0
        %983 = vmatpush.msra.mxu0 %v962
        %984 = vmatpush.msra.mxu0 %v961
        %985 = vmatmul.f32.gmra.mxu0 %v967
        %v986 = vpop.f32.mrf.mxu0
        %v987 = vadd.f32 0.0, %v986
        %988 = vdwg.mxu0
        %v989 = vadd.f32 %v960, %v987
        %v990 = vld [vmem:[#allocation14] sm:$0xff]
        %v991 = vld [vmem:[#allocation14 + $0x8] sm:$0xff]
        %v992 = vld [vmem:[#allocation17] sm:$0x1]
        %v994 = vperm.slane %v992, 0
        %v997 = vsel %vm799, %v904, 0
        %999 = vmatpush.msra.mxu0 0.0
        %1000 = vmatpush.msra.mxu0 0.0
        %1001 = vmatpush.msra.mxu0 0.0
        %1002 = vmatpush.msra.mxu0 0.0
        %1003 = vmatpush.msra.mxu0 0.0
        %1004 = vmatpush.msra.mxu0 0.0
        %1005 = vmatpush.msra.mxu0 0.0
        %1006 = vmatpush.msra.mxu0 0.0
        %1007 = vmatpush.msra.mxu0 0.0
        %1008 = vmatpush.msra.mxu0 0.0
        %1009 = vmatpush.msra.mxu0 0.0
        %1010 = vmatpush.msra.mxu0 0.0
        %1011 = vmatpush.msra.mxu0 0.0
        %1012 = vmatpush.msra.mxu0 0.0
        %1013 = vmatpush.msra.mxu0 %v991
        %1014 = vmatpush.msra.mxu0 %v990
        %1015 = vmatmul.f32.gmra.mxu0 %v997
        %v1016 = vpop.f32.mrf.mxu0
        %v1017 = vadd.f32 %v994, %v1016
        %1018 = vdwg.mxu0
        %v1019 = vadd.f32 %v989, %v1017
        %v1020 = vxor.u32 %v1019, 2147483648
        %v1021 = vmul.f32 %v1020, 1.442695
        %v1022 = vpow.pop %v1021
        %v1023 = vadd.f32 %v1022, 1.0
        %v1024 = vrcp.pop %v1023
        %v1025 = vmul.f32 %v1023, %v1024
        %v1026 = vsub.f32 1.0, %v1025
        %v1027 = vmul.f32 %v1024, %v1026
        %v1028 = vadd.f32 %v1024, %v1027
        %vm1029 = vweird.f32 %v1023
        %vm1030 = vweird.f32 %v1024
        %vm1031 = vmor %vm1029, %vm1030
        %v1032 = vsel %vm1031, %v1024, %v1028
        %v1033 = vand.u32 2147483647, %v1023
        %vm1034 = vcmp.eq.f32.partialorder %v1033, 8.507059e+37
        %v1035 = vand.u32 %v1023, 2147483648
        %v1036 = vor.u32 1.1754944e-38, %v1035
        %v1037 = vsel %vm1034, %v1036, %v1032
        %v1038 = vmul.f32 1.0, %v1037
        %1040 = vrot.lane.b32.xlu0 %v1017, 96
        %v1041 = vpop.permute.xlu0 %1040
        %v1043 = vmul.f32 %v1038, %v1041
        %1045 = vrot.lane.b32.xlu0 %v1043, 32
        %v1046 = vpop.permute.xlu0 %1045
        %v1048 = vadd.f32 %v989, %v1046
        %v1049 = vtanh.pop %v1048
        %v1050 = vsub.f32 1.0, %v1038
        %1052 = vrot.lane.b32.xlu0 %v1049, 112
        %v1053 = vpop.permute.xlu0 %1052
        %v1055 = vmul.f32 %v1050, %v1053
        %1056 = vrot.lane.b32.xlu0 %v904, 16
        %v1057 = vpop.permute.xlu0 %1056
        %v1059 = vmul.f32 %v1038, %v1057
        %v1060 = vadd.f32 %v1055, %v1059
        %v1061 = vld [vmem:[#allocation5] sm:$0x3]
        %v1062 = vld [vmem:[#allocation2] sm:$0xff]
        %v1063 = vld [vmem:[#allocation2 + $0x8] sm:$0xff]
        %v1065 = vrot.slane %v1061, 1
        %v1066 = vsel %vm799, %v1061, 0
        %v1069 = vsel %vm799, %v1062, 0
        %1071 = vmatpush.xpose.msra.mxu0 0.0
        %1072 = vmatpush.xpose.msra.mxu0 0.0
        %1073 = vmatpush.xpose.msra.mxu0 0.0
        %1074 = vmatpush.xpose.msra.mxu0 0.0
        %1075 = vmatpush.xpose.msra.mxu0 0.0
        %1076 = vmatpush.xpose.msra.mxu0 0.0
        %1077 = vmatpush.xpose.msra.mxu0 0.0
        %1078 = vmatpush.xpose.msra.mxu0 0.0
        %1079 = vmatpush.xpose.msra.mxu0 0.0
        %1080 = vmatpush.xpose.msra.mxu0 0.0
        %1081 = vmatpush.xpose.msra.mxu0 0.0
        %1082 = vmatpush.xpose.msra.mxu0 0.0
        %1083 = vmatpush.xpose.msra.mxu0 0.0
        %1084 = vmatpush.xpose.msra.mxu0 0.0
        %1085 = vmatpush.xpose.msra.mxu0 0.0
        %1086 = vmatpush.xpose.msra.mxu0 %v1069
        %1087 = vmatmul.f32.gmra.mxu0 %v1066
        %v1088 = vpop.f32.mrf.mxu0
        %v1089 = vadd.f32 0.0, %v1088
        %1090 = vdwg.mxu0
        %v1091 = vsel %vm799, %v1065, 0
        %v1094 = vsel %vm799, %v1063, 0
        %1096 = vmatpush.xpose.msra.mxu0 0.0
        %1097 = vmatpush.xpose.msra.mxu0 0.0
        %1098 = vmatpush.xpose.msra.mxu0 0.0
        %1099 = vmatpush.xpose.msra.mxu0 0.0
        %1100 = vmatpush.xpose.msra.mxu0 0.0
        %1101 = vmatpush.xpose.msra.mxu0 0.0
        %1102 = vmatpush.xpose.msra.mxu0 0.0
        %1103 = vmatpush.xpose.msra.mxu0 0.0
        %1104 = vmatpush.xpose.msra.mxu0 0.0
        %1105 = vmatpush.xpose.msra.mxu0 0.0
        %1106 = vmatpush.xpose.msra.mxu0 0.0
        %1107 = vmatpush.xpose.msra.mxu0 0.0
        %1108 = vmatpush.xpose.msra.mxu0 0.0
        %1109 = vmatpush.xpose.msra.mxu0 0.0
        %1110 = vmatpush.xpose.msra.mxu0 0.0
        %1111 = vmatpush.xpose.msra.mxu0 %v1094
        %1112 = vmatmul.f32.gmra.mxu0 %v1091
        %v1113 = vpop.f32.mrf.mxu0
        %v1114 = vadd.f32 0.0, %v1113
        %1115 = vdwg.mxu0
        %v1116 = vstv %s900
        %vm1117 = vcmp.lt.s32.totalorder %v899, %v1116
        %v1120 = vrot.slane %v1114, 7
        %v1121 = vsel %vm965, %v1120, %v1089
        %v1123 = vsel %vm1117, %v1121, -1e+30
        %vm1124 = vcmask 58368
        %v1125 = vsel %vm1124, %v1123, -inf
        %1126 = vmax.xlane.f32.xlu0 %v1125
        %v1127 = vpop.xlane.xlu0 %1126
        %v1128 = vsub.f32 %v1123, %v1127
        %v1129 = vmul.f32 %v1128, 1.442695
        %v1130 = vpow.pop %v1129
        %v1131 = vsel %vm1117, %v1130, 0.0
        %v1132 = vsel %vm1124, %v1131, 0.0
        %1133 = vadd.xlane.f32.xlu0 %v1132
        %v1134 = vpop.xlane.xlu0 %1133
        %vm1135 = vcmp.gt.f32.partialorder %v1134, 0.0
        %v1136 = vsel %vm1135, %v1134, 1.0
        %v1137 = vrcp.pop %v1136
        %v1138 = vmul.f32 %v1136, %v1137
        %v1139 = vsub.f32 1.0, %v1138
        %v1140 = vmul.f32 %v1137, %v1139
        %v1141 = vadd.f32 %v1137, %v1140
        %vm1142 = vweird.f32 %v1136
        %vm1143 = vweird.f32 %v1137
        %vm1144 = vmor %vm1142, %vm1143
        %v1145 = vsel %vm1144, %v1137, %v1141
        %v1146 = vand.u32 2147483647, %v1136
        %vm1147 = vcmp.eq.f32.partialorder %v1146, 8.507059e+37
        %v1148 = vand.u32 %v1136, 2147483648
        %v1149 = vor.u32 1.1754944e-38, %v1148
        %v1150 = vsel %vm1147, %v1149, %v1145
        %v1151 = vmul.f32 %v1131, %v1150
        %v1153 = vrot.slane %v1151, 1
        %vm1154 = vcmask 64512
        %v1155 = vsel %vm1154, %v1151, 0
        %1157 = vmatpush.msra.mxu0 0.0
        %1158 = vmatpush.msra.mxu0 0.0
        %1159 = vmatpush.msra.mxu0 0.0
        %1160 = vmatpush.msra.mxu0 0.0
        %1161 = vmatpush.msra.mxu0 0.0
        %1162 = vmatpush.msra.mxu0 0.0
        %1163 = vmatpush.msra.mxu0 0.0
        %1164 = vmatpush.msra.mxu0 0.0
        %1165 = vmatpush.msra.mxu0 0.0
        %1166 = vmatpush.msra.mxu0 0.0
        %1167 = vmatpush.msra.mxu0 0.0
        %1168 = vmatpush.msra.mxu0 0.0
        %1169 = vmatpush.msra.mxu0 0.0
        %1170 = vmatpush.msra.mxu0 0.0
        %1171 = vmatpush.msra.mxu0 0.0
        %1172 = vmatpush.msra.mxu0 %v1062
        %1173 = vmatmul.f32.gmra.mxu0 %v1155
        %v1174 = vpop.f32.mrf.mxu0
        %v1175 = vadd.f32 0.0, %v1174
        %1176 = vdwg.mxu0
        %v1177 = vsel %vm1154, %v1153, 0
        %1179 = vmatpush.msra.mxu0 0.0
        %1180 = vmatpush.msra.mxu0 0.0
        %1181 = vmatpush.msra.mxu0 0.0
        %1182 = vmatpush.msra.mxu0 0.0
        %1183 = vmatpush.msra.mxu0 0.0
        %1184 = vmatpush.msra.mxu0 0.0
        %1185 = vmatpush.msra.mxu0 0.0
        %1186 = vmatpush.msra.mxu0 0.0
        %1187 = vmatpush.msra.mxu0 0.0
        %1188 = vmatpush.msra.mxu0 0.0
        %1189 = vmatpush.msra.mxu0 0.0
        %1190 = vmatpush.msra.mxu0 0.0
        %1191 = vmatpush.msra.mxu0 0.0
        %1192 = vmatpush.msra.mxu0 0.0
        %1193 = vmatpush.msra.mxu0 0.0
        %1194 = vmatpush.msra.mxu0 %v1063
        %1195 = vmatmul.f32.gmra.mxu0 %v1177
        %v1196 = vpop.f32.mrf.mxu0
        %v1197 = vadd.f32 0.0, %v1196
        %1198 = vdwg.mxu0
        %v1199 = vld [vmem:[#allocation7] sm:$0x3]
        %v1200 = vld [vmem:[#allocation20] sm:$0xff]
        %v1201 = vld [vmem:[#allocation20 + $0x8] sm:$0xff]
        %v1204 = vrot.slane %v1197, 7
        %v1205 = vsel %vm965, %v1204, %v1175
        %v1206 = vsel %vm799, %v1205, 0
        %1208 = vmatpush.msra.mxu0 0.0
        %1209 = vmatpush.msra.mxu0 0.0
        %1210 = vmatpush.msra.mxu0 0.0
        %1211 = vmatpush.msra.mxu0 0.0
        %1212 = vmatpush.msra.mxu0 0.0
        %1213 = vmatpush.msra.mxu0 0.0
        %1214 = vmatpush.msra.mxu0 0.0
        %1215 = vmatpush.msra.mxu0 0.0
        %1216 = vmatpush.msra.mxu0 0.0
        %1217 = vmatpush.msra.mxu0 0.0
        %1218 = vmatpush.msra.mxu0 0.0
        %1219 = vmatpush.msra.mxu0 0.0
        %1220 = vmatpush.msra.mxu0 0.0
        %1221 = vmatpush.msra.mxu0 0.0
        %1222 = vmatpush.msra.mxu0 %v1201
        %1223 = vmatpush.msra.mxu0 %v1200
        %1224 = vmatmul.f32.gmra.mxu0 %v1206
        %v1225 = vpop.f32.mrf.mxu0
        %v1226 = vadd.f32 0.0, %v1225
        %1227 = vdwg.mxu0
        %v1228 = vadd.f32 %v1199, %v1226
        %v1229 = vld [vmem:[#allocation21] sm:$0xff]
        %v1230 = vld [vmem:[#allocation21 + $0x8] sm:$0xff]
        %v1231 = vld [vmem:[#allocation24] sm:$0x1]
        %v1233 = vperm.slane %v1231, 0
        %1237 = vst [vmem:[#allocation1] ss:$4 sm:$0xff] %v902
        %s1238 = scalar_lea.vmem [#allocation1], 1
        %1239 = vst [vmem:[%s1238] ss:$4 sm:$0xff] %v903
        %v1240 = vld.sshfl [vmem:[#allocation1] sm:$0xff pattern:$0x73625140]
        %v1241 = vsel %vm799, %v1240, 0
        %1243 = vmatpush.msra.mxu0 0.0
        %1244 = vmatpush.msra.mxu0 0.0
        %1245 = vmatpush.msra.mxu0 0.0
        %1246 = vmatpush.msra.mxu0 0.0
        %1247 = vmatpush.msra.mxu0 0.0
        %1248 = vmatpush.msra.mxu0 0.0
        %1249 = vmatpush.msra.mxu0 0.0
        %1250 = vmatpush.msra.mxu0 0.0
        %1251 = vmatpush.msra.mxu0 0.0
        %1252 = vmatpush.msra.mxu0 0.0
        %1253 = vmatpush.msra.mxu0 0.0
        %1254 = vmatpush.msra.mxu0 0.0
        %1255 = vmatpush.msra.mxu0 0.0
        %1256 = vmatpush.msra.mxu0 0.0
        %1257 = vmatpush.msra.mxu0 %v1230
        %1258 = vmatpush.msra.mxu0 %v1229
        %1259 = vmatmul.f32.gmra.mxu0 %v1241
        %v1260 = vpop.f32.mrf.mxu0
        %v1261 = vadd.f32 %v1233, %v1260
        %1262 = vdwg.mxu0
        %v1264 = vrot.slane %v1228, 1
        %v1265 = vperm.slane %v1228, 0
        %v1266 = vperm.slane %v1264, 0
        %v1270 = vrot.slane %v1261, 2
        %v1272 = vadd.f32 %v1265, %v1261
        %v1273 = vadd.f32 %v1266, %v1270
        %v1274 = vxor.u32 %v1272, 2147483648
        %v1275 = vxor.u32 %v1273, 2147483648
        %v1276 = vmul.f32 %v1274, 1.442695
        %v1277 = vpow.pop %v1276
        %v1278 = vmul.f32 %v1275, 1.442695
        %v1279 = vpow.pop %v1278
        %v1280 = vadd.f32 %v1277, 1.0
        %v1281 = vadd.f32 %v1279, 1.0
        %v1282 = vrcp.pop %v1280
        %v1283 = vmul.f32 %v1280, %v1282
        %v1284 = vsub.f32 1.0, %v1283
        %v1285 = vmul.f32 %v1282, %v1284
        %v1286 = vadd.f32 %v1282, %v1285
        %vm1287 = vweird.f32 %v1280
        %vm1288 = vweird.f32 %v1282
        %vm1289 = vmor %vm1287, %vm1288
        %v1290 = vsel %vm1289, %v1282, %v1286
        %v1291 = vand.u32 2147483647, %v1280
        %vm1292 = vcmp.eq.f32.partialorder %v1291, 8.507059e+37
        %v1293 = vand.u32 %v1280, 2147483648
        %v1294 = vor.u32 1.1754944e-38, %v1293
        %v1295 = vsel %vm1292, %v1294, %v1290
        %v1296 = vmul.f32 1.0, %v1295
        %v1297 = vrcp.pop %v1281
        %v1298 = vmul.f32 %v1281, %v1297
        %v1299 = vsub.f32 1.0, %v1298
        %v1300 = vmul.f32 %v1297, %v1299
        %v1301 = vadd.f32 %v1297, %v1300
        %vm1302 = vweird.f32 %v1281
        %vm1303 = vweird.f32 %v1297
        %vm1304 = vmor %vm1302, %vm1303
        %v1305 = vsel %vm1304, %v1297, %v1301
        %v1306 = vand.u32 2147483647, %v1281
        %vm1307 = vcmp.eq.f32.partialorder %v1306, 8.507059e+37
        %v1308 = vand.u32 %v1281, 2147483648
        %v1309 = vor.u32 1.1754944e-38, %v1308
        %v1310 = vsel %vm1307, %v1309, %v1305
        %v1311 = vmul.f32 1.0, %v1310
        %1312 = vrot.lane.b32.xlu0 %v1261, 96
        %v1313 = vpop.permute.xlu0 %1312
        %1314 = vrot.lane.b32.xlu0 %v1270, 96
        %v1315 = vpop.permute.xlu0 %1314
        %v1318 = vmul.f32 %v1296, %v1313
        %v1319 = vmul.f32 %v1311, %v1315
        %1322 = vrot.lane.b32.xlu0 %v1318, 32
        %v1323 = vpop.permute.xlu0 %1322
        %1324 = vrot.lane.b32.xlu0 %v1319, 32
        %v1325 = vpop.permute.xlu0 %1324
        %v1328 = vadd.f32 %v1265, %v1323
        %v1329 = vadd.f32 %v1266, %v1325
        %v1330 = vtanh.pop %v1328
        %v1331 = vtanh.pop %v1329
        %v1332 = vsub.f32 1.0, %v1296
        %v1333 = vsub.f32 1.0, %v1311
        %1336 = vrot.lane.b32.xlu0 %v1330, 112
        %v1337 = vpop.permute.xlu0 %1336
        %1338 = vrot.lane.b32.xlu0 %v1331, 112
        %v1339 = vpop.permute.xlu0 %1338
        %v1342 = vmul.f32 %v1332, %v1337
        %v1343 = vmul.f32 %v1333, %v1339
        %1344 = vrot.lane.b32.xlu0 %v902, 16
        %v1345 = vpop.permute.xlu0 %1344
        %1346 = vrot.lane.b32.xlu0 %v903, 16
        %v1347 = vpop.permute.xlu0 %1346
        %v1350 = vmul.f32 %v1296, %v1345
        %v1351 = vmul.f32 %v1311, %v1347
        %v1352 = vadd.f32 %v1342, %v1350
        %v1353 = vadd.f32 %v1343, %v1351
        %v1354 = vperm.slane %v901, 0
        %v1355 = vlaneseq
        %v1356 = vshrl.u32 %v1355, 7
        %1358 = vset.pattern.permute.xlu0 %v1356
        %1359 = vperm.xlu0 %1358, %v1354
        %v1360 = vpop.permute.xlu0 %1359
        %v1361 = vperm.slane %v901, 1
        %v1362 = vlaneseq
        %v1363 = vshrl.u32 %v1362, 7
        %1365 = vset.pattern.permute.xlu0 %v1363
        %1366 = vperm.xlu0 %1365, %v1361
        %v1367 = vpop.permute.xlu0 %1366
        %v1368 = vsub.f32 1.0, %v1360
        %v1369 = vsub.f32 1.0, %v1367
        %v1370 = vmul.f32 %v902, %v1368
        %v1371 = vmul.f32 %v903, %v1369
        %v1372 = vmul.f32 %v1352, %v1360
        %v1373 = vmul.f32 %v1353, %v1367
        %1376 = vst [vmem:[#allocation1] ss:$4 sm:$0xff] %v1372
        %v1377 = vld.sshfl [vmem:[#allocation1] sm:$0xff pattern:$0x73625140]
        %s1378 = scalar_lea.vmem [#allocation1], 32
        %1379 = vst [vmem:[%s1378] ss:$4 sm:$0xff] %v1373
        %v1380 = vld.sshfl [vmem:[#allocation1 + $0x20] sm:$0xff pattern:$0x73625140]
        %1381 = vrot.lane.b32.xlu0 %v1377, 112
        %v1382 = vpop.permute.xlu0 %1381
        %1383 = vrot.lane.b32.xlu0 %v1380, 112
        %v1384 = vpop.permute.xlu0 %1383
        %v1387 = vadd.f32 %v1370, %v1382
        %v1388 = vadd.f32 %v1371, %v1384
        %v1389 = vmul.f32 %v935, %v1387
        %v1390 = vmul.f32 %v942, %v1388
        %v1391 = vsel %vm945, %v1389, 0.0
        %v1392 = vrot.slane %v1391, 4
        %v1393 = vadd.f32 %v1391, %v1392
        %v1394 = vrot.slane %v1393, 2
        %v1395 = vadd.f32 %v1393, %v1394
        %v1396 = vrot.slane %v1395, 1
        %v1397 = vadd.f32 %v1395, %v1396
        %v1398 = vsel %vm945, %v1390, 0.0
        %v1399 = vrot.slane %v1398, 4
        %v1400 = vadd.f32 %v1398, %v1399
        %v1401 = vrot.slane %v1400, 2
        %v1402 = vadd.f32 %v1400, %v1401
        %v1403 = vrot.slane %v1402, 1
        %v1404 = vadd.f32 %v1402, %v1403
        %v1407 = vsel %vm965, %v1404, %v1397
        %1409 = vst.msk [vmem:[#allocation8] sm:$0x3] %vm945, %v1407
        %1410 = vst.msk [vmem:[#allocation4] sm:$0x3] %vm945, %v1387
        %1411 = vst.msk [vmem:[#allocation4 + $0x2] sm:$0x3] %vm945, %v1388
        %1413 = vrot.lane.b32.xlu0 %v1060, 112
        %v1414 = vpop.permute.xlu0 %1413
        %1416 = vst.msk [vmem:[#allocation3] sm:$0x3] %vm945, %v1414
        %v1417 = vrot.slane %v1060, 1
        %v1418 = vperm.slane %v1060, 0
        %v1419 = vperm.slane %v1417, 0
        %1420 = vrot.lane.b32.xlu0 %v1418, 112
        %v1421 = vpop.permute.xlu0 %1420
        %1422 = vrot.lane.b32.xlu0 %v1419, 112
        %v1423 = vpop.permute.xlu0 %1422
        %s1426 = scalar_lea.vmem [#allocation2], %s900
        %vm1427 = vcmask 122880
        %1428 = vst.msk [vmem:[%s1426] sm:$0x1] %vm1427, %v1421
        %1429 = vst.msk [vmem:[%s1426 + $0x8] sm:$0x1] %vm1427, %v1423
        %s1430 = sadd.s32 %s900, 1
        %s1431 = scalar_lea.vmem %s767, 2
        %v1432 = vld [vmem:[%s1431] sm:$0x3]
        %v1433 = vld [vmem:[#allocation4] sm:$0x3]
        %v1434 = vld [vmem:[#allocation4 + $0x2] sm:$0x3]
        %v1435 = vld [vmem:[#allocation3] sm:$0x3]
        %v1436 = vsel %vm905, %v1432, -inf
        %1437 = vmax.xlane.f32.xlu0 %v1436
        %v1438 = vpop.xlane.xlu0 %1437
        %vm1439 = vcmp.eq.f32.partialorder %v1432, %v1438
        %v1440 = vsel %vm1439, %v899, 2
        %v1441 = vsel %vm905, %v1440, 2147483647
        %v1442 = vand.u32 %v1441, 65535
        %v1443 = vshra.s32 %v1441, 16
        %v1444 = vcvt.s32.f32 %v1442
        %v1445 = vcvt.s32.f32 %v1443
        %1446 = vmin.xlane.f32.xlu0 %v1445
        %v1447 = vpop.xlane.xlu0 %1446
        %vm1448 = vcmp.eq.f32.partialorder %v1445, %v1447
        %v1449 = vsel %vm1448, %v1444, inf
        %1450 = vmin.xlane.f32.xlu0 %v1449
        %v1451 = vpop.xlane.xlu0 %1450
        %v1452 = vcvt.f32.s32 %v1451
        %v1453 = vcvt.f32.s32 %v1447
        %v1454 = vshll.u32 %v1453, 16
        %v1455 = vadd.s32 %v1454, %v1452
        %vm1456 = vcmp.eq.s32.totalorder %v899, %v1455
        %v1457 = vsel %vm1456, 1, 0
        %v1458 = vcvt.s32.f32 %v1457
        %v1459 = vperm.slane %v1458, 0
        %v1460 = vlaneseq
        %v1461 = vshrl.u32 %v1460, 7
        %1463 = vset.pattern.permute.xlu0 %v1461
        %1464 = vperm.xlu0 %1463, %v1459
        %v1465 = vpop.permute.xlu0 %1464
        %v1466 = vperm.slane %v1458, 1
        %v1467 = vlaneseq
        %v1468 = vshrl.u32 %v1467, 7
        %1470 = vset.pattern.permute.xlu0 %v1468
        %1471 = vperm.xlu0 %1470, %v1466
        %v1472 = vpop.permute.xlu0 %1471
        %v1473 = vmul.f32 %v1465, %v1433
        %v1474 = vmul.f32 %v1472, %v1434
        %v1475 = vsel %vm945, %v1473, 0.0
        %v1476 = vrot.slane %v1475, 4
        %v1477 = vadd.f32 %v1475, %v1476
        %v1478 = vrot.slane %v1477, 2
        %v1479 = vadd.f32 %v1477, %v1478
        %v1480 = vrot.slane %v1479, 1
        %v1481 = vadd.f32 %v1479, %v1480
        %v1482 = vsel %vm945, %v1474, 0.0
        %v1483 = vrot.slane %v1482, 4
        %v1484 = vadd.f32 %v1482, %v1483
        %v1485 = vrot.slane %v1484, 2
        %v1486 = vadd.f32 %v1484, %v1485
        %v1487 = vrot.slane %v1486, 1
        %v1488 = vadd.f32 %v1486, %v1487
        %s1489 = scalar_lea.vmem [#allocation6], 2
        %v1490 = vld [vmem:[%s1489] sm:$0x3]
        %v1491 = vld [vmem:[#allocation12] sm:$0xff]
        %v1492 = vld [vmem:[#allocation12 + $0x8] sm:$0xff]
        %v1495 = vsel %vm965, %v1488, %v1481
        %v1496 = vsel %vm799, %v1495, 0
        %1498 = vmatpush.msra.mxu0 0.0
        %1499 = vmatpush.msra.mxu0 0.0
        %1500 = vmatpush.msra.mxu0 0.0
        %1501 = vmatpush.msra.mxu0 0.0
        %1502 = vmatpush.msra.mxu0 0.0
        %1503 = vmatpush.msra.mxu0 0.0
        %1504 = vmatpush.msra.mxu0 0.0
        %1505 = vmatpush.msra.mxu0 0.0
        %1506 = vmatpush.msra.mxu0 0.0
        %1507 = vmatpush.msra.mxu0 0.0
        %1508 = vmatpush.msra.mxu0 0.0
        %1509 = vmatpush.msra.mxu0 0.0
        %1510 = vmatpush.msra.mxu0 0.0
        %1511 = vmatpush.msra.mxu0 0.0
        %1512 = vmatpush.msra.mxu0 %v1492
        %1513 = vmatpush.msra.mxu0 %v1491
        %1514 = vmatmul.f32.gmra.mxu0 %v1496
        %v1515 = vpop.f32.mrf.mxu0
        %v1516 = vadd.f32 0.0, %v1515
        %1517 = vdwg.mxu0
        %v1518 = vadd.f32 %v1490, %v1516
        %v1519 = vld [vmem:[#allocation14] sm:$0xff]
        %v1520 = vld [vmem:[#allocation14 + $0x8] sm:$0xff]
        %v1521 = vld [vmem:[#allocation17] sm:$0x1]
        %v1523 = vperm.slane %v1521, 0
        %v1526 = vsel %vm799, %v1435, 0
        %1528 = vmatpush.msra.mxu0 0.0
        %1529 = vmatpush.msra.mxu0 0.0
        %1530 = vmatpush.msra.mxu0 0.0
        %1531 = vmatpush.msra.mxu0 0.0
        %1532 = vmatpush.msra.mxu0 0.0
        %1533 = vmatpush.msra.mxu0 0.0
        %1534 = vmatpush.msra.mxu0 0.0
        %1535 = vmatpush.msra.mxu0 0.0
        %1536 = vmatpush.msra.mxu0 0.0
        %1537 = vmatpush.msra.mxu0 0.0
        %1538 = vmatpush.msra.mxu0 0.0
        %1539 = vmatpush.msra.mxu0 0.0
        %1540 = vmatpush.msra.mxu0 0.0
        %1541 = vmatpush.msra.mxu0 0.0
        %1542 = vmatpush.msra.mxu0 %v1520
        %1543 = vmatpush.msra.mxu0 %v1519
        %1544 = vmatmul.f32.gmra.mxu0 %v1526
        %v1545 = vpop.f32.mrf.mxu0
        %v1546 = vadd.f32 %v1523, %v1545
        %1547 = vdwg.mxu0
        %v1548 = vadd.f32 %v1518, %v1546
        %v1549 = vxor.u32 %v1548, 2147483648
        %v1550 = vmul.f32 %v1549, 1.442695
        %v1551 = vpow.pop %v1550
        %v1552 = vadd.f32 %v1551, 1.0
        %v1553 = vrcp.pop %v1552
        %v1554 = vmul.f32 %v1552, %v1553
        %v1555 = vsub.f32 1.0, %v1554
        %v1556 = vmul.f32 %v1553, %v1555
        %v1557 = vadd.f32 %v1553, %v1556
        %vm1558 = vweird.f32 %v1552
        %vm1559 = vweird.f32 %v1553
        %vm1560 = vmor %vm1558, %vm1559
        %v1561 = vsel %vm1560, %v1553, %v1557
        %v1562 = vand.u32 2147483647, %v1552
        %vm1563 = vcmp.eq.f32.partialorder %v1562, 8.507059e+37
        %v1564 = vand.u32 %v1552, 2147483648
        %v1565 = vor.u32 1.1754944e-38, %v1564
        %v1566 = vsel %vm1563, %v1565, %v1561
        %v1567 = vmul.f32 1.0, %v1566
        %1569 = vrot.lane.b32.xlu0 %v1546, 96
        %v1570 = vpop.permute.xlu0 %1569
        %v1572 = vmul.f32 %v1567, %v1570
        %1574 = vrot.lane.b32.xlu0 %v1572, 32
        %v1575 = vpop.permute.xlu0 %1574
        %v1577 = vadd.f32 %v1518, %v1575
        %v1578 = vtanh.pop %v1577
        %v1579 = vsub.f32 1.0, %v1567
        %1581 = vrot.lane.b32.xlu0 %v1578, 112
        %v1582 = vpop.permute.xlu0 %1581
        %v1584 = vmul.f32 %v1579, %v1582
        %1585 = vrot.lane.b32.xlu0 %v1435, 16
        %v1586 = vpop.permute.xlu0 %1585
        %v1588 = vmul.f32 %v1567, %v1586
        %v1589 = vadd.f32 %v1584, %v1588
        %s1590 = scalar_lea.vmem [#allocation5], 2
        %v1591 = vld [vmem:[%s1590] sm:$0x3]
        %v1592 = vld [vmem:[#allocation2] sm:$0xff]
        %v1593 = vld [vmem:[#allocation2 + $0x8] sm:$0xff]
        %v1595 = vrot.slane %v1591, 1
        %v1596 = vsel %vm799, %v1591, 0
        %v1599 = vsel %vm799, %v1592, 0
        %1601 = vmatpush.xpose.msra.mxu0 0.0
        %1602 = vmatpush.xpose.msra.mxu0 0.0
        %1603 = vmatpush.xpose.msra.mxu0 0.0
        %1604 = vmatpush.xpose.msra.mxu0 0.0
        %1605 = vmatpush.xpose.msra.mxu0 0.0
        %1606 = vmatpush.xpose.msra.mxu0 0.0
        %1607 = vmatpush.xpose.msra.mxu0 0.0
        %1608 = vmatpush.xpose.msra.mxu0 0.0
        %1609 = vmatpush.xpose.msra.mxu0 0.0
        %1610 = vmatpush.xpose.msra.mxu0 0.0
        %1611 = vmatpush.xpose.msra.mxu0 0.0
        %1612 = vmatpush.xpose.msra.mxu0 0.0
        %1613 = vmatpush.xpose.msra.mxu0 0.0
        %1614 = vmatpush.xpose.msra.mxu0 0.0
        %1615 = vmatpush.xpose.msra.mxu0 0.0
        %1616 = vmatpush.xpose.msra.mxu0 %v1599
        %1617 = vmatmul.f32.gmra.mxu0 %v1596
        %v1618 = vpop.f32.mrf.mxu0
        %v1619 = vadd.f32 0.0, %v1618
        %1620 = vdwg.mxu0
        %v1621 = vsel %vm799, %v1595, 0
        %v1624 = vsel %vm799, %v1593, 0
        %1626 = vmatpush.xpose.msra.mxu0 0.0
        %1627 = vmatpush.xpose.msra.mxu0 0.0
        %1628 = vmatpush.xpose.msra.mxu0 0.0
        %1629 = vmatpush.xpose.msra.mxu0 0.0
        %1630 = vmatpush.xpose.msra.mxu0 0.0
        %1631 = vmatpush.xpose.msra.mxu0 0.0
        %1632 = vmatpush.xpose.msra.mxu0 0.0
        %1633 = vmatpush.xpose.msra.mxu0 0.0
        %1634 = vmatpush.xpose.msra.mxu0 0.0
        %1635 = vmatpush.xpose.msra.mxu0 0.0
        %1636 = vmatpush.xpose.msra.mxu0 0.0
        %1637 = vmatpush.xpose.msra.mxu0 0.0
        %1638 = vmatpush.xpose.msra.mxu0 0.0
        %1639 = vmatpush.xpose.msra.mxu0 0.0
        %1640 = vmatpush.xpose.msra.mxu0 0.0
        %1641 = vmatpush.xpose.msra.mxu0 %v1624
        %1642 = vmatmul.f32.gmra.mxu0 %v1621
        %v1643 = vpop.f32.mrf.mxu0
        %v1644 = vadd.f32 0.0, %v1643
        %1645 = vdwg.mxu0
        %v1646 = vstv %s1430
        %vm1647 = vcmp.lt.s32.totalorder %v899, %v1646
        %v1650 = vrot.slane %v1644, 7
        %v1651 = vsel %vm965, %v1650, %v1619
        %v1653 = vsel %vm1647, %v1651, -1e+30
        %v1654 = vsel %vm1124, %v1653, -inf
        %1655 = vmax.xlane.f32.xlu0 %v1654
        %v1656 = vpop.xlane.xlu0 %1655
        %v1657 = vsub.f32 %v1653, %v1656
        %v1658 = vmul.f32 %v1657, 1.442695
        %v1659 = vpow.pop %v1658
        %v1660 = vsel %vm1647, %v1659, 0.0
        %v1661 = vsel %vm1124, %v1660, 0.0
        %1662 = vadd.xlane.f32.xlu0 %v1661
        %v1663 = vpop.xlane.xlu0 %1662
        %vm1664 = vcmp.gt.f32.partialorder %v1663, 0.0
        %v1665 = vsel %vm1664, %v1663, 1.0
        %v1666 = vrcp.pop %v1665
        %v1667 = vmul.f32 %v1665, %v1666
        %v1668 = vsub.f32 1.0, %v1667
        %v1669 = vmul.f32 %v1666, %v1668
        %v1670 = vadd.f32 %v1666, %v1669
        %vm1671 = vweird.f32 %v1665
        %vm1672 = vweird.f32 %v1666
        %vm1673 = vmor %vm1671, %vm1672
        %v1674 = vsel %vm1673, %v1666, %v1670
        %v1675 = vand.u32 2147483647, %v1665
        %vm1676 = vcmp.eq.f32.partialorder %v1675, 8.507059e+37
        %v1677 = vand.u32 %v1665, 2147483648
        %v1678 = vor.u32 1.1754944e-38, %v1677
        %v1679 = vsel %vm1676, %v1678, %v1674
        %v1680 = vmul.f32 %v1660, %v1679
        %v1682 = vrot.slane %v1680, 1
        %v1683 = vsel %vm1154, %v1680, 0
        %1685 = vmatpush.msra.mxu0 0.0
        %1686 = vmatpush.msra.mxu0 0.0
        %1687 = vmatpush.msra.mxu0 0.0
        %1688 = vmatpush.msra.mxu0 0.0
        %1689 = vmatpush.msra.mxu0 0.0
        %1690 = vmatpush.msra.mxu0 0.0
        %1691 = vmatpush.msra.mxu0 0.0
        %1692 = vmatpush.msra.mxu0 0.0
        %1693 = vmatpush.msra.mxu0 0.0
        %1694 = vmatpush.msra.mxu0 0.0
        %1695 = vmatpush.msra.mxu0 0.0
        %1696 = vmatpush.msra.mxu0 0.0
        %1697 = vmatpush.msra.mxu0 0.0
        %1698 = vmatpush.msra.mxu0 0.0
        %1699 = vmatpush.msra.mxu0 0.0
        %1700 = vmatpush.msra.mxu0 %v1592
        %1701 = vmatmul.f32.gmra.mxu0 %v1683
        %v1702 = vpop.f32.mrf.mxu0
        %v1703 = vadd.f32 0.0, %v1702
        %1704 = vdwg.mxu0
        %v1705 = vsel %vm1154, %v1682, 0
        %1707 = vmatpush.msra.mxu0 0.0
        %1708 = vmatpush.msra.mxu0 0.0
        %1709 = vmatpush.msra.mxu0 0.0
        %1710 = vmatpush.msra.mxu0 0.0
        %1711 = vmatpush.msra.mxu0 0.0
        %1712 = vmatpush.msra.mxu0 0.0
        %1713 = vmatpush.msra.mxu0 0.0
        %1714 = vmatpush.msra.mxu0 0.0
        %1715 = vmatpush.msra.mxu0 0.0
        %1716 = vmatpush.msra.mxu0 0.0
        %1717 = vmatpush.msra.mxu0 0.0
        %1718 = vmatpush.msra.mxu0 0.0
        %1719 = vmatpush.msra.mxu0 0.0
        %1720 = vmatpush.msra.mxu0 0.0
        %1721 = vmatpush.msra.mxu0 0.0
        %1722 = vmatpush.msra.mxu0 %v1593
        %1723 = vmatmul.f32.gmra.mxu0 %v1705
        %v1724 = vpop.f32.mrf.mxu0
        %v1725 = vadd.f32 0.0, %v1724
        %1726 = vdwg.mxu0
        %s1727 = scalar_lea.vmem [#allocation7], 2
        %v1728 = vld [vmem:[%s1727] sm:$0x3]
        %v1729 = vld [vmem:[#allocation20] sm:$0xff]
        %v1730 = vld [vmem:[#allocation20 + $0x8] sm:$0xff]
        %v1733 = vrot.slane %v1725, 7
        %v1734 = vsel %vm965, %v1733, %v1703
        %v1735 = vsel %vm799, %v1734, 0
        %1737 = vmatpush.msra.mxu0 0.0
        %1738 = vmatpush.msra.mxu0 0.0
        %1739 = vmatpush.msra.mxu0 0.0
        %1740 = vmatpush.msra.mxu0 0.0
        %1741 = vmatpush.msra.mxu0 0.0
        %1742 = vmatpush.msra.mxu0 0.0
        %1743 = vmatpush.msra.mxu0 0.0
        %1744 = vmatpush.msra.mxu0 0.0
        %1745 = vmatpush.msra.mxu0 0.0
        %1746 = vmatpush.msra.mxu0 0.0
        %1747 = vmatpush.msra.mxu0 0.0
        %1748 = vmatpush.msra.mxu0 0.0
        %1749 = vmatpush.msra.mxu0 0.0
        %1750 = vmatpush.msra.mxu0 0.0
        %1751 = vmatpush.msra.mxu0 %v1730
        %1752 = vmatpush.msra.mxu0 %v1729
        %1753 = vmatmul.f32.gmra.mxu0 %v1735
        %v1754 = vpop.f32.mrf.mxu0
        %v1755 = vadd.f32 0.0, %v1754
        %1756 = vdwg.mxu0
        %v1757 = vadd.f32 %v1728, %v1755
        %v1758 = vld [vmem:[#allocation21] sm:$0xff]
        %v1759 = vld [vmem:[#allocation21 + $0x8] sm:$0xff]
        %v1760 = vld [vmem:[#allocation24] sm:$0x1]
        %v1762 = vperm.slane %v1760, 0
        %1766 = vst [vmem:[#allocation1] ss:$4 sm:$0xff] %v1433
        %s1767 = scalar_lea.vmem [#allocation1], 1
        %1768 = vst [vmem:[%s1767] ss:$4 sm:$0xff] %v1434
        %v1769 = vld.sshfl [vmem:[#allocation1] sm:$0xff pattern:$0x73625140]
        %v1770 = vsel %vm799, %v1769, 0
        %1772 = vmatpush.msra.mxu0 0.0
        %1773 = vmatpush.msra.mxu0 0.0
        %1774 = vmatpush.msra.mxu0 0.0
        %1775 = vmatpush.msra.mxu0 0.0
        %1776 = vmatpush.msra.mxu0 0.0
        %1777 = vmatpush.msra.mxu0 0.0
        %1778 = vmatpush.msra.mxu0 0.0
        %1779 = vmatpush.msra.mxu0 0.0
        %1780 = vmatpush.msra.mxu0 0.0
        %1781 = vmatpush.msra.mxu0 0.0
        %1782 = vmatpush.msra.mxu0 0.0
        %1783 = vmatpush.msra.mxu0 0.0
        %1784 = vmatpush.msra.mxu0 0.0
        %1785 = vmatpush.msra.mxu0 0.0
        %1786 = vmatpush.msra.mxu0 %v1759
        %1787 = vmatpush.msra.mxu0 %v1758
        %1788 = vmatmul.f32.gmra.mxu0 %v1770
        %v1789 = vpop.f32.mrf.mxu0
        %v1790 = vadd.f32 %v1762, %v1789
        %1791 = vdwg.mxu0
        %v1793 = vrot.slane %v1757, 1
        %v1794 = vperm.slane %v1757, 0
        %v1795 = vperm.slane %v1793, 0
        %v1799 = vrot.slane %v1790, 2
        %v1801 = vadd.f32 %v1794, %v1790
        %v1802 = vadd.f32 %v1795, %v1799
        %v1803 = vxor.u32 %v1801, 2147483648
        %v1804 = vxor.u32 %v1802, 2147483648
        %v1805 = vmul.f32 %v1803, 1.442695
        %v1806 = vpow.pop %v1805
        %v1807 = vmul.f32 %v1804, 1.442695
        %v1808 = vpow.pop %v1807
        %v1809 = vadd.f32 %v1806, 1.0
        %v1810 = vadd.f32 %v1808, 1.0
        %v1811 = vrcp.pop %v1809
        %v1812 = vmul.f32 %v1809, %v1811
        %v1813 = vsub.f32 1.0, %v1812
        %v1814 = vmul.f32 %v1811, %v1813
        %v1815 = vadd.f32 %v1811, %v1814
        %vm1816 = vweird.f32 %v1809
        %vm1817 = vweird.f32 %v1811
        %vm1818 = vmor %vm1816, %vm1817
        %v1819 = vsel %vm1818, %v1811, %v1815
        %v1820 = vand.u32 2147483647, %v1809
        %vm1821 = vcmp.eq.f32.partialorder %v1820, 8.507059e+37
        %v1822 = vand.u32 %v1809, 2147483648
        %v1823 = vor.u32 1.1754944e-38, %v1822
        %v1824 = vsel %vm1821, %v1823, %v1819
        %v1825 = vmul.f32 1.0, %v1824
        %v1826 = vrcp.pop %v1810
        %v1827 = vmul.f32 %v1810, %v1826
        %v1828 = vsub.f32 1.0, %v1827
        %v1829 = vmul.f32 %v1826, %v1828
        %v1830 = vadd.f32 %v1826, %v1829
        %vm1831 = vweird.f32 %v1810
        %vm1832 = vweird.f32 %v1826
        %vm1833 = vmor %vm1831, %vm1832
        %v1834 = vsel %vm1833, %v1826, %v1830
        %v1835 = vand.u32 2147483647, %v1810
        %vm1836 = vcmp.eq.f32.partialorder %v1835, 8.507059e+37
        %v1837 = vand.u32 %v1810, 2147483648
        %v1838 = vor.u32 1.1754944e-38, %v1837
        %v1839 = vsel %vm1836, %v1838, %v1834
        %v1840 = vmul.f32 1.0, %v1839
        %1841 = vrot.lane.b32.xlu0 %v1790, 96
        %v1842 = vpop.permute.xlu0 %1841
        %1843 = vrot.lane.b32.xlu0 %v1799, 96
        %v1844 = vpop.permute.xlu0 %1843
        %v1847 = vmul.f32 %v1825, %v1842
        %v1848 = vmul.f32 %v1840, %v1844
        %1851 = vrot.lane.b32.xlu0 %v1847, 32
        %v1852 = vpop.permute.xlu0 %1851
        %1853 = vrot.lane.b32.xlu0 %v1848, 32
        %v1854 = vpop.permute.xlu0 %1853
        %v1857 = vadd.f32 %v1794, %v1852
        %v1858 = vadd.f32 %v1795, %v1854
        %v1859 = vtanh.pop %v1857
        %v1860 = vtanh.pop %v1858
        %v1861 = vsub.f32 1.0, %v1825
        %v1862 = vsub.f32 1.0, %v1840
        %1865 = vrot.lane.b32.xlu0 %v1859, 112
        %v1866 = vpop.permute.xlu0 %1865
        %1867 = vrot.lane.b32.xlu0 %v1860, 112
        %v1868 = vpop.permute.xlu0 %1867
        %v1871 = vmul.f32 %v1861, %v1866
        %v1872 = vmul.f32 %v1862, %v1868
        %1873 = vrot.lane.b32.xlu0 %v1433, 16
        %v1874 = vpop.permute.xlu0 %1873
        %1875 = vrot.lane.b32.xlu0 %v1434, 16
        %v1876 = vpop.permute.xlu0 %1875
        %v1879 = vmul.f32 %v1825, %v1874
        %v1880 = vmul.f32 %v1840, %v1876
        %v1881 = vadd.f32 %v1871, %v1879
        %v1882 = vadd.f32 %v1872, %v1880
        %v1883 = vperm.slane %v1432, 0
        %v1884 = vlaneseq
        %v1885 = vshrl.u32 %v1884, 7
        %1887 = vset.pattern.permute.xlu0 %v1885
        %1888 = vperm.xlu0 %1887, %v1883
        %v1889 = vpop.permute.xlu0 %1888
        %v1890 = vperm.slane %v1432, 1
        %v1891 = vlaneseq
        %v1892 = vshrl.u32 %v1891, 7
        %1894 = vset.pattern.permute.xlu0 %v1892
        %1895 = vperm.xlu0 %1894, %v1890
        %v1896 = vpop.permute.xlu0 %1895
        %v1897 = vsub.f32 1.0, %v1889
        %v1898 = vsub.f32 1.0, %v1896
        %v1899 = vmul.f32 %v1433, %v1897
        %v1900 = vmul.f32 %v1434, %v1898
        %v1901 = vmul.f32 %v1881, %v1889
        %v1902 = vmul.f32 %v1882, %v1896
        %1905 = vst [vmem:[#allocation1] ss:$4 sm:$0xff] %v1901
        %v1906 = vld.sshfl [vmem:[#allocation1] sm:$0xff pattern:$0x73625140]
        %s1907 = scalar_lea.vmem [#allocation1], 32
        %1908 = vst [vmem:[%s1907] ss:$4 sm:$0xff] %v1902
        %v1909 = vld.sshfl [vmem:[#allocation1 + $0x20] sm:$0xff pattern:$0x73625140]
        %1910 = vrot.lane.b32.xlu0 %v1906, 112
        %v1911 = vpop.permute.xlu0 %1910
        %1912 = vrot.lane.b32.xlu0 %v1909, 112
        %v1913 = vpop.permute.xlu0 %1912
        %v1916 = vadd.f32 %v1899, %v1911
        %v1917 = vadd.f32 %v1900, %v1913
        %v1918 = vmul.f32 %v1465, %v1916
        %v1919 = vmul.f32 %v1472, %v1917
        %v1920 = vsel %vm945, %v1918, 0.0
        %v1921 = vrot.slane %v1920, 4
        %v1922 = vadd.f32 %v1920, %v1921
        %v1923 = vrot.slane %v1922, 2
        %v1924 = vadd.f32 %v1922, %v1923
        %v1925 = vrot.slane %v1924, 1
        %v1926 = vadd.f32 %v1924, %v1925
        %v1927 = vsel %vm945, %v1919, 0.0
        %v1928 = vrot.slane %v1927, 4
        %v1929 = vadd.f32 %v1927, %v1928
        %v1930 = vrot.slane %v1929, 2
        %v1931 = vadd.f32 %v1929, %v1930
        %v1932 = vrot.slane %v1931, 1
        %v1933 = vadd.f32 %v1931, %v1932
        %v1936 = vsel %vm965, %v1933, %v1926
        %s1938 = scalar_lea.vmem [#allocation8], 2
        %1939 = vst.msk [vmem:[%s1938] sm:$0x3] %vm945, %v1936
        %1940 = vst.msk [vmem:[#allocation4] sm:$0x3] %vm945, %v1916
        %1941 = vst.msk [vmem:[#allocation4 + $0x2] sm:$0x3] %vm945, %v1917
        %1943 = vrot.lane.b32.xlu0 %v1589, 112
        %v1944 = vpop.permute.xlu0 %1943
        %1946 = vst.msk [vmem:[#allocation3] sm:$0x3] %vm945, %v1944
        %v1947 = vrot.slane %v1589, 1
        %v1948 = vperm.slane %v1589, 0
        %v1949 = vperm.slane %v1947, 0
        %1950 = vrot.lane.b32.xlu0 %v1948, 112
        %v1951 = vpop.permute.xlu0 %1950
        %1952 = vrot.lane.b32.xlu0 %v1949, 112
        %v1953 = vpop.permute.xlu0 %1952
        %s1956 = scalar_lea.vmem [#allocation2], %s1430
        %1957 = vst.msk [vmem:[%s1956] sm:$0x1] %vm1427, %v1951
        %1958 = vst.msk [vmem:[%s1956 + $0x8] sm:$0x1] %vm1427, %v1953
        %s1959 = sadd.s32 %s900, 2
        %s1960 = scalar_lea.vmem %s767, 4
        %v1961 = vld [vmem:[%s1960] sm:$0x3]
        %v1962 = vld [vmem:[#allocation4] sm:$0x3]
        %v1963 = vld [vmem:[#allocation4 + $0x2] sm:$0x3]
        %v1964 = vld [vmem:[#allocation3] sm:$0x3]
        %v1965 = vsel %vm905, %v1961, -inf
        %1966 = vmax.xlane.f32.xlu0 %v1965
        %v1967 = vpop.xlane.xlu0 %1966
        %vm1968 = vcmp.eq.f32.partialorder %v1961, %v1967
        %v1969 = vsel %vm1968, %v899, 2
        %v1970 = vsel %vm905, %v1969, 2147483647
        %v1971 = vand.u32 %v1970, 65535
        %v1972 = vshra.s32 %v1970, 16
        %v1973 = vcvt.s32.f32 %v1971
        %v1974 = vcvt.s32.f32 %v1972
        %1975 = vmin.xlane.f32.xlu0 %v1974
        %v1976 = vpop.xlane.xlu0 %1975
        %vm1977 = vcmp.eq.f32.partialorder %v1974, %v1976
        %v1978 = vsel %vm1977, %v1973, inf
        %1979 = vmin.xlane.f32.xlu0 %v1978
        %v1980 = vpop.xlane.xlu0 %1979
        %v1981 = vcvt.f32.s32 %v1980
        %v1982 = vcvt.f32.s32 %v1976
        %v1983 = vshll.u32 %v1982, 16
        %v1984 = vadd.s32 %v1983, %v1981
        %vm1985 = vcmp.eq.s32.totalorder %v899, %v1984
        %v1986 = vsel %vm1985, 1, 0
        %v1987 = vcvt.s32.f32 %v1986
        %v1988 = vperm.slane %v1987, 0
        %v1989 = vlaneseq
        %v1990 = vshrl.u32 %v1989, 7
        %1992 = vset.pattern.permute.xlu0 %v1990
        %1993 = vperm.xlu0 %1992, %v1988
        %v1994 = vpop.permute.xlu0 %1993
        %v1995 = vperm.slane %v1987, 1
        %v1996 = vlaneseq
        %v1997 = vshrl.u32 %v1996, 7
        %1999 = vset.pattern.permute.xlu0 %v1997
        %2000 = vperm.xlu0 %1999, %v1995
        %v2001 = vpop.permute.xlu0 %2000
        %v2002 = vmul.f32 %v1994, %v1962
        %v2003 = vmul.f32 %v2001, %v1963
        %v2004 = vsel %vm945, %v2002, 0.0
        %v2005 = vrot.slane %v2004, 4
        %v2006 = vadd.f32 %v2004, %v2005
        %v2007 = vrot.slane %v2006, 2
        %v2008 = vadd.f32 %v2006, %v2007
        %v2009 = vrot.slane %v2008, 1
        %v2010 = vadd.f32 %v2008, %v2009
        %v2011 = vsel %vm945, %v2003, 0.0
        %v2012 = vrot.slane %v2011, 4
        %v2013 = vadd.f32 %v2011, %v2012
        %v2014 = vrot.slane %v2013, 2
        %v2015 = vadd.f32 %v2013, %v2014
        %v2016 = vrot.slane %v2015, 1
        %v2017 = vadd.f32 %v2015, %v2016
        %s2018 = scalar_lea.vmem [#allocation6], 4
        %v2019 = vld [vmem:[%s2018] sm:$0x3]
        %v2020 = vld [vmem:[#allocation12] sm:$0xff]
        %v2021 = vld [vmem:[#allocation12 + $0x8] sm:$0xff]
        %v2024 = vsel %vm965, %v2017, %v2010
        %v2025 = vsel %vm799, %v2024, 0
        %2027 = vmatpush.msra.mxu0 0.0
        %2028 = vmatpush.msra.mxu0 0.0
        %2029 = vmatpush.msra.mxu0 0.0
        %2030 = vmatpush.msra.mxu0 0.0
        %2031 = vmatpush.msra.mxu0 0.0
        %2032 = vmatpush.msra.mxu0 0.0
        %2033 = vmatpush.msra.mxu0 0.0
        %2034 = vmatpush.msra.mxu0 0.0
        %2035 = vmatpush.msra.mxu0 0.0
        %2036 = vmatpush.msra.mxu0 0.0
        %2037 = vmatpush.msra.mxu0 0.0
        %2038 = vmatpush.msra.mxu0 0.0
        %2039 = vmatpush.msra.mxu0 0.0
        %2040 = vmatpush.msra.mxu0 0.0
        %2041 = vmatpush.msra.mxu0 %v2021
        %2042 = vmatpush.msra.mxu0 %v2020
        %2043 = vmatmul.f32.gmra.mxu0 %v2025
        %v2044 = vpop.f32.mrf.mxu0
        %v2045 = vadd.f32 0.0, %v2044
        %2046 = vdwg.mxu0
        %v2047 = vadd.f32 %v2019, %v2045
        %v2048 = vld [vmem:[#allocation14] sm:$0xff]
        %v2049 = vld [vmem:[#allocation14 + $0x8] sm:$0xff]
        %v2050 = vld [vmem:[#allocation17] sm:$0x1]
        %v2052 = vperm.slane %v2050, 0
        %v2055 = vsel %vm799, %v1964, 0
        %2057 = vmatpush.msra.mxu0 0.0
        %2058 = vmatpush.msra.mxu0 0.0
        %2059 = vmatpush.msra.mxu0 0.0
        %2060 = vmatpush.msra.mxu0 0.0
        %2061 = vmatpush.msra.mxu0 0.0
        %2062 = vmatpush.msra.mxu0 0.0
        %2063 = vmatpush.msra.mxu0 0.0
        %2064 = vmatpush.msra.mxu0 0.0
        %2065 = vmatpush.msra.mxu0 0.0
        %2066 = vmatpush.msra.mxu0 0.0
        %2067 = vmatpush.msra.mxu0 0.0
        %2068 = vmatpush.msra.mxu0 0.0
        %2069 = vmatpush.msra.mxu0 0.0
        %2070 = vmatpush.msra.mxu0 0.0
        %2071 = vmatpush.msra.mxu0 %v2049
        %2072 = vmatpush.msra.mxu0 %v2048
        %2073 = vmatmul.f32.gmra.mxu0 %v2055
        %v2074 = vpop.f32.mrf.mxu0
        %v2075 = vadd.f32 %v2052, %v2074
        %2076 = vdwg.mxu0
        %v2077 = vadd.f32 %v2047, %v2075
        %v2078 = vxor.u32 %v2077, 2147483648
        %v2079 = vmul.f32 %v2078, 1.442695
        %v2080 = vpow.pop %v2079
        %v2081 = vadd.f32 %v2080, 1.0
        %v2082 = vrcp.pop %v2081
        %v2083 = vmul.f32 %v2081, %v2082
        %v2084 = vsub.f32 1.0, %v2083
        %v2085 = vmul.f32 %v2082, %v2084
        %v2086 = vadd.f32 %v2082, %v2085
        %vm2087 = vweird.f32 %v2081
        %vm2088 = vweird.f32 %v2082
        %vm2089 = vmor %vm2087, %vm2088
        %v2090 = vsel %vm2089, %v2082, %v2086
        %v2091 = vand.u32 2147483647, %v2081
        %vm2092 = vcmp.eq.f32.partialorder %v2091, 8.507059e+37
        %v2093 = vand.u32 %v2081, 2147483648
        %v2094 = vor.u32 1.1754944e-38, %v2093
        %v2095 = vsel %vm2092, %v2094, %v2090
        %v2096 = vmul.f32 1.0, %v2095
        %2098 = vrot.lane.b32.xlu0 %v2075, 96
        %v2099 = vpop.permute.xlu0 %2098
        %v2101 = vmul.f32 %v2096, %v2099
        %2103 = vrot.lane.b32.xlu0 %v2101, 32
        %v2104 = vpop.permute.xlu0 %2103
        %v2106 = vadd.f32 %v2047, %v2104
        %v2107 = vtanh.pop %v2106
        %v2108 = vsub.f32 1.0, %v2096
        %2110 = vrot.lane.b32.xlu0 %v2107, 112
        %v2111 = vpop.permute.xlu0 %2110
        %v2113 = vmul.f32 %v2108, %v2111
        %2114 = vrot.lane.b32.xlu0 %v1964, 16
        %v2115 = vpop.permute.xlu0 %2114
        %v2117 = vmul.f32 %v2096, %v2115
        %v2118 = vadd.f32 %v2113, %v2117
        %s2119 = scalar_lea.vmem [#allocation5], 4
        %v2120 = vld [vmem:[%s2119] sm:$0x3]
        %v2121 = vld [vmem:[#allocation2] sm:$0xff]
        %v2122 = vld [vmem:[#allocation2 + $0x8] sm:$0xff]
        %v2124 = vrot.slane %v2120, 1
        %v2125 = vsel %vm799, %v2120, 0
        %v2128 = vsel %vm799, %v2121, 0
        %2130 = vmatpush.xpose.msra.mxu0 0.0
        %2131 = vmatpush.xpose.msra.mxu0 0.0
        %2132 = vmatpush.xpose.msra.mxu0 0.0
        %2133 = vmatpush.xpose.msra.mxu0 0.0
        %2134 = vmatpush.xpose.msra.mxu0 0.0
        %2135 = vmatpush.xpose.msra.mxu0 0.0
        %2136 = vmatpush.xpose.msra.mxu0 0.0
        %2137 = vmatpush.xpose.msra.mxu0 0.0
        %2138 = vmatpush.xpose.msra.mxu0 0.0
        %2139 = vmatpush.xpose.msra.mxu0 0.0
        %2140 = vmatpush.xpose.msra.mxu0 0.0
        %2141 = vmatpush.xpose.msra.mxu0 0.0
        %2142 = vmatpush.xpose.msra.mxu0 0.0
        %2143 = vmatpush.xpose.msra.mxu0 0.0
        %2144 = vmatpush.xpose.msra.mxu0 0.0
        %2145 = vmatpush.xpose.msra.mxu0 %v2128
        %2146 = vmatmul.f32.gmra.mxu0 %v2125
        %v2147 = vpop.f32.mrf.mxu0
        %v2148 = vadd.f32 0.0, %v2147
        %2149 = vdwg.mxu0
        %v2150 = vsel %vm799, %v2124, 0
        %v2153 = vsel %vm799, %v2122, 0
        %2155 = vmatpush.xpose.msra.mxu0 0.0
        %2156 = vmatpush.xpose.msra.mxu0 0.0
        %2157 = vmatpush.xpose.msra.mxu0 0.0
        %2158 = vmatpush.xpose.msra.mxu0 0.0
        %2159 = vmatpush.xpose.msra.mxu0 0.0
        %2160 = vmatpush.xpose.msra.mxu0 0.0
        %2161 = vmatpush.xpose.msra.mxu0 0.0
        %2162 = vmatpush.xpose.msra.mxu0 0.0
        %2163 = vmatpush.xpose.msra.mxu0 0.0
        %2164 = vmatpush.xpose.msra.mxu0 0.0
        %2165 = vmatpush.xpose.msra.mxu0 0.0
        %2166 = vmatpush.xpose.msra.mxu0 0.0
        %2167 = vmatpush.xpose.msra.mxu0 0.0
        %2168 = vmatpush.xpose.msra.mxu0 0.0
        %2169 = vmatpush.xpose.msra.mxu0 0.0
        %2170 = vmatpush.xpose.msra.mxu0 %v2153
        %2171 = vmatmul.f32.gmra.mxu0 %v2150
        %v2172 = vpop.f32.mrf.mxu0
        %v2173 = vadd.f32 0.0, %v2172
        %2174 = vdwg.mxu0
        %v2175 = vstv %s1959
        %vm2176 = vcmp.lt.s32.totalorder %v899, %v2175
        %v2179 = vrot.slane %v2173, 7
        %v2180 = vsel %vm965, %v2179, %v2148
        %v2182 = vsel %vm2176, %v2180, -1e+30
        %v2183 = vsel %vm1124, %v2182, -inf
        %2184 = vmax.xlane.f32.xlu0 %v2183
        %v2185 = vpop.xlane.xlu0 %2184
        %v2186 = vsub.f32 %v2182, %v2185
        %v2187 = vmul.f32 %v2186, 1.442695
        %v2188 = vpow.pop %v2187
        %v2189 = vsel %vm2176, %v2188, 0.0
        %v2190 = vsel %vm1124, %v2189, 0.0
        %2191 = vadd.xlane.f32.xlu0 %v2190
        %v2192 = vpop.xlane.xlu0 %2191
        %vm2193 = vcmp.gt.f32.partialorder %v2192, 0.0
        %v2194 = vsel %vm2193, %v2192, 1.0
        %v2195 = vrcp.pop %v2194
        %v2196 = vmul.f32 %v2194, %v2195
        %v2197 = vsub.f32 1.0, %v2196
        %v2198 = vmul.f32 %v2195, %v2197
        %v2199 = vadd.f32 %v2195, %v2198
        %vm2200 = vweird.f32 %v2194
        %vm2201 = vweird.f32 %v2195
        %vm2202 = vmor %vm2200, %vm2201
        %v2203 = vsel %vm2202, %v2195, %v2199
        %v2204 = vand.u32 2147483647, %v2194
        %vm2205 = vcmp.eq.f32.partialorder %v2204, 8.507059e+37
        %v2206 = vand.u32 %v2194, 2147483648
        %v2207 = vor.u32 1.1754944e-38, %v2206
        %v2208 = vsel %vm2205, %v2207, %v2203
        %v2209 = vmul.f32 %v2189, %v2208
        %v2211 = vrot.slane %v2209, 1
        %v2212 = vsel %vm1154, %v2209, 0
        %2214 = vmatpush.msra.mxu0 0.0
        %2215 = vmatpush.msra.mxu0 0.0
        %2216 = vmatpush.msra.mxu0 0.0
        %2217 = vmatpush.msra.mxu0 0.0
        %2218 = vmatpush.msra.mxu0 0.0
        %2219 = vmatpush.msra.mxu0 0.0
        %2220 = vmatpush.msra.mxu0 0.0
        %2221 = vmatpush.msra.mxu0 0.0
        %2222 = vmatpush.msra.mxu0 0.0
        %2223 = vmatpush.msra.mxu0 0.0
        %2224 = vmatpush.msra.mxu0 0.0
        %2225 = vmatpush.msra.mxu0 0.0
        %2226 = vmatpush.msra.mxu0 0.0
        %2227 = vmatpush.msra.mxu0 0.0
        %2228 = vmatpush.msra.mxu0 0.0
        %2229 = vmatpush.msra.mxu0 %v2121
        %2230 = vmatmul.f32.gmra.mxu0 %v2212
        %v2231 = vpop.f32.mrf.mxu0
        %v2232 = vadd.f32 0.0, %v2231
        %2233 = vdwg.mxu0
        %v2234 = vsel %vm1154, %v2211, 0
        %2236 = vmatpush.msra.mxu0 0.0
        %2237 = vmatpush.msra.mxu0 0.0
        %2238 = vmatpush.msra.mxu0 0.0
        %2239 = vmatpush.msra.mxu0 0.0
        %2240 = vmatpush.msra.mxu0 0.0
        %2241 = vmatpush.msra.mxu0 0.0
        %2242 = vmatpush.msra.mxu0 0.0
        %2243 = vmatpush.msra.mxu0 0.0
        %2244 = vmatpush.msra.mxu0 0.0
        %2245 = vmatpush.msra.mxu0 0.0
        %2246 = vmatpush.msra.mxu0 0.0
        %2247 = vmatpush.msra.mxu0 0.0
        %2248 = vmatpush.msra.mxu0 0.0
        %2249 = vmatpush.msra.mxu0 0.0
        %2250 = vmatpush.msra.mxu0 0.0
        %2251 = vmatpush.msra.mxu0 %v2122
        %2252 = vmatmul.f32.gmra.mxu0 %v2234
        %v2253 = vpop.f32.mrf.mxu0
        %v2254 = vadd.f32 0.0, %v2253
        %2255 = vdwg.mxu0
        %s2256 = scalar_lea.vmem [#allocation7], 4
        %v2257 = vld [vmem:[%s2256] sm:$0x3]
        %v2258 = vld [vmem:[#allocation20] sm:$0xff]
        %v2259 = vld [vmem:[#allocation20 + $0x8] sm:$0xff]
        %v2262 = vrot.slane %v2254, 7
        %v2263 = vsel %vm965, %v2262, %v2232
        %v2264 = vsel %vm799, %v2263, 0
        %2266 = vmatpush.msra.mxu0 0.0
        %2267 = vmatpush.msra.mxu0 0.0
        %2268 = vmatpush.msra.mxu0 0.0
        %2269 = vmatpush.msra.mxu0 0.0
        %2270 = vmatpush.msra.mxu0 0.0
        %2271 = vmatpush.msra.mxu0 0.0
        %2272 = vmatpush.msra.mxu0 0.0
        %2273 = vmatpush.msra.mxu0 0.0
        %2274 = vmatpush.msra.mxu0 0.0
        %2275 = vmatpush.msra.mxu0 0.0
        %2276 = vmatpush.msra.mxu0 0.0
        %2277 = vmatpush.msra.mxu0 0.0
        %2278 = vmatpush.msra.mxu0 0.0
        %2279 = vmatpush.msra.mxu0 0.0
        %2280 = vmatpush.msra.mxu0 %v2259
        %2281 = vmatpush.msra.mxu0 %v2258
        %2282 = vmatmul.f32.gmra.mxu0 %v2264
        %v2283 = vpop.f32.mrf.mxu0
        %v2284 = vadd.f32 0.0, %v2283
        %2285 = vdwg.mxu0
        %v2286 = vadd.f32 %v2257, %v2284
        %v2287 = vld [vmem:[#allocation21] sm:$0xff]
        %v2288 = vld [vmem:[#allocation21 + $0x8] sm:$0xff]
        %v2289 = vld [vmem:[#allocation24] sm:$0x1]
        %v2291 = vperm.slane %v2289, 0
        %2295 = vst [vmem:[#allocation1] ss:$4 sm:$0xff] %v1962
        %s2296 = scalar_lea.vmem [#allocation1], 1
        %2297 = vst [vmem:[%s2296] ss:$4 sm:$0xff] %v1963
        %v2298 = vld.sshfl [vmem:[#allocation1] sm:$0xff pattern:$0x73625140]
        %v2299 = vsel %vm799, %v2298, 0
        %2301 = vmatpush.msra.mxu0 0.0
        %2302 = vmatpush.msra.mxu0 0.0
        %2303 = vmatpush.msra.mxu0 0.0
        %2304 = vmatpush.msra.mxu0 0.0
        %2305 = vmatpush.msra.mxu0 0.0
        %2306 = vmatpush.msra.mxu0 0.0
        %2307 = vmatpush.msra.mxu0 0.0
        %2308 = vmatpush.msra.mxu0 0.0
        %2309 = vmatpush.msra.mxu0 0.0
        %2310 = vmatpush.msra.mxu0 0.0
        %2311 = vmatpush.msra.mxu0 0.0
        %2312 = vmatpush.msra.mxu0 0.0
        %2313 = vmatpush.msra.mxu0 0.0
        %2314 = vmatpush.msra.mxu0 0.0
        %2315 = vmatpush.msra.mxu0 %v2288
        %2316 = vmatpush.msra.mxu0 %v2287
        %2317 = vmatmul.f32.gmra.mxu0 %v2299
        %v2318 = vpop.f32.mrf.mxu0
        %v2319 = vadd.f32 %v2291, %v2318
        %2320 = vdwg.mxu0
        %v2322 = vrot.slane %v2286, 1
        %v2323 = vperm.slane %v2286, 0
        %v2324 = vperm.slane %v2322, 0
        %v2328 = vrot.slane %v2319, 2
        %v2330 = vadd.f32 %v2323, %v2319
        %v2331 = vadd.f32 %v2324, %v2328
        %v2332 = vxor.u32 %v2330, 2147483648
        %v2333 = vxor.u32 %v2331, 2147483648
        %v2334 = vmul.f32 %v2332, 1.442695
        %v2335 = vpow.pop %v2334
        %v2336 = vmul.f32 %v2333, 1.442695
        %v2337 = vpow.pop %v2336
        %v2338 = vadd.f32 %v2335, 1.0
        %v2339 = vadd.f32 %v2337, 1.0
        %v2340 = vrcp.pop %v2338
        %v2341 = vmul.f32 %v2338, %v2340
        %v2342 = vsub.f32 1.0, %v2341
        %v2343 = vmul.f32 %v2340, %v2342
        %v2344 = vadd.f32 %v2340, %v2343
        %vm2345 = vweird.f32 %v2338
        %vm2346 = vweird.f32 %v2340
        %vm2347 = vmor %vm2345, %vm2346
        %v2348 = vsel %vm2347, %v2340, %v2344
        %v2349 = vand.u32 2147483647, %v2338
        %vm2350 = vcmp.eq.f32.partialorder %v2349, 8.507059e+37
        %v2351 = vand.u32 %v2338, 2147483648
        %v2352 = vor.u32 1.1754944e-38, %v2351
        %v2353 = vsel %vm2350, %v2352, %v2348
        %v2354 = vmul.f32 1.0, %v2353
        %v2355 = vrcp.pop %v2339
        %v2356 = vmul.f32 %v2339, %v2355
        %v2357 = vsub.f32 1.0, %v2356
        %v2358 = vmul.f32 %v2355, %v2357
        %v2359 = vadd.f32 %v2355, %v2358
        %vm2360 = vweird.f32 %v2339
        %vm2361 = vweird.f32 %v2355
        %vm2362 = vmor %vm2360, %vm2361
        %v2363 = vsel %vm2362, %v2355, %v2359
        %v2364 = vand.u32 2147483647, %v2339
        %vm2365 = vcmp.eq.f32.partialorder %v2364, 8.507059e+37
        %v2366 = vand.u32 %v2339, 2147483648
        %v2367 = vor.u32 1.1754944e-38, %v2366
        %v2368 = vsel %vm2365, %v2367, %v2363
        %v2369 = vmul.f32 1.0, %v2368
        %2370 = vrot.lane.b32.xlu0 %v2319, 96
        %v2371 = vpop.permute.xlu0 %2370
        %2372 = vrot.lane.b32.xlu0 %v2328, 96
        %v2373 = vpop.permute.xlu0 %2372
        %v2376 = vmul.f32 %v2354, %v2371
        %v2377 = vmul.f32 %v2369, %v2373
        %2380 = vrot.lane.b32.xlu0 %v2376, 32
        %v2381 = vpop.permute.xlu0 %2380
        %2382 = vrot.lane.b32.xlu0 %v2377, 32
        %v2383 = vpop.permute.xlu0 %2382
        %v2386 = vadd.f32 %v2323, %v2381
        %v2387 = vadd.f32 %v2324, %v2383
        %v2388 = vtanh.pop %v2386
        %v2389 = vtanh.pop %v2387
        %v2390 = vsub.f32 1.0, %v2354
        %v2391 = vsub.f32 1.0, %v2369
        %2394 = vrot.lane.b32.xlu0 %v2388, 112
        %v2395 = vpop.permute.xlu0 %2394
        %2396 = vrot.lane.b32.xlu0 %v2389, 112
        %v2397 = vpop.permute.xlu0 %2396
        %v2400 = vmul.f32 %v2390, %v2395
        %v2401 = vmul.f32 %v2391, %v2397
        %2402 = vrot.lane.b32.xlu0 %v1962, 16
        %v2403 = vpop.permute.xlu0 %2402
        %2404 = vrot.lane.b32.xlu0 %v1963, 16
        %v2405 = vpop.permute.xlu0 %2404
        %v2408 = vmul.f32 %v2354, %v2403
        %v2409 = vmul.f32 %v2369, %v2405
        %v2410 = vadd.f32 %v2400, %v2408
        %v2411 = vadd.f32 %v2401, %v2409
        %v2412 = vperm.slane %v1961, 0
        %v2413 = vlaneseq
        %v2414 = vshrl.u32 %v2413, 7
        %2416 = vset.pattern.permute.xlu0 %v2414
        %2417 = vperm.xlu0 %2416, %v2412
        %v2418 = vpop.permute.xlu0 %2417
        %v2419 = vperm.slane %v1961, 1
        %v2420 = vlaneseq
        %v2421 = vshrl.u32 %v2420, 7
        %2423 = vset.pattern.permute.xlu0 %v2421
        %2424 = vperm.xlu0 %2423, %v2419
        %v2425 = vpop.permute.xlu0 %2424
        %v2426 = vsub.f32 1.0, %v2418
        %v2427 = vsub.f32 1.0, %v2425
        %v2428 = vmul.f32 %v1962, %v2426
        %v2429 = vmul.f32 %v1963, %v2427
        %v2430 = vmul.f32 %v2410, %v2418
        %v2431 = vmul.f32 %v2411, %v2425
        %2434 = vst [vmem:[#allocation1] ss:$4 sm:$0xff] %v2430
        %v2435 = vld.sshfl [vmem:[#allocation1] sm:$0xff pattern:$0x73625140]
        %s2436 = scalar_lea.vmem [#allocation1], 32
        %2437 = vst [vmem:[%s2436] ss:$4 sm:$0xff] %v2431
        %v2438 = vld.sshfl [vmem:[#allocation1 + $0x20] sm:$0xff pattern:$0x73625140]
        %2439 = vrot.lane.b32.xlu0 %v2435, 112
        %v2440 = vpop.permute.xlu0 %2439
        %2441 = vrot.lane.b32.xlu0 %v2438, 112
        %v2442 = vpop.permute.xlu0 %2441
        %v2445 = vadd.f32 %v2428, %v2440
        %v2446 = vadd.f32 %v2429, %v2442
        %v2447 = vmul.f32 %v1994, %v2445
        %v2448 = vmul.f32 %v2001, %v2446
        %v2449 = vsel %vm945, %v2447, 0.0
        %v2450 = vrot.slane %v2449, 4
        %v2451 = vadd.f32 %v2449, %v2450
        %v2452 = vrot.slane %v2451, 2
        %v2453 = vadd.f32 %v2451, %v2452
        %v2454 = vrot.slane %v2453, 1
        %v2455 = vadd.f32 %v2453, %v2454
        %v2456 = vsel %vm945, %v2448, 0.0
        %v2457 = vrot.slane %v2456, 4
        %v2458 = vadd.f32 %v2456, %v2457
        %v2459 = vrot.slane %v2458, 2
        %v2460 = vadd.f32 %v2458, %v2459
        %v2461 = vrot.slane %v2460, 1
        %v2462 = vadd.f32 %v2460, %v2461
        %v2465 = vsel %vm965, %v2462, %v2455
        %s2467 = scalar_lea.vmem [#allocation8], 4
        %2468 = vst.msk [vmem:[%s2467] sm:$0x3] %vm945, %v2465
        %2469 = vst.msk [vmem:[#allocation4] sm:$0x3] %vm945, %v2445
        %2470 = vst.msk [vmem:[#allocation4 + $0x2] sm:$0x3] %vm945, %v2446
        %2472 = vrot.lane.b32.xlu0 %v2118, 112
        %v2473 = vpop.permute.xlu0 %2472
        %2475 = vst.msk [vmem:[#allocation3] sm:$0x3] %vm945, %v2473
        %v2476 = vrot.slane %v2118, 1
        %v2477 = vperm.slane %v2118, 0
        %v2478 = vperm.slane %v2476, 0
        %2479 = vrot.lane.b32.xlu0 %v2477, 112
        %v2480 = vpop.permute.xlu0 %2479
        %2481 = vrot.lane.b32.xlu0 %v2478, 112
        %v2482 = vpop.permute.xlu0 %2481
        %s2485 = scalar_lea.vmem [#allocation2], %s1959
        %2486 = vst.msk [vmem:[%s2485] sm:$0x1] %vm1427, %v2480
        %2487 = vst.msk [vmem:[%s2485 + $0x8] sm:$0x1] %vm1427, %v2482
        %s2488 = sadd.s32 %s900, 3
        %s2489 = scalar_lea.vmem %s767, 6
        %v2490 = vld [vmem:[%s2489] sm:$0x3]
        %v2491 = vld [vmem:[#allocation4] sm:$0x3]
        %v2492 = vld [vmem:[#allocation4 + $0x2] sm:$0x3]
        %v2493 = vld [vmem:[#allocation3] sm:$0x3]
        %v2494 = vsel %vm905, %v2490, -inf
        %2495 = vmax.xlane.f32.xlu0 %v2494
        %v2496 = vpop.xlane.xlu0 %2495
        %vm2497 = vcmp.eq.f32.partialorder %v2490, %v2496
        %v2498 = vsel %vm2497, %v899, 2
        %v2499 = vsel %vm905, %v2498, 2147483647
        %v2500 = vand.u32 %v2499, 65535
        %v2501 = vshra.s32 %v2499, 16
        %v2502 = vcvt.s32.f32 %v2500
        %v2503 = vcvt.s32.f32 %v2501
        %2504 = vmin.xlane.f32.xlu0 %v2503
        %v2505 = vpop.xlane.xlu0 %2504
        %vm2506 = vcmp.eq.f32.partialorder %v2503, %v2505
        %v2507 = vsel %vm2506, %v2502, inf
        %2508 = vmin.xlane.f32.xlu0 %v2507
        %v2509 = vpop.xlane.xlu0 %2508
        %v2510 = vcvt.f32.s32 %v2509
        %v2511 = vcvt.f32.s32 %v2505
        %v2512 = vshll.u32 %v2511, 16
        %v2513 = vadd.s32 %v2512, %v2510
        %vm2514 = vcmp.eq.s32.totalorder %v899, %v2513
        %v2515 = vsel %vm2514, 1, 0
        %v2516 = vcvt.s32.f32 %v2515
        %v2517 = vperm.slane %v2516, 0
        %v2518 = vlaneseq
        %v2519 = vshrl.u32 %v2518, 7
        %2521 = vset.pattern.permute.xlu0 %v2519
        %2522 = vperm.xlu0 %2521, %v2517
        %v2523 = vpop.permute.xlu0 %2522
        %v2524 = vperm.slane %v2516, 1
        %v2525 = vlaneseq
        %v2526 = vshrl.u32 %v2525, 7
        %2528 = vset.pattern.permute.xlu0 %v2526
        %2529 = vperm.xlu0 %2528, %v2524
        %v2530 = vpop.permute.xlu0 %2529
        %v2531 = vmul.f32 %v2523, %v2491
        %v2532 = vmul.f32 %v2530, %v2492
        %v2533 = vsel %vm945, %v2531, 0.0
        %v2534 = vrot.slane %v2533, 4
        %v2535 = vadd.f32 %v2533, %v2534
        %v2536 = vrot.slane %v2535, 2
        %v2537 = vadd.f32 %v2535, %v2536
        %v2538 = vrot.slane %v2537, 1
        %v2539 = vadd.f32 %v2537, %v2538
        %v2540 = vsel %vm945, %v2532, 0.0
        %v2541 = vrot.slane %v2540, 4
        %v2542 = vadd.f32 %v2540, %v2541
        %v2543 = vrot.slane %v2542, 2
        %v2544 = vadd.f32 %v2542, %v2543
        %v2545 = vrot.slane %v2544, 1
        %v2546 = vadd.f32 %v2544, %v2545
        %s2547 = scalar_lea.vmem [#allocation6], 6
        %v2548 = vld [vmem:[%s2547] sm:$0x3]
        %v2549 = vld [vmem:[#allocation12] sm:$0xff]
        %v2550 = vld [vmem:[#allocation12 + $0x8] sm:$0xff]
        %v2553 = vsel %vm965, %v2546, %v2539
        %v2554 = vsel %vm799, %v2553, 0
        %2556 = vmatpush.msra.mxu0 0.0
        %2557 = vmatpush.msra.mxu0 0.0
        %2558 = vmatpush.msra.mxu0 0.0
        %2559 = vmatpush.msra.mxu0 0.0
        %2560 = vmatpush.msra.mxu0 0.0
        %2561 = vmatpush.msra.mxu0 0.0
        %2562 = vmatpush.msra.mxu0 0.0
        %2563 = vmatpush.msra.mxu0 0.0
        %2564 = vmatpush.msra.mxu0 0.0
        %2565 = vmatpush.msra.mxu0 0.0
        %2566 = vmatpush.msra.mxu0 0.0
        %2567 = vmatpush.msra.mxu0 0.0
        %2568 = vmatpush.msra.mxu0 0.0
        %2569 = vmatpush.msra.mxu0 0.0
        %2570 = vmatpush.msra.mxu0 %v2550
        %2571 = vmatpush.msra.mxu0 %v2549
        %2572 = vmatmul.f32.gmra.mxu0 %v2554
        %v2573 = vpop.f32.mrf.mxu0
        %v2574 = vadd.f32 0.0, %v2573
        %2575 = vdwg.mxu0
        %v2576 = vadd.f32 %v2548, %v2574
        %v2577 = vld [vmem:[#allocation14] sm:$0xff]
        %v2578 = vld [vmem:[#allocation14 + $0x8] sm:$0xff]
        %v2579 = vld [vmem:[#allocation17] sm:$0x1]
        %v2581 = vperm.slane %v2579, 0
        %v2584 = vsel %vm799, %v2493, 0
        %2586 = vmatpush.msra.mxu0 0.0
        %2587 = vmatpush.msra.mxu0 0.0
        %2588 = vmatpush.msra.mxu0 0.0
        %2589 = vmatpush.msra.mxu0 0.0
        %2590 = vmatpush.msra.mxu0 0.0
        %2591 = vmatpush.msra.mxu0 0.0
        %2592 = vmatpush.msra.mxu0 0.0
        %2593 = vmatpush.msra.mxu0 0.0
        %2594 = vmatpush.msra.mxu0 0.0
        %2595 = vmatpush.msra.mxu0 0.0
        %2596 = vmatpush.msra.mxu0 0.0
        %2597 = vmatpush.msra.mxu0 0.0
        %2598 = vmatpush.msra.mxu0 0.0
        %2599 = vmatpush.msra.mxu0 0.0
        %2600 = vmatpush.msra.mxu0 %v2578
        %2601 = vmatpush.msra.mxu0 %v2577
        %2602 = vmatmul.f32.gmra.mxu0 %v2584
        %v2603 = vpop.f32.mrf.mxu0
        %v2604 = vadd.f32 %v2581, %v2603
        %2605 = vdwg.mxu0
        %v2606 = vadd.f32 %v2576, %v2604
        %v2607 = vxor.u32 %v2606, 2147483648
        %v2608 = vmul.f32 %v2607, 1.442695
        %v2609 = vpow.pop %v2608
        %v2610 = vadd.f32 %v2609, 1.0
        %v2611 = vrcp.pop %v2610
        %v2612 = vmul.f32 %v2610, %v2611
        %v2613 = vsub.f32 1.0, %v2612
        %v2614 = vmul.f32 %v2611, %v2613
        %v2615 = vadd.f32 %v2611, %v2614
        %vm2616 = vweird.f32 %v2610
        %vm2617 = vweird.f32 %v2611
        %vm2618 = vmor %vm2616, %vm2617
        %v2619 = vsel %vm2618, %v2611, %v2615
        %v2620 = vand.u32 2147483647, %v2610
        %vm2621 = vcmp.eq.f32.partialorder %v2620, 8.507059e+37
        %v2622 = vand.u32 %v2610, 2147483648
        %v2623 = vor.u32 1.1754944e-38, %v2622
        %v2624 = vsel %vm2621, %v2623, %v2619
        %v2625 = vmul.f32 1.0, %v2624
        %2627 = vrot.lane.b32.xlu0 %v2604, 96
        %v2628 = vpop.permute.xlu0 %2627
        %v2630 = vmul.f32 %v2625, %v2628
        %2632 = vrot.lane.b32.xlu0 %v2630, 32
        %v2633 = vpop.permute.xlu0 %2632
        %v2635 = vadd.f32 %v2576, %v2633
        %v2636 = vtanh.pop %v2635
        %v2637 = vsub.f32 1.0, %v2625
        %2639 = vrot.lane.b32.xlu0 %v2636, 112
        %v2640 = vpop.permute.xlu0 %2639
        %v2642 = vmul.f32 %v2637, %v2640
        %2643 = vrot.lane.b32.xlu0 %v2493, 16
        %v2644 = vpop.permute.xlu0 %2643
        %v2646 = vmul.f32 %v2625, %v2644
        %v2647 = vadd.f32 %v2642, %v2646
        %s2648 = scalar_lea.vmem [#allocation5], 6
        %v2649 = vld [vmem:[%s2648] sm:$0x3]
        %v2650 = vld [vmem:[#allocation2] sm:$0xff]
        %v2651 = vld [vmem:[#allocation2 + $0x8] sm:$0xff]
        %v2653 = vrot.slane %v2649, 1
        %v2654 = vsel %vm799, %v2649, 0
        %v2657 = vsel %vm799, %v2650, 0
        %2659 = vmatpush.xpose.msra.mxu0 0.0
        %2660 = vmatpush.xpose.msra.mxu0 0.0
        %2661 = vmatpush.xpose.msra.mxu0 0.0
        %2662 = vmatpush.xpose.msra.mxu0 0.0
        %2663 = vmatpush.xpose.msra.mxu0 0.0
        %2664 = vmatpush.xpose.msra.mxu0 0.0
        %2665 = vmatpush.xpose.msra.mxu0 0.0
        %2666 = vmatpush.xpose.msra.mxu0 0.0
        %2667 = vmatpush.xpose.msra.mxu0 0.0
        %2668 = vmatpush.xpose.msra.mxu0 0.0
        %2669 = vmatpush.xpose.msra.mxu0 0.0
        %2670 = vmatpush.xpose.msra.mxu0 0.0
        %2671 = vmatpush.xpose.msra.mxu0 0.0
        %2672 = vmatpush.xpose.msra.mxu0 0.0
        %2673 = vmatpush.xpose.msra.mxu0 0.0
        %2674 = vmatpush.xpose.msra.mxu0 %v2657
        %2675 = vmatmul.f32.gmra.mxu0 %v2654
        %v2676 = vpop.f32.mrf.mxu0
        %v2677 = vadd.f32 0.0, %v2676
        %2678 = vdwg.mxu0
        %v2679 = vsel %vm799, %v2653, 0
        %v2682 = vsel %vm799, %v2651, 0
        %2684 = vmatpush.xpose.msra.mxu0 0.0
        %2685 = vmatpush.xpose.msra.mxu0 0.0
        %2686 = vmatpush.xpose.msra.mxu0 0.0
        %2687 = vmatpush.xpose.msra.mxu0 0.0
        %2688 = vmatpush.xpose.msra.mxu0 0.0
        %2689 = vmatpush.xpose.msra.mxu0 0.0
        %2690 = vmatpush.xpose.msra.mxu0 0.0
        %2691 = vmatpush.xpose.msra.mxu0 0.0
        %2692 = vmatpush.xpose.msra.mxu0 0.0
        %2693 = vmatpush.xpose.msra.mxu0 0.0
        %2694 = vmatpush.xpose.msra.mxu0 0.0
        %2695 = vmatpush.xpose.msra.mxu0 0.0
        %2696 = vmatpush.xpose.msra.mxu0 0.0
        %2697 = vmatpush.xpose.msra.mxu0 0.0
        %2698 = vmatpush.xpose.msra.mxu0 0.0
        %2699 = vmatpush.xpose.msra.mxu0 %v2682
        %2700 = vmatmul.f32.gmra.mxu0 %v2679
        %v2701 = vpop.f32.mrf.mxu0
        %v2702 = vadd.f32 0.0, %v2701
        %2703 = vdwg.mxu0
        %v2704 = vstv %s2488
        %vm2705 = vcmp.lt.s32.totalorder %v899, %v2704
        %v2708 = vrot.slane %v2702, 7
        %v2709 = vsel %vm965, %v2708, %v2677
        %v2711 = vsel %vm2705, %v2709, -1e+30
        %v2712 = vsel %vm1124, %v2711, -inf
        %2713 = vmax.xlane.f32.xlu0 %v2712
        %v2714 = vpop.xlane.xlu0 %2713
        %v2715 = vsub.f32 %v2711, %v2714
        %v2716 = vmul.f32 %v2715, 1.442695
        %v2717 = vpow.pop %v2716
        %v2718 = vsel %vm2705, %v2717, 0.0
        %v2719 = vsel %vm1124, %v2718, 0.0
        %2720 = vadd.xlane.f32.xlu0 %v2719
        %v2721 = vpop.xlane.xlu0 %2720
        %vm2722 = vcmp.gt.f32.partialorder %v2721, 0.0
        %v2723 = vsel %vm2722, %v2721, 1.0
        %v2724 = vrcp.pop %v2723
        %v2725 = vmul.f32 %v2723, %v2724
        %v2726 = vsub.f32 1.0, %v2725
        %v2727 = vmul.f32 %v2724, %v2726
        %v2728 = vadd.f32 %v2724, %v2727
        %vm2729 = vweird.f32 %v2723
        %vm2730 = vweird.f32 %v2724
        %vm2731 = vmor %vm2729, %vm2730
        %v2732 = vsel %vm2731, %v2724, %v2728
        %v2733 = vand.u32 2147483647, %v2723
        %vm2734 = vcmp.eq.f32.partialorder %v2733, 8.507059e+37
        %v2735 = vand.u32 %v2723, 2147483648
        %v2736 = vor.u32 1.1754944e-38, %v2735
        %v2737 = vsel %vm2734, %v2736, %v2732
        %v2738 = vmul.f32 %v2718, %v2737
        %v2740 = vrot.slane %v2738, 1
        %v2741 = vsel %vm1154, %v2738, 0
        %2743 = vmatpush.msra.mxu0 0.0
        %2744 = vmatpush.msra.mxu0 0.0
        %2745 = vmatpush.msra.mxu0 0.0
        %2746 = vmatpush.msra.mxu0 0.0
        %2747 = vmatpush.msra.mxu0 0.0
        %2748 = vmatpush.msra.mxu0 0.0
        %2749 = vmatpush.msra.mxu0 0.0
        %2750 = vmatpush.msra.mxu0 0.0
        %2751 = vmatpush.msra.mxu0 0.0
        %2752 = vmatpush.msra.mxu0 0.0
        %2753 = vmatpush.msra.mxu0 0.0
        %2754 = vmatpush.msra.mxu0 0.0
        %2755 = vmatpush.msra.mxu0 0.0
        %2756 = vmatpush.msra.mxu0 0.0
        %2757 = vmatpush.msra.mxu0 0.0
        %2758 = vmatpush.msra.mxu0 %v2650
        %2759 = vmatmul.f32.gmra.mxu0 %v2741
        %v2760 = vpop.f32.mrf.mxu0
        %v2761 = vadd.f32 0.0, %v2760
        %2762 = vdwg.mxu0
        %v2763 = vsel %vm1154, %v2740, 0
        %2765 = vmatpush.msra.mxu0 0.0
        %2766 = vmatpush.msra.mxu0 0.0
        %2767 = vmatpush.msra.mxu0 0.0
        %2768 = vmatpush.msra.mxu0 0.0
        %2769 = vmatpush.msra.mxu0 0.0
        %2770 = vmatpush.msra.mxu0 0.0
        %2771 = vmatpush.msra.mxu0 0.0
        %2772 = vmatpush.msra.mxu0 0.0
        %2773 = vmatpush.msra.mxu0 0.0
        %2774 = vmatpush.msra.mxu0 0.0
        %2775 = vmatpush.msra.mxu0 0.0
        %2776 = vmatpush.msra.mxu0 0.0
        %2777 = vmatpush.msra.mxu0 0.0
        %2778 = vmatpush.msra.mxu0 0.0
        %2779 = vmatpush.msra.mxu0 0.0
        %2780 = vmatpush.msra.mxu0 %v2651
        %2781 = vmatmul.f32.gmra.mxu0 %v2763
        %v2782 = vpop.f32.mrf.mxu0
        %v2783 = vadd.f32 0.0, %v2782
        %2784 = vdwg.mxu0
        %s2785 = scalar_lea.vmem [#allocation7], 6
        %v2786 = vld [vmem:[%s2785] sm:$0x3]
        %v2787 = vld [vmem:[#allocation20] sm:$0xff]
        %v2788 = vld [vmem:[#allocation20 + $0x8] sm:$0xff]
        %v2791 = vrot.slane %v2783, 7
        %v2792 = vsel %vm965, %v2791, %v2761
        %v2793 = vsel %vm799, %v2792, 0
        %2795 = vmatpush.msra.mxu0 0.0
        %2796 = vmatpush.msra.mxu0 0.0
        %2797 = vmatpush.msra.mxu0 0.0
        %2798 = vmatpush.msra.mxu0 0.0
        %2799 = vmatpush.msra.mxu0 0.0
        %2800 = vmatpush.msra.mxu0 0.0
        %2801 = vmatpush.msra.mxu0 0.0
        %2802 = vmatpush.msra.mxu0 0.0
        %2803 = vmatpush.msra.mxu0 0.0
        %2804 = vmatpush.msra.mxu0 0.0
        %2805 = vmatpush.msra.mxu0 0.0
        %2806 = vmatpush.msra.mxu0 0.0
        %2807 = vmatpush.msra.mxu0 0.0
        %2808 = vmatpush.msra.mxu0 0.0
        %2809 = vmatpush.msra.mxu0 %v2788
        %2810 = vmatpush.msra.mxu0 %v2787
        %2811 = vmatmul.f32.gmra.mxu0 %v2793
        %v2812 = vpop.f32.mrf.mxu0
        %v2813 = vadd.f32 0.0, %v2812
        %2814 = vdwg.mxu0
        %v2815 = vadd.f32 %v2786, %v2813
        %v2816 = vld [vmem:[#allocation21] sm:$0xff]
        %v2817 = vld [vmem:[#allocation21 + $0x8] sm:$0xff]
        %v2818 = vld [vmem:[#allocation24] sm:$0x1]
        %v2820 = vperm.slane %v2818, 0
        %2824 = vst [vmem:[#allocation1] ss:$4 sm:$0xff] %v2491
        %s2825 = scalar_lea.vmem [#allocation1], 1
        %2826 = vst [vmem:[%s2825] ss:$4 sm:$0xff] %v2492
        %v2827 = vld.sshfl [vmem:[#allocation1] sm:$0xff pattern:$0x73625140]
        %v2828 = vsel %vm799, %v2827, 0
        %2830 = vmatpush.msra.mxu0 0.0
        %2831 = vmatpush.msra.mxu0 0.0
        %2832 = vmatpush.msra.mxu0 0.0
        %2833 = vmatpush.msra.mxu0 0.0
        %2834 = vmatpush.msra.mxu0 0.0
        %2835 = vmatpush.msra.mxu0 0.0
        %2836 = vmatpush.msra.mxu0 0.0
        %2837 = vmatpush.msra.mxu0 0.0
        %2838 = vmatpush.msra.mxu0 0.0
        %2839 = vmatpush.msra.mxu0 0.0
        %2840 = vmatpush.msra.mxu0 0.0
        %2841 = vmatpush.msra.mxu0 0.0
        %2842 = vmatpush.msra.mxu0 0.0
        %2843 = vmatpush.msra.mxu0 0.0
        %2844 = vmatpush.msra.mxu0 %v2817
        %2845 = vmatpush.msra.mxu0 %v2816
        %2846 = vmatmul.f32.gmra.mxu0 %v2828
        %v2847 = vpop.f32.mrf.mxu0
        %v2848 = vadd.f32 %v2820, %v2847
        %2849 = vdwg.mxu0
        %v2851 = vrot.slane %v2815, 1
        %v2852 = vperm.slane %v2815, 0
        %v2853 = vperm.slane %v2851, 0
        %v2857 = vrot.slane %v2848, 2
        %v2859 = vadd.f32 %v2852, %v2848
        %v2860 = vadd.f32 %v2853, %v2857
        %v2861 = vxor.u32 %v2859, 2147483648
        %v2862 = vxor.u32 %v2860, 2147483648
        %v2863 = vmul.f32 %v2861, 1.442695
        %v2864 = vpow.pop %v2863
        %v2865 = vmul.f32 %v2862, 1.442695
        %v2866 = vpow.pop %v2865
        %v2867 = vadd.f32 %v2864, 1.0
        %v2868 = vadd.f32 %v2866, 1.0
        %v2869 = vrcp.pop %v2867
        %v2870 = vmul.f32 %v2867, %v2869
        %v2871 = vsub.f32 1.0, %v2870
        %v2872 = vmul.f32 %v2869, %v2871
        %v2873 = vadd.f32 %v2869, %v2872
        %vm2874 = vweird.f32 %v2867
        %vm2875 = vweird.f32 %v2869
        %vm2876 = vmor %vm2874, %vm2875
        %v2877 = vsel %vm2876, %v2869, %v2873
        %v2878 = vand.u32 2147483647, %v2867
        %vm2879 = vcmp.eq.f32.partialorder %v2878, 8.507059e+37
        %v2880 = vand.u32 %v2867, 2147483648
        %v2881 = vor.u32 1.1754944e-38, %v2880
        %v2882 = vsel %vm2879, %v2881, %v2877
        %v2883 = vmul.f32 1.0, %v2882
        %v2884 = vrcp.pop %v2868
        %v2885 = vmul.f32 %v2868, %v2884
        %v2886 = vsub.f32 1.0, %v2885
        %v2887 = vmul.f32 %v2884, %v2886
        %v2888 = vadd.f32 %v2884, %v2887
        %vm2889 = vweird.f32 %v2868
        %vm2890 = vweird.f32 %v2884
        %vm2891 = vmor %vm2889, %vm2890
        %v2892 = vsel %vm2891, %v2884, %v2888
        %v2893 = vand.u32 2147483647, %v2868
        %vm2894 = vcmp.eq.f32.partialorder %v2893, 8.507059e+37
        %v2895 = vand.u32 %v2868, 2147483648
        %v2896 = vor.u32 1.1754944e-38, %v2895
        %v2897 = vsel %vm2894, %v2896, %v2892
        %v2898 = vmul.f32 1.0, %v2897
        %2899 = vrot.lane.b32.xlu0 %v2848, 96
        %v2900 = vpop.permute.xlu0 %2899
        %2901 = vrot.lane.b32.xlu0 %v2857, 96
        %v2902 = vpop.permute.xlu0 %2901
        %v2905 = vmul.f32 %v2883, %v2900
        %v2906 = vmul.f32 %v2898, %v2902
        %2909 = vrot.lane.b32.xlu0 %v2905, 32
        %v2910 = vpop.permute.xlu0 %2909
        %2911 = vrot.lane.b32.xlu0 %v2906, 32
        %v2912 = vpop.permute.xlu0 %2911
        %v2915 = vadd.f32 %v2852, %v2910
        %v2916 = vadd.f32 %v2853, %v2912
        %v2917 = vtanh.pop %v2915
        %v2918 = vtanh.pop %v2916
        %v2919 = vsub.f32 1.0, %v2883
        %v2920 = vsub.f32 1.0, %v2898
        %2923 = vrot.lane.b32.xlu0 %v2917, 112
        %v2924 = vpop.permute.xlu0 %2923
        %2925 = vrot.lane.b32.xlu0 %v2918, 112
        %v2926 = vpop.permute.xlu0 %2925
        %v2929 = vmul.f32 %v2919, %v2924
        %v2930 = vmul.f32 %v2920, %v2926
        %2931 = vrot.lane.b32.xlu0 %v2491, 16
        %v2932 = vpop.permute.xlu0 %2931
        %2933 = vrot.lane.b32.xlu0 %v2492, 16
        %v2934 = vpop.permute.xlu0 %2933
        %v2937 = vmul.f32 %v2883, %v2932
        %v2938 = vmul.f32 %v2898, %v2934
        %v2939 = vadd.f32 %v2929, %v2937
        %v2940 = vadd.f32 %v2930, %v2938
        %v2941 = vperm.slane %v2490, 0
        %v2942 = vlaneseq
        %v2943 = vshrl.u32 %v2942, 7
        %2945 = vset.pattern.permute.xlu0 %v2943
        %2946 = vperm.xlu0 %2945, %v2941
        %v2947 = vpop.permute.xlu0 %2946
        %v2948 = vperm.slane %v2490, 1
        %v2949 = vlaneseq
        %v2950 = vshrl.u32 %v2949, 7
        %2952 = vset.pattern.permute.xlu0 %v2950
        %2953 = vperm.xlu0 %2952, %v2948
        %v2954 = vpop.permute.xlu0 %2953
        %v2955 = vsub.f32 1.0, %v2947
        %v2956 = vsub.f32 1.0, %v2954
        %v2957 = vmul.f32 %v2491, %v2955
        %v2958 = vmul.f32 %v2492, %v2956
        %v2959 = vmul.f32 %v2939, %v2947
        %v2960 = vmul.f32 %v2940, %v2954
        %2963 = vst [vmem:[#allocation1] ss:$4 sm:$0xff] %v2959
        %v2964 = vld.sshfl [vmem:[#allocation1] sm:$0xff pattern:$0x73625140]
        %s2965 = scalar_lea.vmem [#allocation1], 32
        %2966 = vst [vmem:[%s2965] ss:$4 sm:$0xff] %v2960
        %v2967 = vld.sshfl [vmem:[#allocation1 + $0x20] sm:$0xff pattern:$0x73625140]
        %2968 = vrot.lane.b32.xlu0 %v2964, 112
        %v2969 = vpop.permute.xlu0 %2968
        %2970 = vrot.lane.b32.xlu0 %v2967, 112
        %v2971 = vpop.permute.xlu0 %2970
        %v2974 = vadd.f32 %v2957, %v2969
        %v2975 = vadd.f32 %v2958, %v2971
        %v2976 = vmul.f32 %v2523, %v2974
        %v2977 = vmul.f32 %v2530, %v2975
        %v2978 = vsel %vm945, %v2976, 0.0
        %v2979 = vrot.slane %v2978, 4
        %v2980 = vadd.f32 %v2978, %v2979
        %v2981 = vrot.slane %v2980, 2
        %v2982 = vadd.f32 %v2980, %v2981
        %v2983 = vrot.slane %v2982, 1
        %v2984 = vadd.f32 %v2982, %v2983
        %v2985 = vsel %vm945, %v2977, 0.0
        %v2986 = vrot.slane %v2985, 4
        %v2987 = vadd.f32 %v2985, %v2986
        %v2988 = vrot.slane %v2987, 2
        %v2989 = vadd.f32 %v2987, %v2988
        %v2990 = vrot.slane %v2989, 1
        %v2991 = vadd.f32 %v2989, %v2990
        %v2994 = vsel %vm965, %v2991, %v2984
        %s2996 = scalar_lea.vmem [#allocation8], 6
        %2997 = vst.msk [vmem:[%s2996] sm:$0x3] %vm945, %v2994
        %2998 = vst.msk [vmem:[#allocation4] sm:$0x3] %vm945, %v2974
        %2999 = vst.msk [vmem:[#allocation4 + $0x2] sm:$0x3] %vm945, %v2975
        %3001 = vrot.lane.b32.xlu0 %v2647, 112
        %v3002 = vpop.permute.xlu0 %3001
        %3004 = vst.msk [vmem:[#allocation3] sm:$0x3] %vm945, %v3002
        %v3005 = vrot.slane %v2647, 1
        %v3006 = vperm.slane %v2647, 0
        %v3007 = vperm.slane %v3005, 0
        %3008 = vrot.lane.b32.xlu0 %v3006, 112
        %v3009 = vpop.permute.xlu0 %3008
        %3010 = vrot.lane.b32.xlu0 %v3007, 112
        %v3011 = vpop.permute.xlu0 %3010
        %s3014 = scalar_lea.vmem [#allocation2], %s2488
        %3015 = vst.msk [vmem:[%s3014] sm:$0x1] %vm1427, %v3009
        %3016 = vst.msk [vmem:[%s3014 + $0x8] sm:$0x1] %vm1427, %v3011
        %v3017 = vld [vmem:[#allocation8] sm:$0xff]
        %v3018 = vld [vmem:[#allocation26] sm:$0xff]
        %v3019 = vld [vmem:[#allocation26 + $0x8] sm:$0xff]
        %v3020 = vld [vmem:[#allocation27] sm:$0x1]
        %v3022 = vperm.slane %v3020, 0
        %v3025 = vsel %vm799, %v3017, 0
        %3027 = vmatpush.msra.mxu0 0.0
        %3028 = vmatpush.msra.mxu0 0.0
        %3029 = vmatpush.msra.mxu0 0.0
        %3030 = vmatpush.msra.mxu0 0.0
        %3031 = vmatpush.msra.mxu0 0.0
        %3032 = vmatpush.msra.mxu0 0.0
        %3033 = vmatpush.msra.mxu0 0.0
        %3034 = vmatpush.msra.mxu0 0.0
        %3035 = vmatpush.msra.mxu0 0.0
        %3036 = vmatpush.msra.mxu0 0.0
        %3037 = vmatpush.msra.mxu0 0.0
        %3038 = vmatpush.msra.mxu0 0.0
        %3039 = vmatpush.msra.mxu0 0.0
        %3040 = vmatpush.msra.mxu0 0.0
        %3041 = vmatpush.msra.mxu0 %v3019
        %3042 = vmatpush.msra.mxu0 %v3018
        %3043 = vmatmul.f32.gmra.mxu0 %v3025
        %v3044 = vpop.f32.mrf.mxu0
        %v3045 = vadd.f32 %v3022, %v3044
        %3046 = vdwg.mxu0
        %v3047 = vld [vmem:[%s14] sm:$0x1]
        %v3049 = vperm.slane %v3047, 0
        %v3051 = vadd.f32 %v3045, %v3049
        %v3052 = vxor.u32 %v3051, 2147483648
        %v3053 = vmul.f32 %v3052, 1.442695
        %v3054 = vpow.pop %v3053
        %v3055 = vadd.f32 %v3054, 1.0
        %v3056 = vrcp.pop %v3055
        %v3057 = vmul.f32 %v3055, %v3056
        %v3058 = vsub.f32 1.0, %v3057
        %v3059 = vmul.f32 %v3056, %v3058
        %v3060 = vadd.f32 %v3056, %v3059
        %vm3061 = vweird.f32 %v3055
        %vm3062 = vweird.f32 %v3056
        %vm3063 = vmor %vm3061, %vm3062
        %v3064 = vsel %vm3063, %v3056, %v3060
        %v3065 = vand.u32 2147483647, %v3055
        %vm3066 = vcmp.eq.f32.partialorder %v3065, 8.507059e+37
        %v3067 = vand.u32 %v3055, 2147483648
        %v3068 = vor.u32 1.1754944e-38, %v3067
        %v3069 = vsel %vm3066, %v3068, %v3064
        %v3070 = vmul.f32 1.0, %v3069
        %3071 = vrot.lane.b32.xlu0 %v3049, 112
        %v3072 = vpop.permute.xlu0 %3071
        %v3074 = vmul.f32 %v3070, %v3072
        %3076 = vrot.lane.b32.xlu0 %v3074, 16
        %v3077 = vpop.permute.xlu0 %3076
        %v3079 = vadd.f32 %v3045, %v3077
        %v3080 = vtanh.pop %v3079
        %v3081 = vsub.f32 1.0, %v3070
        %3083 = vrot.lane.b32.xlu0 %v3080, 120
        %v3084 = vpop.permute.xlu0 %3083
        %v3086 = vmul.f32 %v3081, %v3084
        %v3088 = vrot.slane %v3086, 2
        %v3089 = vrot.slane %v3086, 4
        %v3090 = vrot.slane %v3086, 6
        %3091 = vst [vmem:[#allocation1] ss:$4 sm:$0xff] %v3086
        %v3092 = vld.sshfl [vmem:[#allocation1] sm:$0xff pattern:$0x73625140]
        %s3093 = scalar_lea.vmem [#allocation1], 32
        %3094 = vst [vmem:[%s3093] ss:$4 sm:$0xff] %v3088
        %v3095 = vld.sshfl [vmem:[#allocation1 + $0x20] sm:$0xff pattern:$0x73625140]
        %3096 = vst [vmem:[#allocation1] ss:$4 sm:$0xff] %v3089
        %v3097 = vld.sshfl [vmem:[#allocation1] sm:$0xff pattern:$0x73625140]
        %3098 = vst [vmem:[%s3093] ss:$4 sm:$0xff] %v3090
        %v3099 = vld.sshfl [vmem:[#allocation1 + $0x20] sm:$0xff pattern:$0x73625140]
        %3100 = vrot.lane.b32.xlu0 %v3092, 120
        %v3101 = vpop.permute.xlu0 %3100
        %3102 = vrot.lane.b32.xlu0 %v3095, 120
        %v3103 = vpop.permute.xlu0 %3102
        %3104 = vrot.lane.b32.xlu0 %v3097, 120
        %v3105 = vpop.permute.xlu0 %3104
        %3106 = vrot.lane.b32.xlu0 %v3099, 120
        %v3107 = vpop.permute.xlu0 %3106
        %3112 = vst.msk [vmem:[%s750] sm:$0x3] %vm1124, %v3101
        %3113 = vst.msk [vmem:[%s750 + $0x2] sm:$0x3] %vm1124, %v3103
        %3114 = vst.msk [vmem:[%s750 + $0x4] sm:$0x3] %vm1124, %v3105
        %3115 = vst.msk [vmem:[%s750 + $0x6] sm:$0x3] %vm1124, %v3107
        %s3116 = sand.u32 %s409, 1
        %s3117 = scalar_lea.sflag [#allocation11], %s3116
        %s3118 = sand.u32 %s409, 1
        %s3119 = smul.addr %s3118, 8
        %s3120 = scalar_lea.vmem [#allocation29], %s3119
        // Predicated region
        $region137: #{tpu_custom_call.1} parent=83 // pred_check
          %p3121 = pneg %p419
        $region138: #{tpu_custom_call.1} parent=83 // pred_check_branch
          %3123 = sbr.rel (%p3121) target = $region140
        $region139: #{tpu_custom_call.1} parent=83 // pred_region
          %s3124 = smul.u32 4, %s42
          %3126 = vsyncadd %s3117, 0
          %s3127 = sadd.s32 %s41, %s3124
          %s3128 = smul.addr %s3127, 2
          %s3129 = scalar_lea.hbm %s16, %s3128
          %s3130 = sshll.u32 %s3120, 4
          %s3131 = int_to_ptr.vmem [resolvable:$true] %s3130
          %s3132 = sshll.u32 %s3129, 4
          %s3133 = int_to_ptr.hbm [resolvable:$true] %s3132
          %3138 = dma.vmem_to_hbm [thread:$0]  %s3131, 128, %s3133, %s3117, 32, 32, 2
        $region140: #{tpu_custom_call.1} parent=83 // pred_fallthru
          _
      $region84: #{tpu_custom_call.1} parent=5 // pred_fallthru
        _
      %p3139 = scmp.le.s32.totalorder 2, %s32
      // Predicated region
      $region141: #{tpu_custom_call.1} parent=5 // pred_check
        %p3140 = pneg %p3139
      $region142: #{tpu_custom_call.1} parent=5 // pred_check_branch
        %3142 = sbr.rel (%p3140) target = $region144
      $region143: #{tpu_custom_call.1} parent=5 // pred_region
        %s3143 = ssub.s32 %s32, 2
        // Predicated region
        $region145: #{tpu_custom_call.1} parent=143 // pred_check
          %p3144 = pneg %p425
        $region146: #{tpu_custom_call.1} parent=143 // pred_check_branch
          %3146 = sbr.rel (%p3144) target = $region148
        $region147: #{tpu_custom_call.1} parent=143 // pred_region
          %s3147 = sand.u32 %s410, 1
          %s3148 = scalar_lea.sflag [#allocation11], %s3147
          %s3149 = sand.u32 %s410, 1
          %s3150 = smul.addr %s3149, 8
          %s3151 = scalar_lea.vmem [#allocation29], %s3150
          %3153 = dma.done %s3148, 128
        $region148: #{tpu_custom_call.1} parent=143 // pred_fallthru
          _
      $region144: #{tpu_custom_call.1} parent=5 // pred_fallthru
        _
    $region6: #{tpu_custom_call.1} parent=1 // loop_footer
      %s36 = sadd.s32 1, %s32
    $region7: #{tpu_custom_call.1} parent=1 // loop_footer_branch
      %31 = sbr.rel target = $region3
    $region8: #{tpu_custom_call.1} parent=1 // loop_exit
      _
    %3154 = vsyncpa [#allocation10], 1
    %s3155 = scalar_lea.sflag [#allocation10], 1
    %3156 = vsyncpa %s3155, 1
    %3157 = vsyncpa [#allocation13], 1
    %3158 = vsyncpa [#allocation16], 1
    %3159 = vsyncpa [#allocation19], 1
    %3160 = vsyncpa [#allocation22], 1
    %3161 = vsyncpa [#allocation25], 1
    %3162 = vsyncpa [#allocation28], 1
    %3163 = vsyncpa [#allocation11], 1
    %s3164 = scalar_lea.sflag [#allocation11], 1
    %3165 = vsyncpa %s3164, 1

</llo_original>
